<compile_context>
chip_gen: v7x
topology: tpu7x:2x2x1
jax: 0.10.0
libtpu: 0.0.40
codegen_flags: <defaults>
</compile_context>

<pallas_src>
import functools
import math

import jax
import jax.numpy as jnp
import numpy as np
from jax.experimental import pallas as pl
from jax.experimental.pallas import tpu as pltpu

BN_EPS = 1e-5
VMEM_LIMIT = 32 * 1024 * 1024


def _round_up(x, m):
    return ((x + m - 1) // m) * m


# ----------------------------------------------------------------------------
# Kernel 1: M/K-tiled matmul + bias + optional ReLU (every conv goes through it)
# ----------------------------------------------------------------------------
def _mm_kernel(a_ref, b_ref, bias_ref, o_ref, acc_ref, *, relu, k_steps):
    k = pl.program_id(1)

    @pl.when(k == 0)
    def _():
        acc_ref[...] = jnp.zeros_like(acc_ref)

    acc_ref[...] += jnp.dot(a_ref[...], b_ref[...],
                            preferred_element_type=jnp.float32)

    @pl.when(k == k_steps - 1)
    def _():
        r = acc_ref[...] + bias_ref[...]          # bias (1, N) broadcasts over rows
        if relu:
            r = jnp.maximum(r, 0.0)
        o_ref[...] = r.astype(o_ref.dtype)


def matmul_bias_act(a, b, bias, relu, out_dtype=jnp.float32):
    """(M,K) @ (K,N) + bias[N], optional ReLU.  bf16 operands, f32 accumulation."""
    M, K = a.shape
    _, N = b.shape
    a = a.astype(jnp.bfloat16)
    b = b.astype(jnp.bfloat16)
    bias = bias.astype(jnp.float32).reshape(1, N)

    # K tiling (accumulate in VMEM scratch across the "arbitrary" axis).
    if K <= 1024:
        Kp = _round_up(K, 16)
        tk = Kp
    else:
        tk = 512
        Kp = _round_up(K, tk)

    # M tiling: big tiles, but keep >=2 parallel steps so both v7x cores engage.
    tm = min(512, _round_up(M, 8))
    if _round_up(M, tm) // tm < 2 and M > 8:
        tm = _round_up(max(8, _round_up(M, 8) // 2), 8)
    Mp = _round_up(M, tm)

    a_p = jnp.pad(a, ((0, Mp - M), (0, Kp - K)))
    b_p = jnp.pad(b, ((0, Kp - K), (0, 0)))
    gm, gk = Mp // tm, Kp // tk

    out = pl.pallas_call(
        functools.partial(_mm_kernel, relu=relu, k_steps=gk),
        out_shape=jax.ShapeDtypeStruct((Mp, N), out_dtype),
        grid=(gm, gk),
        in_specs=[
            pl.BlockSpec((tm, tk), lambda i, k: (i, k)),
            pl.BlockSpec((tk, N), lambda i, k: (k, 0)),
            pl.BlockSpec((1, N), lambda i, k: (0, 0)),
        ],
        out_specs=pl.BlockSpec((tm, N), lambda i, k: (i, 0)),
        scratch_shapes=[pltpu.VMEM((tm, N), jnp.float32)],
        compiler_params=pltpu.CompilerParams(
            dimension_semantics=("parallel", "arbitrary"),
            vmem_limit_bytes=VMEM_LIMIT),
    )(a_p, b_p, bias)
    return out[:M]


# ----------------------------------------------------------------------------
# Conv2d in NHWC via tap-stacked matmul (no activation transposes).
# ----------------------------------------------------------------------------
def conv2d(x, w, b, stride=1, padding=0, dilation=1, relu=False,
           out_dtype=jnp.float32):
    """x: (N,H,W,Ci) NHWC;  w: (Co,Ci,kh,kw) PyTorch layout;  b: (Co,)."""
    N, H, W, Ci = x.shape
    Co, _, kh, kw = w.shape
    s, p, d = stride, padding, dilation
    Ho = (H + 2 * p - d * (kh - 1) - 1) // s + 1
    Wo = (W + 2 * p - d * (kw - 1) - 1) // s + 1
    if kh == 1 and kw == 1 and s == 1 and p == 0:
        a = x.reshape(N * Ho * Wo, Ci)
    else:
        # TODO(synk): taps are still materialized host-side (im2col); an in-kernel
        # windowed DMA over the padded NHWC plane would cut 3x3 read traffic ~9x.
        xp = jnp.pad(x, ((0, 0), (p, p), (p, p), (0, 0)))
        cols = []
        for i in range(kh):
            for j in range(kw):
                cols.append(xp[:, i * d: i * d + (Ho - 1) * s + 1: s,
                               j * d: j * d + (Wo - 1) * s + 1: s, :])
        a = jnp.concatenate(cols, axis=-1).reshape(N * Ho * Wo, kh * kw * Ci)
    wm = jnp.transpose(w, (2, 3, 1, 0)).reshape(kh * kw * Ci, Co)
    out = matmul_bias_act(a, wm, b, relu=relu, out_dtype=out_dtype)
    return out.reshape(N, Ho, Wo, Co)


# ----------------------------------------------------------------------------
# Kernel 2: fused  concat([b1..b4, b5_bcast]) -> 1x1 cat conv + ReLU -> 1x1 cls conv
#   acc = sum_i b_i @ Wcat_i ;  feat = relu(acc + g[n])   (g folds global branch+bias)
#   logits = feat @ Wcls + bcls
# ----------------------------------------------------------------------------
def _cat_cls_kernel(b1_ref, b2_ref, b3_ref, b4_ref, w_ref, g_ref,
                    wcls_ref, bcls_ref, o_ref):
    acc = jnp.dot(b1_ref[0], w_ref[0], preferred_element_type=jnp.float32)
    acc = acc + jnp.dot(b2_ref[0], w_ref[1], preferred_element_type=jnp.float32)
    acc = acc + jnp.dot(b3_ref[0], w_ref[2], preferred_element_type=jnp.float32)
    acc = acc + jnp.dot(b4_ref[0], w_ref[3], preferred_element_type=jnp.float32)
    feat = jnp.maximum(acc + g_ref[0], 0.0)                      # (tm, C) f32
    logits = jnp.dot(feat.astype(jnp.bfloat16), wcls_ref[...],
                     preferred_element_type=jnp.float32) + bcls_ref[...]
    o_ref[0] = logits.astype(o_ref.dtype)


def fused_aspp_cat_cls(b1, b2, b3, b4, wcat_chunks, g, wcls_m, bcls):
    Nb, Ho, Wo, C = b1.shape
    ncls = wcls_m.shape[1]
    Mimg = Ho * Wo
    Mp = _round_up(Mimg, 8)
    tm = min(512, Mp)
    Mp = _round_up(Mp, tm)

    def prep(t):
        t = t.reshape(Nb, Mimg, C).astype(jnp.bfloat16)
        return jnp.pad(t, ((0, 0), (0, Mp - Mimg), (0, 0)))

    b1, b2, b3, b4 = prep(b1), prep(b2), prep(b3), prep(b4)
    w = jnp.stack(wcat_chunks, axis=0).astype(jnp.bfloat16)          # (4, C, C)
    g = g.astype(jnp.float32).reshape(Nb, 1, C)                      # per-image bias
    wcls_m = wcls_m.astype(jnp.bfloat16)                             # (C, ncls)
    bcls = bcls.astype(jnp.float32).reshape(1, ncls)

    out = pl.pallas_call(
        _cat_cls_kernel,
        out_shape=jax.ShapeDtypeStruct((Nb, Mp, ncls), jnp.float32),
        grid=(Nb, Mp // tm),
        in_specs=[
            pl.BlockSpec((1, tm, C), lambda n, m: (n, m, 0)),
            pl.BlockSpec((1, tm, C), lambda n, m: (n, m, 0)),
            pl.BlockSpec((1, tm, C), lambda n, m: (n, m, 0)),
            pl.BlockSpec((1, tm, C), lambda n, m: (n, m, 0)),
            pl.BlockSpec((4, C, C), lambda n, m: (0, 0, 0)),
            pl.BlockSpec((1, 1, C), lambda n, m: (n, 0, 0)),
            pl.BlockSpec((C, ncls), lambda n, m: (0, 0)),
            pl.BlockSpec((1, ncls), lambda n, m: (0, 0)),
        ],
        out_specs=pl.BlockSpec((1, tm, ncls), lambda n, m: (n, m, 0)),
        compiler_params=pltpu.CompilerParams(
            dimension_semantics=("parallel", "parallel"),
            vmem_limit_bytes=VMEM_LIMIT),
    )(b1, b2, b3, b4, w, g, wcls_m, bcls)
    return out[:, :Mimg].reshape(Nb, Ho, Wo, ncls)


# ----------------------------------------------------------------------------
# Kernel 3: fused bilinear resize (align_corners=True):  out = Ah @ x @ Aw^T
# per (n, class) plane, everything stays in VMEM.
# ----------------------------------------------------------------------------
def _bilinear_matrix(out_size, in_size):
    A = np.zeros((out_size, in_size), np.float32)
    if in_size == 1:
        A[:, 0] = 1.0
        return jnp.asarray(A)
    scale = 0.0 if out_size == 1 else (in_size - 1) / (out_size - 1)
    for i in range(out_size):
        src = i * scale
        k0 = min(int(np.floor(src)), in_size - 1)
        k1 = min(k0 + 1, in_size - 1)
        frac = src - k0
        A[i, k0] += 1.0 - frac
        A[i, k1] += frac
    return jnp.asarray(A)


def _bilinear_kernel(x_ref, ah_ref, awt_ref, o_ref):
    t = jnp.dot(ah_ref[...], x_ref[0], preferred_element_type=jnp.float32)   # (H, w)
    o_ref[0] = jnp.dot(t, awt_ref[...],
                       preferred_element_type=jnp.float32).astype(o_ref.dtype)


def bilinear_upsample_planes(x, H, W):
    """x: (P, h, w) stack of planes -> (P, H, W), align_corners=True."""
    P, h, w = x.shape
    Ah = _bilinear_matrix(H, h)            # (H, h)
    Awt = _bilinear_matrix(W, w).T         # (w, W)
    return pl.pallas_call(
        _bilinear_kernel,
        out_shape=jax.ShapeDtypeStruct((P, H, W), jnp.float32),
        grid=(P,),
        in_specs=[
            pl.BlockSpec((1, h, w), lambda i: (i, 0, 0)),
            pl.BlockSpec((H, h), lambda i: (0, 0)),
            pl.BlockSpec((w, W), lambda i: (0, 0)),
        ],
        out_specs=pl.BlockSpec((1, H, W), lambda i: (i, 0, 0)),
        compiler_params=pltpu.CompilerParams(
            dimension_semantics=("parallel",),
            vmem_limit_bytes=VMEM_LIMIT),
    )(x.astype(jnp.float32), Ah, Awt)


# ----------------------------------------------------------------------------
# Deterministic parameter construction (kaiming fan_out init, BN folded).
# ----------------------------------------------------------------------------
def conv_init(key, co, ci, kh, kw):
    fan_out = co * kh * kw
    std = math.sqrt(2.0 / fan_out)
    w = jax.random.normal(key, (co, ci, kh, kw), jnp.float32) * std
    b = jnp.zeros((co,), jnp.float32)
    return w, b


def fold_bn(wb, gamma=1.0, beta=0.0, mean=0.0, var=1.0):
    w, b = wb
    scale = gamma / math.sqrt(var + BN_EPS)
    return w * scale, b * scale + (beta - mean * scale)


def build_params(key, in_ch=3, bb_dim=64, aspp_out=32, num_classes=6):
    k = jax.random.split(key, 10)
    p = {}
    # TODO(synk): build_backbone() source is not provided; use a deterministic
    # 2-block conv+BN+ReLU stub (output stride 4, OUTPUT_DIM=bb_dim) in its place.
    p["bb1"] = fold_bn(conv_init(k[0], 16, in_ch, 3, 3))
    p["bb2"] = fold_bn(conv_init(k[1], bb_dim, 16, 3, 3))
    # ASPP(dim_in=bb_dim, dim_out=aspp_out, rate=[0,6,12,18], has_global=True)
    p["aspp1"] = fold_bn(conv_init(k[2], aspp_out, bb_dim, 1, 1))   # rate 0 -> 1x1
    p["aspp2"] = fold_bn(conv_init(k[3], aspp_out, bb_dim, 3, 3))   # dil 6
    p["aspp3"] = fold_bn(conv_init(k[4], aspp_out, bb_dim, 3, 3))   # dil 12
    p["aspp4"] = fold_bn(conv_init(k[5], aspp_out, bb_dim, 3, 3))   # dil 18
    p["aspp_g"] = fold_bn(conv_init(k[6], aspp_out, bb_dim, 1, 1))  # global branch
    p["aspp_cat"] = fold_bn(conv_init(k[7], aspp_out, aspp_out * 5, 1, 1))
    # cls_conv: plain 1x1 conv, no BN/ReLU
    p["cls"] = conv_init(k[8], num_classes, aspp_out, 1, 1)
    return p


# ----------------------------------------------------------------------------
# deeplabv3.forward
# ----------------------------------------------------------------------------
def deeplabv3_forward(params, x):
    N, _, H, W = x.shape
    xh = jnp.transpose(x, (0, 2, 3, 1))                       # NCHW -> NHWC (once)

    # backbone (stub) -> last feature map, kept in bf16 NHWC
    f = conv2d(xh, *params["bb1"], stride=2, padding=1, relu=True,
               out_dtype=jnp.bfloat16)
    f = conv2d(f, *params["bb2"], stride=2, padding=1, relu=True,
               out_dtype=jnp.bfloat16)

    # ASPP spatial branches (bf16 outputs feed the fused cat/cls kernel)
    b1 = conv2d(f, *params["aspp1"], relu=True, out_dtype=jnp.bfloat16)
    b2 = conv2d(f, *params["aspp2"], padding=6, dilation=6, relu=True,
                out_dtype=jnp.bfloat16)
    b3 = conv2d(f, *params["aspp3"], padding=12, dilation=12, relu=True,
                out_dtype=jnp.bfloat16)
    b4 = conv2d(f, *params["aspp4"], padding=18, dilation=18, relu=True,
                out_dtype=jnp.bfloat16)

    # global branch: VPU mean + tiny XLA matmul; its (spatially constant)
    # contribution through the cat conv is folded into a per-image bias.
    wg, bg = params["aspp_g"]
    gp = jnp.mean(f.astype(jnp.float32), axis=(1, 2))          # (N, Cb)
    b5 = jnp.maximum(gp @ wg[:, :, 0, 0].T + bg, 0.0)          # (N, aspp_out)

    wcat, bcat = params["aspp_cat"]
    aspp_out = b1.shape[-1]
    wcat_m = wcat[:, :, 0, 0].T                                # (5*aspp_out, aspp_out)
    chunks = [wcat_m[i * aspp_out:(i + 1) * aspp_out] for i in range(5)]
    g = b5 @ chunks[4] + bcat                                  # (N, aspp_out)

    wcls, bcls = params["cls"]
    wcls_m = wcls[:, :, 0, 0].T                                # (aspp_out, ncls)

    # fused concat + aspp_cat conv + ReLU + cls conv  (one Pallas kernel)
    logits = fused_aspp_cat_cls(b1, b2, b3, b4, chunks[:4], g, wcls_m, bcls)

    # fused bilinear upsample (align_corners=True) straight into NCHW layout
    ncls = logits.shape[-1]
    Ho, Wo = logits.shape[1], logits.shape[2]
    planes = jnp.transpose(logits, (0, 3, 1, 2)).reshape(N * ncls, Ho, Wo)
    up = bilinear_upsample_planes(planes, H, W)
    return up.reshape(N, ncls, H, W)


if __name__ == "__main__":
    key = jax.random.PRNGKey(0)
    pkey, xkey = jax.random.split(key)
    num_classes = 6
    params = build_params(pkey, in_ch=3, bb_dim=64, aspp_out=32,
                          num_classes=num_classes)
    x = jax.random.normal(xkey, (2, 3, 16, 16), jnp.float32)   # NCHW, like PyTorch
    fwd = jax.jit(deeplabv3_forward)
    out = jax.block_until_ready(fwd(params, x))
    assert out.shape == (2, num_classes, 16, 16), out.shape
    assert bool(jnp.all(jnp.isfinite(out)))
    print("KERNEL_OK")
</pallas_src>

<mosaic_0001>
module attributes {stable_mosaic.version = 11 : i64} {
  func.func @_mm_kernel(%arg0: i32, %arg1: i32, %arg2: memref<64x32xbf16, #tpu.memory_space<vmem>>, %arg3: memref<32x16xbf16, #tpu.memory_space<vmem>>, %arg4: memref<1x16xf32, #tpu.memory_space<vmem>>, %arg5: memref<64x16xbf16, #tpu.memory_space<vmem>>, %arg6: memref<64x16xf32, #tpu.memory_space<vmem>>) attributes {dimension_semantics = [#tpu.dimension_semantics<parallel>, #tpu.dimension_semantics<arbitrary>], iteration_bounds = array<i64: 2, 1>, scalar_prefetch = 0 : i64, scratch_operands = 1 : i64, tpu.core_type = #tpu.core_type<tc>, window_params = [{transform_indices = @transform_0, window_bounds = array<i64: 64, 32>}, {transform_indices = @transform_1, window_bounds = array<i64: 32, 16>}, {pipeline_mode = #tpu.pipeline_mode<synchronous>, transform_indices = @transform_2, window_bounds = array<i64: 1, 16>}, {transform_indices = @transform_3, window_bounds = array<i64: 64, 16>}]} {
    %c0_i32 = arith.constant 0 : i32
    %0 = arith.cmpi eq, %arg1, %c0_i32 : i32
    %1 = arith.extui %0 : i1 to i32
    %c0_i32_0 = arith.constant 0 : i32
    %2 = arith.cmpi ne, %1, %c0_i32_0 : i32
    scf.if %2 {
      %cst_10 = arith.constant 0.000000e+00 : f32
      %12 = vector.broadcast %cst_10 : f32 to vector<64x16xf32>
      %c0_11 = arith.constant 0 : index
      %c0_12 = arith.constant 0 : index
      %13 = vector.load %arg6[%c0_11, %c0_12] : memref<64x16xf32, #tpu.memory_space<vmem>>, vector<64x16xf32>
      tpu.vector_store %arg6[%c0_11, %c0_12], %12 {strides = array<i32>} : memref<64x16xf32, #tpu.memory_space<vmem>>, vector<64x16xf32>,
    } else {
    }
    %c0 = arith.constant 0 : index
    %c0_1 = arith.constant 0 : index
    %3 = vector.load %arg6[%c0, %c0_1] : memref<64x16xf32, #tpu.memory_space<vmem>>, vector<64x16xf32>
    %c0_2 = arith.constant 0 : index
    %c0_3 = arith.constant 0 : index
    %4 = vector.load %arg2[%c0_2, %c0_3] : memref<64x32xbf16, #tpu.memory_space<vmem>>, vector<64x32xbf16>
    %c0_4 = arith.constant 0 : index
    %c0_5 = arith.constant 0 : index
    %5 = vector.load %arg3[%c0_4, %c0_5] : memref<32x16xbf16, #tpu.memory_space<vmem>>, vector<32x16xbf16>
    %cst = arith.constant dense<0.000000e+00> : vector<64x16xf32>
    %6 = tpu.matmul %4, %5, %cst {dimension_numbers = #tpu.dot_dimension_numbers<[1], [0], [0], [1], [0, 0, 1, 1], [], []>} : vector<64x32xbf16>, vector<32x16xbf16>, vector<64x16xf32> -> vector<64x16xf32>
    %7 = arith.addf %3, %6 : vector<64x16xf32>
    %c0_6 = arith.constant 0 : index
    %c0_7 = arith.constant 0 : index
    %8 = vector.load %arg6[%c0_6, %c0_7] : memref<64x16xf32, #tpu.memory_space<vmem>>, vector<64x16xf32>
    tpu.vector_store %arg6[%c0_6, %c0_7], %7 {strides = array<i32>} : memref<64x16xf32, #tpu.memory_space<vmem>>, vector<64x16xf32>,
    %c0_i32_8 = arith.constant 0 : i32
    %9 = arith.cmpi eq, %arg1, %c0_i32_8 : i32
    %10 = arith.extui %9 : i1 to i32
    %c0_i32_9 = arith.constant 0 : i32
    %11 = arith.cmpi ne, %10, %c0_i32_9 : i32
    scf.if %11 {
      %c0_10 = arith.constant 0 : index
      %c0_11 = arith.constant 0 : index
      %12 = vector.load %arg6[%c0_10, %c0_11] : memref<64x16xf32, #tpu.memory_space<vmem>>, vector<64x16xf32>
      %c0_12 = arith.constant 0 : index
      %c0_13 = arith.constant 0 : index
      %13 = vector.load %arg4[%c0_12, %c0_13] : memref<1x16xf32, #tpu.memory_space<vmem>>, vector<1x16xf32>
      %14 = vector.broadcast %13 : vector<1x16xf32> to vector<64x16xf32>
      %15 = arith.addf %12, %14 : vector<64x16xf32>
      %cst_14 = arith.constant 0.000000e+00 : f32
      %16 = vector.broadcast %cst_14 : f32 to vector<64x16xf32>
      %17 = arith.maximumf %15, %16 : vector<64x16xf32>
      %18 = arith.truncf %17 : vector<64x16xf32> to vector<64x16xbf16>
      %c0_15 = arith.constant 0 : index
      %c0_16 = arith.constant 0 : index
      %19 = vector.load %arg5[%c0_15, %c0_16] : memref<64x16xbf16, #tpu.memory_space<vmem>>, vector<64x16xbf16>
      tpu.vector_store %arg5[%c0_15, %c0_16], %18 {strides = array<i32>} : memref<64x16xbf16, #tpu.memory_space<vmem>>, vector<64x16xbf16>,
    } else {
    }
    return
  }
  func.func @transform_0(%arg0: i32, %arg1: i32) -> (i32, i32) {
    %c0_i32 = arith.constant 0 : i32
    return %arg0, %arg1 : i32, i32
  }
  func.func @transform_1(%arg0: i32, %arg1: i32) -> (i32, i32) {
    %c0_i32 = arith.constant 0 : i32
    %c0_i32_0 = arith.constant 0 : i32
    return %arg1, %c0_i32 : i32, i32
  }
  func.func @transform_2(%arg0: i32, %arg1: i32) -> (i32, i32) {
    %c0_i32 = arith.constant 0 : i32
    %c0_i32_0 = arith.constant 0 : i32
    %c0_i32_1 = arith.constant 0 : i32
    return %c0_i32, %c0_i32_0 : i32, i32
  }
  func.func @transform_3(%arg0: i32, %arg1: i32) -> (i32, i32) {
    %c0_i32 = arith.constant 0 : i32
    %c0_i32_0 = arith.constant 0 : i32
    return %arg0, %c0_i32 : i32, i32
  }
}

module attributes {stable_mosaic.version = 11 : i64} {
  func.func @_mm_kernel(%arg0: i32, %arg1: i32, %arg2: memref<16x144xbf16, #tpu.memory_space<vmem>>, %arg3: memref<144x64xbf16, #tpu.memory_space<vmem>>, %arg4: memref<1x64xf32, #tpu.memory_space<vmem>>, %arg5: memref<16x64xbf16, #tpu.memory_space<vmem>>, %arg6: memref<16x64xf32, #tpu.memory_space<vmem>>) attributes {dimension_semantics = [#tpu.dimension_semantics<parallel>, #tpu.dimension_semantics<arbitrary>], iteration_bounds = array<i64: 2, 1>, scalar_prefetch = 0 : i64, scratch_operands = 1 : i64, tpu.core_type = #tpu.core_type<tc>, window_params = [{transform_indices = @transform_0, window_bounds = array<i64: 16, 144>}, {transform_indices = @transform_1, window_bounds = array<i64: 144, 64>}, {pipeline_mode = #tpu.pipeline_mode<synchronous>, transform_indices = @transform_2, window_bounds = array<i64: 1, 64>}, {transform_indices = @transform_3, window_bounds = array<i64: 16, 64>}]} {
    %c0_i32 = arith.constant 0 : i32
    %0 = arith.cmpi eq, %arg1, %c0_i32 : i32
    %1 = arith.extui %0 : i1 to i32
    %c0_i32_0 = arith.constant 0 : i32
    %2 = arith.cmpi ne, %1, %c0_i32_0 : i32
    scf.if %2 {
      %cst_10 = arith.constant 0.000000e+00 : f32
      %12 = vector.broadcast %cst_10 : f32 to vector<16x64xf32>
      %c0_11 = arith.constant 0 : index
      %c0_12 = arith.constant 0 : index
      %13 = vector.load %arg6[%c0_11, %c0_12] : memref<16x64xf32, #tpu.memory_space<vmem>>, vector<16x64xf32>
      tpu.vector_store %arg6[%c0_11, %c0_12], %12 {strides = array<i32>} : memref<16x64xf32, #tpu.memory_space<vmem>>, vector<16x64xf32>,
    } else {
    }
    %c0 = arith.constant 0 : index
    %c0_1 = arith.constant 0 : index
    %3 = vector.load %arg6[%c0, %c0_1] : memref<16x64xf32, #tpu.memory_space<vmem>>, vector<16x64xf32>
    %c0_2 = arith.constant 0 : index
    %c0_3 = arith.constant 0 : index
    %4 = vector.load %arg2[%c0_2, %c0_3] : memref<16x144xbf16, #tpu.memory_space<vmem>>, vector<16x144xbf16>
    %c0_4 = arith.constant 0 : index
    %c0_5 = arith.constant 0 : index
    %5 = vector.load %arg3[%c0_4, %c0_5] : memref<144x64xbf16, #tpu.memory_space<vmem>>, vector<144x64xbf16>
    %cst = arith.constant dense<0.000000e+00> : vector<16x64xf32>
    %6 = tpu.matmul %4, %5, %cst {dimension_numbers = #tpu.dot_dimension_numbers<[1], [0], [0], [1], [0, 0, 1, 1], [], []>} : vector<16x144xbf16>, vector<144x64xbf16>, vector<16x64xf32> -> vector<16x64xf32>
    %7 = arith.addf %3, %6 : vector<16x64xf32>
    %c0_6 = arith.constant 0 : index
    %c0_7 = arith.constant 0 : index
    %8 = vector.load %arg6[%c0_6, %c0_7] : memref<16x64xf32, #tpu.memory_space<vmem>>, vector<16x64xf32>
    tpu.vector_store %arg6[%c0_6, %c0_7], %7 {strides = array<i32>} : memref<16x64xf32, #tpu.memory_space<vmem>>, vector<16x64xf32>,
    %c0_i32_8 = arith.constant 0 : i32
    %9 = arith.cmpi eq, %arg1, %c0_i32_8 : i32
    %10 = arith.extui %9 : i1 to i32
    %c0_i32_9 = arith.constant 0 : i32
    %11 = arith.cmpi ne, %10, %c0_i32_9 : i32
    scf.if %11 {
      %c0_10 = arith.constant 0 : index
      %c0_11 = arith.constant 0 : index
      %12 = vector.load %arg6[%c0_10, %c0_11] : memref<16x64xf32, #tpu.memory_space<vmem>>, vector<16x64xf32>
      %c0_12 = arith.constant 0 : index
      %c0_13 = arith.constant 0 : index
      %13 = vector.load %arg4[%c0_12, %c0_13] : memref<1x64xf32, #tpu.memory_space<vmem>>, vector<1x64xf32>
      %14 = vector.broadcast %13 : vector<1x64xf32> to vector<16x64xf32>
      %15 = arith.addf %12, %14 : vector<16x64xf32>
      %cst_14 = arith.constant 0.000000e+00 : f32
      %16 = vector.broadcast %cst_14 : f32 to vector<16x64xf32>
      %17 = arith.maximumf %15, %16 : vector<16x64xf32>
      %18 = arith.truncf %17 : vector<16x64xf32> to vector<16x64xbf16>
      %c0_15 = arith.constant 0 : index
      %c0_16 = arith.constant 0 : index
      %19 = vector.load %arg5[%c0_15, %c0_16] : memref<16x64xbf16, #tpu.memory_space<vmem>>, vector<16x64xbf16>
      tpu.vector_store %arg5[%c0_15, %c0_16], %18 {strides = array<i32>} : memref<16x64xbf16, #tpu.memory_space<vmem>>, vector<16x64xbf16>,
    } else {
    }
    return
  }
  func.func @transform_0(%arg0: i32, %arg1: i32) -> (i32, i32) {
    %c0_i32 = arith.constant 0 : i32
    return %arg0, %arg1 : i32, i32
  }
  func.func @transform_1(%arg0: i32, %arg1: i32) -> (i32, i32) {
    %c0_i32 = arith.constant 0 : i32
    %c0_i32_0 = arith.constant 0 : i32
    return %arg1, %c0_i32 : i32, i32
  }
  func.func @transform_2(%arg0: i32, %arg1: i32) -> (i32, i32) {
    %c0_i32 = arith.constant 0 : i32
    %c0_i32_0 = arith.constant 0 : i32
    %c0_i32_1 = arith.constant 0 : i32
    return %c0_i32, %c0_i32_0 : i32, i32
  }
  func.func @transform_3(%arg0: i32, %arg1: i32) -> (i32, i32) {
    %c0_i32 = arith.constant 0 : i32
    %c0_i32_0 = arith.constant 0 : i32
    return %arg0, %c0_i32 : i32, i32
  }
}

module attributes {stable_mosaic.version = 11 : i64} {
  func.func @_mm_kernel(%arg0: i32, %arg1: i32, %arg2: memref<16x576xbf16, #tpu.memory_space<vmem>>, %arg3: memref<576x32xbf16, #tpu.memory_space<vmem>>, %arg4: memref<1x32xf32, #tpu.memory_space<vmem>>, %arg5: memref<16x32xbf16, #tpu.memory_space<vmem>>, %arg6: memref<16x32xf32, #tpu.memory_space<vmem>>) attributes {dimension_semantics = [#tpu.dimension_semantics<parallel>, #tpu.dimension_semantics<arbitrary>], iteration_bounds = array<i64: 2, 1>, scalar_prefetch = 0 : i64, scratch_operands = 1 : i64, tpu.core_type = #tpu.core_type<tc>, window_params = [{transform_indices = @transform_0, window_bounds = array<i64: 16, 576>}, {transform_indices = @transform_1, window_bounds = array<i64: 576, 32>}, {pipeline_mode = #tpu.pipeline_mode<synchronous>, transform_indices = @transform_2, window_bounds = array<i64: 1, 32>}, {transform_indices = @transform_3, window_bounds = array<i64: 16, 32>}]} {
    %c0_i32 = arith.constant 0 : i32
    %0 = arith.cmpi eq, %arg1, %c0_i32 : i32
    %1 = arith.extui %0 : i1 to i32
    %c0_i32_0 = arith.constant 0 : i32
    %2 = arith.cmpi ne, %1, %c0_i32_0 : i32
    scf.if %2 {
      %cst_10 = arith.constant 0.000000e+00 : f32
      %12 = vector.broadcast %cst_10 : f32 to vector<16x32xf32>
      %c0_11 = arith.constant 0 : index
      %c0_12 = arith.constant 0 : index
      %13 = vector.load %arg6[%c0_11, %c0_12] : memref<16x32xf32, #tpu.memory_space<vmem>>, vector<16x32xf32>
      tpu.vector_store %arg6[%c0_11, %c0_12], %12 {strides = array<i32>} : memref<16x32xf32, #tpu.memory_space<vmem>>, vector<16x32xf32>,
    } else {
    }
    %c0 = arith.constant 0 : index
    %c0_1 = arith.constant 0 : index
    %3 = vector.load %arg6[%c0, %c0_1] : memref<16x32xf32, #tpu.memory_space<vmem>>, vector<16x32xf32>
    %c0_2 = arith.constant 0 : index
    %c0_3 = arith.constant 0 : index
    %4 = vector.load %arg2[%c0_2, %c0_3] : memref<16x576xbf16, #tpu.memory_space<vmem>>, vector<16x576xbf16>
    %c0_4 = arith.constant 0 : index
    %c0_5 = arith.constant 0 : index
    %5 = vector.load %arg3[%c0_4, %c0_5] : memref<576x32xbf16, #tpu.memory_space<vmem>>, vector<576x32xbf16>
    %cst = arith.constant dense<0.000000e+00> : vector<16x32xf32>
    %6 = tpu.matmul %4, %5, %cst {dimension_numbers = #tpu.dot_dimension_numbers<[1], [0], [0], [1], [0, 0, 1, 1], [], []>} : vector<16x576xbf16>, vector<576x32xbf16>, vector<16x32xf32> -> vector<16x32xf32>
    %7 = arith.addf %3, %6 : vector<16x32xf32>
    %c0_6 = arith.constant 0 : index
    %c0_7 = arith.constant 0 : index
    %8 = vector.load %arg6[%c0_6, %c0_7] : memref<16x32xf32, #tpu.memory_space<vmem>>, vector<16x32xf32>
    tpu.vector_store %arg6[%c0_6, %c0_7], %7 {strides = array<i32>} : memref<16x32xf32, #tpu.memory_space<vmem>>, vector<16x32xf32>,
    %c0_i32_8 = arith.constant 0 : i32
    %9 = arith.cmpi eq, %arg1, %c0_i32_8 : i32
    %10 = arith.extui %9 : i1 to i32
    %c0_i32_9 = arith.constant 0 : i32
    %11 = arith.cmpi ne, %10, %c0_i32_9 : i32
    scf.if %11 {
      %c0_10 = arith.constant 0 : index
      %c0_11 = arith.constant 0 : index
      %12 = vector.load %arg6[%c0_10, %c0_11] : memref<16x32xf32, #tpu.memory_space<vmem>>, vector<16x32xf32>
      %c0_12 = arith.constant 0 : index
      %c0_13 = arith.constant 0 : index
      %13 = vector.load %arg4[%c0_12, %c0_13] : memref<1x32xf32, #tpu.memory_space<vmem>>, vector<1x32xf32>
      %14 = vector.broadcast %13 : vector<1x32xf32> to vector<16x32xf32>
      %15 = arith.addf %12, %14 : vector<16x32xf32>
      %cst_14 = arith.constant 0.000000e+00 : f32
      %16 = vector.broadcast %cst_14 : f32 to vector<16x32xf32>
      %17 = arith.maximumf %15, %16 : vector<16x32xf32>
      %18 = arith.truncf %17 : vector<16x32xf32> to vector<16x32xbf16>
      %c0_15 = arith.constant 0 : index
      %c0_16 = arith.constant 0 : index
      %19 = vector.load %arg5[%c0_15, %c0_16] : memref<16x32xbf16, #tpu.memory_space<vmem>>, vector<16x32xbf16>
      tpu.vector_store %arg5[%c0_15, %c0_16], %18 {strides = array<i32>} : memref<16x32xbf16, #tpu.memory_space<vmem>>, vector<16x32xbf16>,
    } else {
    }
    return
  }
  func.func @transform_0(%arg0: i32, %arg1: i32) -> (i32, i32) {
    %c0_i32 = arith.constant 0 : i32
    return %arg0, %arg1 : i32, i32
  }
  func.func @transform_1(%arg0: i32, %arg1: i32) -> (i32, i32) {
    %c0_i32 = arith.constant 0 : i32
    %c0_i32_0 = arith.constant 0 : i32
    return %arg1, %c0_i32 : i32, i32
  }
  func.func @transform_2(%arg0: i32, %arg1: i32) -> (i32, i32) {
    %c0_i32 = arith.constant 0 : i32
    %c0_i32_0 = arith.constant 0 : i32
    %c0_i32_1 = arith.constant 0 : i32
    return %c0_i32, %c0_i32_0 : i32, i32
  }
  func.func @transform_3(%arg0: i32, %arg1: i32) -> (i32, i32) {
    %c0_i32 = arith.constant 0 : i32
    %c0_i32_0 = arith.constant 0 : i32
    return %arg0, %c0_i32 : i32, i32
  }
}

module attributes {stable_mosaic.version = 11 : i64} {
  func.func @_mm_kernel(%arg0: i32, %arg1: i32, %arg2: memref<16x64xbf16, #tpu.memory_space<vmem>>, %arg3: memref<64x32xbf16, #tpu.memory_space<vmem>>, %arg4: memref<1x32xf32, #tpu.memory_space<vmem>>, %arg5: memref<16x32xbf16, #tpu.memory_space<vmem>>, %arg6: memref<16x32xf32, #tpu.memory_space<vmem>>) attributes {dimension_semantics = [#tpu.dimension_semantics<parallel>, #tpu.dimension_semantics<arbitrary>], iteration_bounds = array<i64: 2, 1>, scalar_prefetch = 0 : i64, scratch_operands = 1 : i64, tpu.core_type = #tpu.core_type<tc>, window_params = [{transform_indices = @transform_0, window_bounds = array<i64: 16, 64>}, {transform_indices = @transform_1, window_bounds = array<i64: 64, 32>}, {pipeline_mode = #tpu.pipeline_mode<synchronous>, transform_indices = @transform_2, window_bounds = array<i64: 1, 32>}, {transform_indices = @transform_3, window_bounds = array<i64: 16, 32>}]} {
    %c0_i32 = arith.constant 0 : i32
    %0 = arith.cmpi eq, %arg1, %c0_i32 : i32
    %1 = arith.extui %0 : i1 to i32
    %c0_i32_0 = arith.constant 0 : i32
    %2 = arith.cmpi ne, %1, %c0_i32_0 : i32
    scf.if %2 {
      %cst_10 = arith.constant 0.000000e+00 : f32
      %12 = vector.broadcast %cst_10 : f32 to vector<16x32xf32>
      %c0_11 = arith.constant 0 : index
      %c0_12 = arith.constant 0 : index
      %13 = vector.load %arg6[%c0_11, %c0_12] : memref<16x32xf32, #tpu.memory_space<vmem>>, vector<16x32xf32>
      tpu.vector_store %arg6[%c0_11, %c0_12], %12 {strides = array<i32>} : memref<16x32xf32, #tpu.memory_space<vmem>>, vector<16x32xf32>,
    } else {
    }
    %c0 = arith.constant 0 : index
    %c0_1 = arith.constant 0 : index
    %3 = vector.load %arg6[%c0, %c0_1] : memref<16x32xf32, #tpu.memory_space<vmem>>, vector<16x32xf32>
    %c0_2 = arith.constant 0 : index
    %c0_3 = arith.constant 0 : index
    %4 = vector.load %arg2[%c0_2, %c0_3] : memref<16x64xbf16, #tpu.memory_space<vmem>>, vector<16x64xbf16>
    %c0_4 = arith.constant 0 : index
    %c0_5 = arith.constant 0 : index
    %5 = vector.load %arg3[%c0_4, %c0_5] : memref<64x32xbf16, #tpu.memory_space<vmem>>, vector<64x32xbf16>
    %cst = arith.constant dense<0.000000e+00> : vector<16x32xf32>
    %6 = tpu.matmul %4, %5, %cst {dimension_numbers = #tpu.dot_dimension_numbers<[1], [0], [0], [1], [0, 0, 1, 1], [], []>} : vector<16x64xbf16>, vector<64x32xbf16>, vector<16x32xf32> -> vector<16x32xf32>
    %7 = arith.addf %3, %6 : vector<16x32xf32>
    %c0_6 = arith.constant 0 : index
    %c0_7 = arith.constant 0 : index
    %8 = vector.load %arg6[%c0_6, %c0_7] : memref<16x32xf32, #tpu.memory_space<vmem>>, vector<16x32xf32>
    tpu.vector_store %arg6[%c0_6, %c0_7], %7 {strides = array<i32>} : memref<16x32xf32, #tpu.memory_space<vmem>>, vector<16x32xf32>,
    %c0_i32_8 = arith.constant 0 : i32
    %9 = arith.cmpi eq, %arg1, %c0_i32_8 : i32
    %10 = arith.extui %9 : i1 to i32
    %c0_i32_9 = arith.constant 0 : i32
    %11 = arith.cmpi ne, %10, %c0_i32_9 : i32
    scf.if %11 {
      %c0_10 = arith.constant 0 : index
      %c0_11 = arith.constant 0 : index
      %12 = vector.load %arg6[%c0_10, %c0_11] : memref<16x32xf32, #tpu.memory_space<vmem>>, vector<16x32xf32>
      %c0_12 = arith.constant 0 : index
      %c0_13 = arith.constant 0 : index
      %13 = vector.load %arg4[%c0_12, %c0_13] : memref<1x32xf32, #tpu.memory_space<vmem>>, vector<1x32xf32>
      %14 = vector.broadcast %13 : vector<1x32xf32> to vector<16x32xf32>
      %15 = arith.addf %12, %14 : vector<16x32xf32>
      %cst_14 = arith.constant 0.000000e+00 : f32
      %16 = vector.broadcast %cst_14 : f32 to vector<16x32xf32>
      %17 = arith.maximumf %15, %16 : vector<16x32xf32>
      %18 = arith.truncf %17 : vector<16x32xf32> to vector<16x32xbf16>
      %c0_15 = arith.constant 0 : index
      %c0_16 = arith.constant 0 : index
      %19 = vector.load %arg5[%c0_15, %c0_16] : memref<16x32xbf16, #tpu.memory_space<vmem>>, vector<16x32xbf16>
      tpu.vector_store %arg5[%c0_15, %c0_16], %18 {strides = array<i32>} : memref<16x32xbf16, #tpu.memory_space<vmem>>, vector<16x32xbf16>,
    } else {
    }
    return
  }
  func.func @transform_0(%arg0: i32, %arg1: i32) -> (i32, i32) {
    %c0_i32 = arith.constant 0 : i32
    return %arg0, %arg1 : i32, i32
  }
  func.func @transform_1(%arg0: i32, %arg1: i32) -> (i32, i32) {
    %c0_i32 = arith.constant 0 : i32
    %c0_i32_0 = arith.constant 0 : i32
    return %arg1, %c0_i32 : i32, i32
  }
  func.func @transform_2(%arg0: i32, %arg1: i32) -> (i32, i32) {
    %c0_i32 = arith.constant 0 : i32
    %c0_i32_0 = arith.constant 0 : i32
    %c0_i32_1 = arith.constant 0 : i32
    return %c0_i32, %c0_i32_0 : i32, i32
  }
  func.func @transform_3(%arg0: i32, %arg1: i32) -> (i32, i32) {
    %c0_i32 = arith.constant 0 : i32
    %c0_i32_0 = arith.constant 0 : i32
    return %arg0, %c0_i32 : i32, i32
  }
}

module attributes {stable_mosaic.version = 11 : i64} {
  func.func @_bilinear_kernel(%arg0: i32, %arg1: memref<1x4x4xf32, #tpu.memory_space<vmem>>, %arg2: memref<16x4xf32, #tpu.memory_space<vmem>>, %arg3: memref<4x16xf32, #tpu.memory_space<vmem>>, %arg4: memref<1x16x16xf32, #tpu.memory_space<vmem>>) attributes {dimension_semantics = [#tpu.dimension_semantics<parallel>], iteration_bounds = array<i64: 12>, scalar_prefetch = 0 : i64, scratch_operands = 0 : i64, tpu.core_type = #tpu.core_type<tc>, window_params = [{transform_indices = @transform_0, window_bounds = array<i64: 1, 4, 4>}, {pipeline_mode = #tpu.pipeline_mode<synchronous>, transform_indices = @transform_1, window_bounds = array<i64: 16, 4>}, {pipeline_mode = #tpu.pipeline_mode<synchronous>, transform_indices = @transform_2, window_bounds = array<i64: 4, 16>}, {transform_indices = @transform_3, window_bounds = array<i64: 1, 16, 16>}]} {
    %c0 = arith.constant 0 : index
    %c0_0 = arith.constant 0 : index
    %0 = vector.load %arg2[%c0, %c0_0] : memref<16x4xf32, #tpu.memory_space<vmem>>, vector<16x4xf32>
    %c0_1 = arith.constant 0 : index
    %c0_2 = arith.constant 0 : index
    %c0_3 = arith.constant 0 : index
    %1 = vector.load %arg1[%c0_1, %c0_2, %c0_3] : memref<1x4x4xf32, #tpu.memory_space<vmem>>, vector<1x4x4xf32>
    %2 = vector.shape_cast %1 : vector<1x4x4xf32> to vector<4x4xf32>
    %cst = arith.constant dense<0.000000e+00> : vector<16x4xf32>
    %3 = tpu.matmul %0, %2, %cst {dimension_numbers = #tpu.dot_dimension_numbers<[1], [0], [0], [1], [0, 0, 1, 1], [], []>} : vector<16x4xf32>, vector<4x4xf32>, vector<16x4xf32> -> vector<16x4xf32>
    %c0_4 = arith.constant 0 : index
    %c0_5 = arith.constant 0 : index
    %4 = vector.load %arg3[%c0_4, %c0_5] : memref<4x16xf32, #tpu.memory_space<vmem>>, vector<4x16xf32>
    %cst_6 = arith.constant dense<0.000000e+00> : vector<16x16xf32>
    %5 = tpu.matmul %3, %4, %cst_6 {dimension_numbers = #tpu.dot_dimension_numbers<[1], [0], [0], [1], [0, 0, 1, 1], [], []>} : vector<16x4xf32>, vector<4x16xf32>, vector<16x16xf32> -> vector<16x16xf32>
    %c0_7 = arith.constant 0 : index
    %c0_8 = arith.constant 0 : index
    %c0_9 = arith.constant 0 : index
    %6 = vector.load %arg4[%c0_7, %c0_8, %c0_9] : memref<1x16x16xf32, #tpu.memory_space<vmem>>, vector<1x16x16xf32>
    %7 = vector.shape_cast %6 : vector<1x16x16xf32> to vector<16x16xf32>
    %8 = vector.shape_cast %5 : vector<16x16xf32> to vector<1x16x16xf32>
    tpu.vector_store %arg4[%c0_7, %c0_8, %c0_9], %8 {strides = array<i32>} : memref<1x16x16xf32, #tpu.memory_space<vmem>>, vector<1x16x16xf32>,
    return
  }
  func.func @transform_0(%arg0: i32) -> (i32, i32, i32) {
    %c0_i32 = arith.constant 0 : i32
    %c0_i32_0 = arith.constant 0 : i32
    %c0_i32_1 = arith.constant 0 : i32
    return %arg0, %c0_i32, %c0_i32_0 : i32, i32, i32
  }
  func.func @transform_1(%arg0: i32) -> (i32, i32) {
    %c0_i32 = arith.constant 0 : i32
    %c0_i32_0 = arith.constant 0 : i32
    %c0_i32_1 = arith.constant 0 : i32
    return %c0_i32, %c0_i32_0 : i32, i32
  }
  func.func @transform_2(%arg0: i32) -> (i32, i32) {
    %c0_i32 = arith.constant 0 : i32
    %c0_i32_0 = arith.constant 0 : i32
    %c0_i32_1 = arith.constant 0 : i32
    return %c0_i32, %c0_i32_0 : i32, i32
  }
  func.func @transform_3(%arg0: i32) -> (i32, i32, i32) {
    %c0_i32 = arith.constant 0 : i32
    %c0_i32_0 = arith.constant 0 : i32
    %c0_i32_1 = arith.constant 0 : i32
    return %arg0, %c0_i32, %c0_i32_0 : i32, i32, i32
  }
}

module attributes {stable_mosaic.version = 11 : i64} {
  func.func @_cat_cls_kernel(%arg0: i32, %arg1: i32, %arg2: memref<1x16x32xbf16, #tpu.memory_space<vmem>>, %arg3: memref<1x16x32xbf16, #tpu.memory_space<vmem>>, %arg4: memref<1x16x32xbf16, #tpu.memory_space<vmem>>, %arg5: memref<1x16x32xbf16, #tpu.memory_space<vmem>>, %arg6: memref<4x32x32xbf16, #tpu.memory_space<vmem>>, %arg7: memref<1x1x32xf32, #tpu.memory_space<vmem>>, %arg8: memref<32x6xbf16, #tpu.memory_space<vmem>>, %arg9: memref<1x6xf32, #tpu.memory_space<vmem>>, %arg10: memref<1x16x6xf32, #tpu.memory_space<vmem>>) attributes {dimension_semantics = [#tpu.dimension_semantics<parallel>, #tpu.dimension_semantics<parallel>], iteration_bounds = array<i64: 2, 1>, scalar_prefetch = 0 : i64, scratch_operands = 0 : i64, tpu.core_type = #tpu.core_type<tc>, window_params = [{transform_indices = @transform_0, window_bounds = array<i64: 1, 16, 32>}, {transform_indices = @transform_1, window_bounds = array<i64: 1, 16, 32>}, {transform_indices = @transform_2, window_bounds = array<i64: 1, 16, 32>}, {transform_indices = @transform_3, window_bounds = array<i64: 1, 16, 32>}, {pipeline_mode = #tpu.pipeline_mode<synchronous>, transform_indices = @transform_4, window_bounds = array<i64: 4, 32, 32>}, {transform_indices = @transform_5, window_bounds = array<i64: 1, 1, 32>}, {pipeline_mode = #tpu.pipeline_mode<synchronous>, transform_indices = @transform_6, window_bounds = array<i64: 32, 6>}, {pipeline_mode = #tpu.pipeline_mode<synchronous>, transform_indices = @transform_7, window_bounds = array<i64: 1, 6>}, {transform_indices = @transform_8, window_bounds = array<i64: 1, 16, 6>}]} {
    %c0 = arith.constant 0 : index
    %c0_0 = arith.constant 0 : index
    %c0_1 = arith.constant 0 : index
    %0 = vector.load %arg2[%c0, %c0_0, %c0_1] : memref<1x16x32xbf16, #tpu.memory_space<vmem>>, vector<1x16x32xbf16>
    %1 = vector.shape_cast %0 : vector<1x16x32xbf16> to vector<16x32xbf16>
    %c0_2 = arith.constant 0 : index
    %c0_3 = arith.constant 0 : index
    %c0_4 = arith.constant 0 : index
    %2 = vector.load %arg6[%c0_2, %c0_3, %c0_4] : memref<4x32x32xbf16, #tpu.memory_space<vmem>>, vector<1x32x32xbf16>
    %3 = vector.shape_cast %2 : vector<1x32x32xbf16> to vector<32x32xbf16>
    %cst = arith.constant dense<0.000000e+00> : vector<16x32xf32>
    %4 = tpu.matmul %1, %3, %cst {dimension_numbers = #tpu.dot_dimension_numbers<[1], [0], [0], [1], [0, 0, 1, 1], [], []>} : vector<16x32xbf16>, vector<32x32xbf16>, vector<16x32xf32> -> vector<16x32xf32>
    %c0_5 = arith.constant 0 : index
    %c0_6 = arith.constant 0 : index
    %c0_7 = arith.constant 0 : index
    %5 = vector.load %arg3[%c0_5, %c0_6, %c0_7] : memref<1x16x32xbf16, #tpu.memory_space<vmem>>, vector<1x16x32xbf16>
    %6 = vector.shape_cast %5 : vector<1x16x32xbf16> to vector<16x32xbf16>
    %c1 = arith.constant 1 : index
    %c0_8 = arith.constant 0 : index
    %c0_9 = arith.constant 0 : index
    %7 = vector.load %arg6[%c1, %c0_8, %c0_9] : memref<4x32x32xbf16, #tpu.memory_space<vmem>>, vector<1x32x32xbf16>
    %8 = vector.shape_cast %7 : vector<1x32x32xbf16> to vector<32x32xbf16>
    %cst_10 = arith.constant dense<0.000000e+00> : vector<16x32xf32>
    %9 = tpu.matmul %6, %8, %cst_10 {dimension_numbers = #tpu.dot_dimension_numbers<[1], [0], [0], [1], [0, 0, 1, 1], [], []>} : vector<16x32xbf16>, vector<32x32xbf16>, vector<16x32xf32> -> vector<16x32xf32>
    %10 = arith.addf %4, %9 : vector<16x32xf32>
    %c0_11 = arith.constant 0 : index
    %c0_12 = arith.constant 0 : index
    %c0_13 = arith.constant 0 : index
    %11 = vector.load %arg4[%c0_11, %c0_12, %c0_13] : memref<1x16x32xbf16, #tpu.memory_space<vmem>>, vector<1x16x32xbf16>
    %12 = vector.shape_cast %11 : vector<1x16x32xbf16> to vector<16x32xbf16>
    %c2 = arith.constant 2 : index
    %c0_14 = arith.constant 0 : index
    %c0_15 = arith.constant 0 : index
    %13 = vector.load %arg6[%c2, %c0_14, %c0_15] : memref<4x32x32xbf16, #tpu.memory_space<vmem>>, vector<1x32x32xbf16>
    %14 = vector.shape_cast %13 : vector<1x32x32xbf16> to vector<32x32xbf16>
    %cst_16 = arith.constant dense<0.000000e+00> : vector<16x32xf32>
    %15 = tpu.matmul %12, %14, %cst_16 {dimension_numbers = #tpu.dot_dimension_numbers<[1], [0], [0], [1], [0, 0, 1, 1], [], []>} : vector<16x32xbf16>, vector<32x32xbf16>, vector<16x32xf32> -> vector<16x32xf32>
    %16 = arith.addf %10, %15 : vector<16x32xf32>
    %c0_17 = arith.constant 0 : index
    %c0_18 = arith.constant 0 : index
    %c0_19 = arith.constant 0 : index
    %17 = vector.load %arg5[%c0_17, %c0_18, %c0_19] : memref<1x16x32xbf16, #tpu.memory_space<vmem>>, vector<1x16x32xbf16>
    %18 = vector.shape_cast %17 : vector<1x16x32xbf16> to vector<16x32xbf16>
    %c3 = arith.constant 3 : index
    %c0_20 = arith.constant 0 : index
    %c0_21 = arith.constant 0 : index
    %19 = vector.load %arg6[%c3, %c0_20, %c0_21] : memref<4x32x32xbf16, #tpu.memory_space<vmem>>, vector<1x32x32xbf16>
    %20 = vector.shape_cast %19 : vector<1x32x32xbf16> to vector<32x32xbf16>
    %cst_22 = arith.constant dense<0.000000e+00> : vector<16x32xf32>
    %21 = tpu.matmul %18, %20, %cst_22 {dimension_numbers = #tpu.dot_dimension_numbers<[1], [0], [0], [1], [0, 0, 1, 1], [], []>} : vector<16x32xbf16>, vector<32x32xbf16>, vector<16x32xf32> -> vector<16x32xf32>
    %22 = arith.addf %16, %21 : vector<16x32xf32>
    %c0_23 = arith.constant 0 : index
    %c0_24 = arith.constant 0 : index
    %c0_25 = arith.constant 0 : index
    %23 = vector.load %arg7[%c0_23, %c0_24, %c0_25] : memref<1x1x32xf32, #tpu.memory_space<vmem>>, vector<1x1x32xf32>
    %24 = vector.shape_cast %23 : vector<1x1x32xf32> to vector<1x32xf32>
    %25 = vector.broadcast %24 : vector<1x32xf32> to vector<16x32xf32>
    %26 = arith.addf %22, %25 : vector<16x32xf32>
    %cst_26 = arith.constant 0.000000e+00 : f32
    %27 = vector.broadcast %cst_26 : f32 to vector<16x32xf32>
    %28 = arith.maximumf %26, %27 : vector<16x32xf32>
    %29 = arith.truncf %28 : vector<16x32xf32> to vector<16x32xbf16>
    %c0_27 = arith.constant 0 : index
    %c0_28 = arith.constant 0 : index
    %30 = vector.load %arg8[%c0_27, %c0_28] : memref<32x6xbf16, #tpu.memory_space<vmem>>, vector<32x6xbf16>
    %cst_29 = arith.constant dense<0.000000e+00> : vector<16x6xf32>
    %31 = tpu.matmul %29, %30, %cst_29 {dimension_numbers = #tpu.dot_dimension_numbers<[1], [0], [0], [1], [0, 0, 1, 1], [], []>} : vector<16x32xbf16>, vector<32x6xbf16>, vector<16x6xf32> -> vector<16x6xf32>
    %c0_30 = arith.constant 0 : index
    %c0_31 = arith.constant 0 : index
    %32 = vector.load %arg9[%c0_30, %c0_31] : memref<1x6xf32, #tpu.memory_space<vmem>>, vector<1x6xf32>
    %33 = vector.broadcast %32 : vector<1x6xf32> to vector<16x6xf32>
    %34 = arith.addf %31, %33 : vector<16x6xf32>
    %c0_32 = arith.constant 0 : index
    %c0_33 = arith.constant 0 : index
    %c0_34 = arith.constant 0 : index
    %35 = vector.load %arg10[%c0_32, %c0_33, %c0_34] : memref<1x16x6xf32, #tpu.memory_space<vmem>>, vector<1x16x6xf32>
    %36 = vector.shape_cast %35 : vector<1x16x6xf32> to vector<16x6xf32>
    %37 = vector.shape_cast %34 : vector<16x6xf32> to vector<1x16x6xf32>
    tpu.vector_store %arg10[%c0_32, %c0_33, %c0_34], %37 {strides = array<i32>} : memref<1x16x6xf32, #tpu.memory_space<vmem>>, vector<1x16x6xf32>,
    return
  }
  func.func @transform_0(%arg0: i32, %arg1: i32) -> (i32, i32, i32) {
    %c0_i32 = arith.constant 0 : i32
    %c0_i32_0 = arith.constant 0 : i32
    return %arg0, %arg1, %c0_i32 : i32, i32, i32
  }
  func.func @transform_1(%arg0: i32, %arg1: i32) -> (i32, i32, i32) {
    %c0_i32 = arith.constant 0 : i32
    %c0_i32_0 = arith.constant 0 : i32
    return %arg0, %arg1, %c0_i32 : i32, i32, i32
  }
  func.func @transform_2(%arg0: i32, %arg1: i32) -> (i32, i32, i32) {
    %c0_i32 = arith.constant 0 : i32
    %c0_i32_0 = arith.constant 0 : i32
    return %arg0, %arg1, %c0_i32 : i32, i32, i32
  }
  func.func @transform_3(%arg0: i32, %arg1: i32) -> (i32, i32, i32) {
    %c0_i32 = arith.constant 0 : i32
    %c0_i32_0 = arith.constant 0 : i32
    return %arg0, %arg1, %c0_i32 : i32, i32, i32
  }
  func.func @transform_4(%arg0: i32, %arg1: i32) -> (i32, i32, i32) {
    %c0_i32 = arith.constant 0 : i32
    %c0_i32_0 = arith.constant 0 : i32
    %c0_i32_1 = arith.constant 0 : i32
    %c0_i32_2 = arith.constant 0 : i32
    return %c0_i32, %c0_i32_0, %c0_i32_1 : i32, i32, i32
  }
  func.func @transform_5(%arg0: i32, %arg1: i32) -> (i32, i32, i32) {
    %c0_i32 = arith.constant 0 : i32
    %c0_i32_0 = arith.constant 0 : i32
    %c0_i32_1 = arith.constant 0 : i32
    return %arg0, %c0_i32, %c0_i32_0 : i32, i32, i32
  }
  func.func @transform_6(%arg0: i32, %arg1: i32) -> (i32, i32) {
    %c0_i32 = arith.constant 0 : i32
    %c0_i32_0 = arith.constant 0 : i32
    %c0_i32_1 = arith.constant 0 : i32
    return %c0_i32, %c0_i32_0 : i32, i32
  }
  func.func @transform_7(%arg0: i32, %arg1: i32) -> (i32, i32) {
    %c0_i32 = arith.constant 0 : i32
    %c0_i32_0 = arith.constant 0 : i32
    %c0_i32_1 = arith.constant 0 : i32
    return %c0_i32, %c0_i32_0 : i32, i32
  }
  func.func @transform_8(%arg0: i32, %arg1: i32) -> (i32, i32, i32) {
    %c0_i32 = arith.constant 0 : i32
    %c0_i32_0 = arith.constant 0 : i32
    return %arg0, %arg1, %c0_i32 : i32, i32, i32
  }
}

</mosaic_0001>

<llo_original>
// kernel: deeplabv3_forward.8
$region0: #{deeplabv3_forward.8}
  #allocation0 [shape = 'u32[]', space=smem, size = 0x4, offset = 0x4, fixed_abs, tag = 'smem constant byte address 0x4 - core index']
  #allocation1 [shape = 'u32[144,128]{1,0:T(1,128)}', space=vmem, size = 0x12000, scoped, tag = 'internal scratch']
  #allocation2 [shape = 'f32[64,16]{1,0:T(8,128)}', space=vmem, size = 0x8000, scoped, tag = 'scratch operand']
  %s0 = inlined_call_operand.vmem [shape: bf16[128,32], index: 0, kind: input, shape index: {}]
  %s1 = inlined_call_operand.vmem [shape: bf16[32,16], index: 1, kind: input, shape index: {}]
  %s2 = inlined_call_operand.vmem [shape: f32[1,16], index: 2, kind: input, shape index: {}]
  %s3 = inlined_call_operand.vmem [shape: bf16[128,16], index: 3, kind: output, shape index: {}]
  %s4 = sld [smem:[#allocation0]]
  $region53: #{deeplabv3_forward.8} parent=0
    _
  %s6 = ssub.s32 1, %s4
  %s7 = scalar_select 0, %s6, %s4
  loop: start=0, step=1, limit=4
  $region2: #{deeplabv3_forward.8} parent=0 // loop_pre_header
    _
  $region3: #{deeplabv3_forward.8} parent=0 // loop_header
    %s9 = sphi 0, %s13
    %p10 = scmp.ge.s32.totalorder %s9, 4
    %s16 = sphi 0, %s28
    %s17 = sphi 0, %s24
    %s18 = sphi 0, %s16
    %s19 = sphi 0, %s17
    %s20 = sphi 0, %s18
    %s21 = sphi 0, %s19
    %s33 = sphi 0, %s35
    %s36 = sphi 0, %s33
    %s37 = sphi 0, %s36
    %s53 = sphi 0, %s37
    %s59 = sphi 0, %s61
    %s62 = sphi 0, %s59
    %s63 = sphi 0, %s62
    %s79 = sphi 0, %s63
    %s83 = sphi 0, %s83
    %s85 = sphi 0, %s83
    %s86 = sphi 0, %s85
    %s100 = sphi 0, %s86
    %s106 = sphi 0, %s108
    %s109 = sphi 0, %s106
    %s110 = sphi 0, %s109
    %s126 = sphi 0, %s110
  $region4: #{deeplabv3_forward.8} parent=0 // loop_header_branch
    %12 = sbr.rel (%p10) target = $region8
  $region5: #{deeplabv3_forward.8} parent=0 // loop_body
    %s14 = ssub.s32 %s9, 1
    %s15 = ssub.s32 %s9, 2
    %s22 = sadd.s32 1, %s17
    %p23 = scmp.ge.s32.totalorder %s22, 1
    %s24 = scalar_select %p23, 0, %s22
    %s25 = sadd.s32 1, %s16
    %s26 = scalar_select %p23, %s25, %s16
    %p27 = scmp.ge.s32.totalorder %s26, 2
    %s28 = scalar_select %p27, 0, %s26
    %s29 = ssub.s32 %s16, %s28
    %s30 = ssub.s32 %s17, %s24
    %s31 = sor.u32 %s29, %s30
    %p32 = scmp.eq.s32.totalorder %s31, 0
    %s34 = sadd.s32 %s33, 1
    %s35 = scalar_select %p32, %s33, %s34
    %p38 = pneg %p32
    %p39 = scmp.eq.s32.totalorder %s9, 1
    %p40 = por %p38, %p39
    %p41 = scmp.ne.s32.totalorder %s33, %s36
    %p42 = scmp.eq.s32.totalorder %s9, 0
    %p43 = por %p41, %p42
    %p44 = scmp.ne.s32.totalorder %s33, %s36
    %p45 = scmp.eq.s32.totalorder %s14, 1
    %p46 = por %p44, %p45
    %p47 = scmp.ne.s32.totalorder %s36, %s37
    %p48 = scmp.eq.s32.totalorder %s14, 0
    %p49 = por %p47, %p48
    %p50 = scmp.ne.s32.totalorder %s36, %s37
    %p51 = scmp.eq.s32.totalorder %s15, 1
    %p52 = por %p50, %p51
    %p54 = scmp.ne.s32.totalorder %s37, %s53
    %p55 = scmp.eq.s32.totalorder %s15, 0
    %p56 = por %p54, %p55
    %s57 = ssub.s32 %s17, %s24
    %p58 = scmp.eq.s32.totalorder %s57, 0
    %s60 = sadd.s32 %s59, 1
    %s61 = scalar_select %p58, %s59, %s60
    %p64 = pneg %p58
    %p65 = scmp.eq.s32.totalorder %s9, 1
    %p66 = por %p64, %p65
    %p67 = scmp.ne.s32.totalorder %s59, %s62
    %p68 = scmp.eq.s32.totalorder %s9, 0
    %p69 = por %p67, %p68
    %p70 = scmp.ne.s32.totalorder %s59, %s62
    %p71 = scmp.eq.s32.totalorder %s14, 1
    %p72 = por %p70, %p71
    %p73 = scmp.ne.s32.totalorder %s62, %s63
    %p74 = scmp.eq.s32.totalorder %s14, 0
    %p75 = por %p73, %p74
    %p76 = scmp.ne.s32.totalorder %s62, %s63
    %p77 = scmp.eq.s32.totalorder %s15, 1
    %p78 = por %p76, %p77
    %p80 = scmp.ne.s32.totalorder %s63, %s79
    %p81 = scmp.eq.s32.totalorder %s15, 0
    %p82 = por %p80, %p81
    %s84 = sadd.s32 %s83, 1
    %p87 = scmp.eq.s32.totalorder %s9, 1
    %p88 = scmp.ne.s32.totalorder %s83, %s85
    %p89 = scmp.eq.s32.totalorder %s9, 0
    %p90 = por %p88, %p89
    %p91 = scmp.ne.s32.totalorder %s83, %s85
    %p92 = scmp.eq.s32.totalorder %s14, 1
    %p93 = por %p91, %p92
    %p94 = scmp.ne.s32.totalorder %s85, %s86
    %p95 = scmp.eq.s32.totalorder %s14, 0
    %p96 = por %p94, %p95
    %p97 = scmp.ne.s32.totalorder %s85, %s86
    %p98 = scmp.eq.s32.totalorder %s15, 1
    %p99 = por %p97, %p98
    %p101 = scmp.ne.s32.totalorder %s86, %s100
    %p102 = scmp.eq.s32.totalorder %s15, 0
    %p103 = por %p101, %p102
    %s104 = ssub.s32 %s16, %s28
    %p105 = scmp.eq.s32.totalorder %s104, 0
    %s107 = sadd.s32 %s106, 1
    %s108 = scalar_select %p105, %s106, %s107
    %p111 = pneg %p105
    %p112 = scmp.eq.s32.totalorder %s9, 1
    %p113 = por %p111, %p112
    %p114 = scmp.ne.s32.totalorder %s106, %s109
    %p115 = scmp.eq.s32.totalorder %s9, 0
    %p116 = por %p114, %p115
    %p117 = scmp.ne.s32.totalorder %s106, %s109
    %p118 = scmp.eq.s32.totalorder %s14, 1
    %p119 = por %p117, %p118
    %p120 = scmp.ne.s32.totalorder %s109, %s110
    %p121 = scmp.eq.s32.totalorder %s14, 0
    %p122 = por %p120, %p121
    %p123 = scmp.ne.s32.totalorder %s109, %s110
    %p124 = scmp.eq.s32.totalorder %s15, 1
    %p125 = por %p123, %p124
    %p127 = scmp.ne.s32.totalorder %s110, %s126
    %p128 = scmp.eq.s32.totalorder %s15, 0
    %p129 = por %p127, %p128
    %p130 = scmp.le.s32.totalorder 1, %s9
    %p131 = scmp.lt.s32.totalorder %s9, 3
    %p132 = pnand %p130, %p131
    %p133 = pneg %p132
    // Predicated region
    $region9: #{deeplabv3_forward.8} parent=5 // pred_check
      _
    $region10: #{deeplabv3_forward.8} parent=5 // pred_check_branch
      %135 = sbr.rel (%p132) target = $region12
    $region11: #{deeplabv3_forward.8} parent=5 // pred_region
      %s136 = ssub.s32 %s9, 1
      // Predicated region
      $region13: #{deeplabv3_forward.8} parent=11 // pred_check
        %p137 = pneg %p75
      $region14: #{deeplabv3_forward.8} parent=11 // pred_check_branch
        %139 = sbr.rel (%p137) target = $region16
      $region15: #{deeplabv3_forward.8} parent=11 // pred_region
        %s140 = smul.u32 4, %s19
        %p141 = scmp.lt.s32.totalorder %s140, 3
        %s142 = scalar_select %p141, %s140, 3
        %s143 = smul.addr %s142, 4
        %s144 = scalar_lea.vmem %s1, %s143
        %s145 = smul.u32 4, %s19
      $region16: #{deeplabv3_forward.8} parent=11 // pred_fallthru
        _
      // Predicated region
      $region17: #{deeplabv3_forward.8} parent=11 // pred_check
        %p146 = pneg %p96
      $region18: #{deeplabv3_forward.8} parent=11 // pred_check_branch
        %148 = sbr.rel (%p146) target = $region20
      $region19: #{deeplabv3_forward.8} parent=11 // pred_region
        _
      $region20: #{deeplabv3_forward.8} parent=11 // pred_fallthru
        _
    $region12: #{deeplabv3_forward.8} parent=5 // pred_fallthru
      _
    %p149 = scmp.lt.s32.totalorder %s9, 2
    // Predicated region
    $region21: #{deeplabv3_forward.8} parent=5 // pred_check
      %p150 = pneg %p149
    $region22: #{deeplabv3_forward.8} parent=5 // pred_check_branch
      %152 = sbr.rel (%p150) target = $region24
    $region23: #{deeplabv3_forward.8} parent=5 // pred_region
      // Predicated region
      $region25: #{deeplabv3_forward.8} parent=23 // pred_check
        %p153 = pneg %p43
      $region26: #{deeplabv3_forward.8} parent=23 // pred_check_branch
        %155 = sbr.rel (%p153) target = $region28
      $region27: #{deeplabv3_forward.8} parent=23 // pred_region
        %s156 = smul.u32 8, %s16
        %p157 = scmp.lt.s32.totalorder %s156, 15
        %s158 = scalar_select %p157, %s156, 15
        %p159 = scmp.lt.s32.totalorder %s17, 0
        %s160 = scalar_select %p159, %s17, 0
        %s161 = sadd.s32 %s160, %s158
        %s162 = smul.addr %s161, 4
        %s163 = scalar_lea.vmem %s0, %s162
        %s164 = smul.u32 8, %s16
      $region28: #{deeplabv3_forward.8} parent=23 // pred_fallthru
        _
    $region24: #{deeplabv3_forward.8} parent=5 // pred_fallthru
      _
    %p165 = scmp.le.s32.totalorder 1, %s9
    %p166 = scmp.lt.s32.totalorder %s9, 3
    %p167 = pnand %p165, %p166
    %p168 = pneg %p167
    // Predicated region
    $region29: #{deeplabv3_forward.8} parent=5 // pred_check
      _
    $region30: #{deeplabv3_forward.8} parent=5 // pred_check_branch
      %170 = sbr.rel (%p167) target = $region32
    $region31: #{deeplabv3_forward.8} parent=5 // pred_region
      %s171 = ssub.s32 %s9, 1
      %s172 = smul.u32 8, %s18
      %p173 = scmp.lt.s32.totalorder %s172, 15
      %s174 = scalar_select %p173, %s172, 15
      %p175 = scmp.lt.s32.totalorder %s19, 0
      %s176 = scalar_select %p175, %s19, 0
      %s177 = sadd.s32 %s176, %s174
      %s178 = smul.addr %s177, 4
      %s179 = scalar_lea.vmem %s0, %s178
      %p180 = pneg %p49
      %p181 = pneg %p46
      %s182 = smul.u32 4, %s19
      %p183 = scmp.lt.s32.totalorder %s182, 3
      %s184 = scalar_select %p183, %s182, 3
      %s185 = smul.addr %s184, 4
      %s186 = scalar_lea.vmem %s1, %s185
      %p187 = pneg %p75
      %p188 = pneg %p72
      %p189 = pneg %p96
      %p190 = pneg %p93
      %p191 = pneg %p122
      %p192 = pneg %p119
      %s193 = smul.u32 8, %s18
      %p194 = scmp.lt.s32.totalorder %s193, 15
      %s195 = scalar_select %p194, %s193, 15
      %s196 = smul.addr %s195, 4
      %s197 = scalar_lea.vmem %s3, %s196
      %s198 = smul.u32 8, %s18
      %p199 = scmp.lt.s32.totalorder %s198, 15
      %s200 = scalar_select %p199, %s198, 15
      %p201 = scmp.lt.s32.totalorder %s19, 0
      %s202 = scalar_select %p201, %s19, 0
      %s203 = sadd.s32 %s202, %s200
      %s204 = smul.addr %s203, 4
      %s205 = scalar_lea.vmem %s0, %s204
      %s206 = smul.u32 8, %s18
      %s207 = smul.u32 4, %s19
      %p208 = scmp.lt.s32.totalorder %s207, 3
      %s209 = scalar_select %p208, %s207, 3
      %s210 = smul.addr %s209, 4
      %s211 = scalar_lea.vmem %s1, %s210
      %s212 = smul.u32 4, %s19
      %s213 = smul.u32 8, %s18
      %p214 = scmp.lt.s32.totalorder %s213, 15
      %s215 = scalar_select %p214, %s213, 15
      %s216 = smul.addr %s215, 4
      %s217 = scalar_lea.vmem %s3, %s216
      %s218 = smul.u32 8, %s18
      %p220 = scmp.eq.s32.totalorder %s19, 0
      // Predicated region
      $region33: #{deeplabv3_forward.8} parent=31 // pred_check
        %p221 = pneg %p220
      $region34: #{deeplabv3_forward.8} parent=31 // pred_check_branch
        %223 = sbr.rel (%p221) target = $region36
      $region35: #{deeplabv3_forward.8} parent=31 // pred_region
        %vm224 = vcmask 130048
        %225 = vst.msk [vmem:[#allocation2] sm:$0xff] %vm224, 0.0
        %226 = vst.msk [vmem:[#allocation2 + $0x8] sm:$0xff] %vm224, 0.0
        %227 = vst.msk [vmem:[#allocation2 + $0x10] sm:$0xff] %vm224, 0.0
        %228 = vst.msk [vmem:[#allocation2 + $0x18] sm:$0xff] %vm224, 0.0
        %229 = vst.msk [vmem:[#allocation2 + $0x20] sm:$0xff] %vm224, 0.0
        %230 = vst.msk [vmem:[#allocation2 + $0x28] sm:$0xff] %vm224, 0.0
        %231 = vst.msk [vmem:[#allocation2 + $0x30] sm:$0xff] %vm224, 0.0
        %232 = vst.msk [vmem:[#allocation2 + $0x38] sm:$0xff] %vm224, 0.0
      $region36: #{deeplabv3_forward.8} parent=31 // pred_fallthru
        _
      %v233 = vld [vmem:[#allocation2] sm:$0xff]
      %v234 = vld [vmem:[#allocation2 + $0x8] sm:$0xff]
      %v235 = vld [vmem:[#allocation2 + $0x10] sm:$0xff]
      %v236 = vld [vmem:[#allocation2 + $0x18] sm:$0xff]
      %v237 = vld [vmem:[#allocation2 + $0x20] sm:$0xff]
      %v238 = vld [vmem:[#allocation2 + $0x28] sm:$0xff]
      %v239 = vld [vmem:[#allocation2 + $0x30] sm:$0xff]
      %v240 = vld [vmem:[#allocation2 + $0x38] sm:$0xff]
      %v241 = vld [vmem:[%s205] sm:$0xf]
      %v242 = vld [vmem:[%s205 + $0x4] sm:$0xf]
      %v243 = vld [vmem:[%s205 + $0x8] sm:$0xf]
      %v244 = vld [vmem:[%s205 + $0xc] sm:$0xf]
      %v245 = vld [vmem:[%s205 + $0x10] sm:$0xf]
      %v246 = vld [vmem:[%s205 + $0x14] sm:$0xf]
      %v247 = vld [vmem:[%s205 + $0x18] sm:$0xf]
      %v248 = vld [vmem:[%s205 + $0x1c] sm:$0xf]
      %v249 = vld [vmem:[%s211] sm:$0xf]
      %v250 = vld [vmem:[%s211 + $0x4] sm:$0xf]
      %v251 = vld [vmem:[%s211 + $0x8] sm:$0xf]
      %v252 = vld [vmem:[%s211 + $0xc] sm:$0xf]
      %v261 = vunpack.c.l.b16 %v241
      %v262 = vunpack.c.l.b16 %v242
      %v263 = vunpack.c.l.b16 %v243
      %v264 = vunpack.c.l.b16 %v244
      %v265 = vunpack.c.l.b16 %v245
      %v266 = vunpack.c.l.b16 %v246
      %v267 = vunpack.c.l.b16 %v247
      %v268 = vunpack.c.l.b16 %v248
      %v269 = vpack.c.b16 %v262, %v261
      %v270 = vpack.c.b16 %v264, %v263
      %v271 = vpack.c.b16 %v266, %v265
      %v272 = vpack.c.b16 %v268, %v267
      %v277 = vunpack.c.l.b16 %v249
      %v278 = vunpack.c.l.b16 %v250
      %v279 = vunpack.c.l.b16 %v251
      %v280 = vunpack.c.l.b16 %v252
      %v281 = vpack.c.b16 %v278, %v277
      %v282 = vpack.c.b16 %v280, %v279
      %vm285 = vcmask 261120
      %v287 = vsel %vm285, %v269, 0
      %v290 = vsel %vm285, %v270, 0
      %v293 = vsel %vm285, %v271, 0
      %v296 = vsel %vm285, %v272, 0
      %298 = vmatprep.subr.bf16.mxu0 0
      %299 = vmatpush1.bf16.msra.mxu0 %v281
      %300 = vmatprep.subr.bf16.mxu0 0
      %301 = vmatpush1.bf16.msra.mxu0 %v282
      %302 = vmatprep.subr.bf16.mxu0 0
      %303 = vmatpush1.bf16.msra.mxu0 0
      %304 = vmatprep.subr.bf16.mxu0 0
      %305 = vmatpush1.bf16.msra.mxu0 0
      %306 = vmatprep.subr.bf16.mxu0 0
      %307 = vmatpush1.bf16.msra.mxu0 0
      %308 = vmatprep.subr.bf16.mxu0 0
      %309 = vmatpush1.bf16.msra.mxu0 0
      %310 = vmatprep.subr.bf16.mxu0 0
      %311 = vmatpush1.bf16.msra.mxu0 0
      %312 = vmatprep.subr.bf16.mxu0 0
      %313 = vmatpush1.bf16.msra.mxu0 0
      %314 = vmatprep.subr.bf16.mxu0 0
      %315 = vmatpush1.bf16.msra.mxu0 0
      %316 = vmatprep.subr.bf16.mxu0 0
      %317 = vmatpush1.bf16.msra.mxu0 0
      %318 = vmatprep.subr.bf16.mxu0 0
      %319 = vmatpush1.bf16.msra.mxu0 0
      %320 = vmatprep.subr.bf16.mxu0 0
      %321 = vmatpush1.bf16.msra.mxu0 0
      %322 = vmatprep.subr.bf16.mxu0 0
      %323 = vmatpush1.bf16.msra.mxu0 0
      %324 = vmatprep.subr.bf16.mxu0 0
      %325 = vmatpush1.bf16.msra.mxu0 0
      %326 = vmatprep.subr.bf16.mxu0 0
      %327 = vmatpush1.bf16.msra.mxu0 0
      %328 = vmatprep.subr.bf16.mxu0 0
      %329 = vmatpush1.bf16.msra.mxu0 0
      %330 = vmatprep.mubr.bf16.mxu0 0
      %331 = vmatmul.mubr.bf16.gmra.mrb[0].mxu0 %v287
      %v332 = vpop.f32.mrb[0].mxu0
      %v333 = vadd.f32 0.0, %v332
      %v334 = vpop.f32.mrb[0].mxu0
      %v335 = vpop.f32.mrb[0].mxu0
      %v336 = vadd.f32 0.0, %v335
      %v337 = vpop.f32.mrb[0].mxu0
      %338 = vmatprep.mubr.bf16.mxu0 0
      %339 = vmatmul.mubr.bf16.gmra.mrb[0].mxu0 %v290
      %v340 = vpop.f32.mrb[0].mxu0
      %v341 = vadd.f32 0.0, %v340
      %v342 = vpop.f32.mrb[0].mxu0
      %v343 = vpop.f32.mrb[0].mxu0
      %v344 = vadd.f32 0.0, %v343
      %v345 = vpop.f32.mrb[0].mxu0
      %346 = vmatprep.mubr.bf16.mxu0 0
      %347 = vmatmul.mubr.bf16.gmra.mrb[0].mxu0 %v293
      %v348 = vpop.f32.mrb[0].mxu0
      %v349 = vadd.f32 0.0, %v348
      %v350 = vpop.f32.mrb[0].mxu0
      %v351 = vpop.f32.mrb[0].mxu0
      %v352 = vadd.f32 0.0, %v351
      %v353 = vpop.f32.mrb[0].mxu0
      %354 = vmatprep.mubr.bf16.mxu0 0
      %355 = vmatmul.mubr.bf16.gmra.mrb[0].mxu0 %v296
      %v356 = vpop.f32.mrb[0].mxu0
      %v357 = vadd.f32 0.0, %v356
      %v358 = vpop.f32.mrb[0].mxu0
      %v359 = vpop.f32.mrb[0].mxu0
      %v360 = vadd.f32 0.0, %v359
      %v361 = vpop.f32.mrb[0].mxu0
      %362 = vdwg.mxu0
      %v363 = vadd.f32 %v233, %v333
      %v364 = vadd.f32 %v234, %v336
      %v365 = vadd.f32 %v235, %v341
      %v366 = vadd.f32 %v236, %v344
      %v367 = vadd.f32 %v237, %v349
      %v368 = vadd.f32 %v238, %v352
      %v369 = vadd.f32 %v239, %v357
      %v370 = vadd.f32 %v240, %v360
      %vm371 = vcmask 130048
      %372 = vst.msk [vmem:[#allocation2] sm:$0xff] %vm371, %v363
      %373 = vst.msk [vmem:[#allocation2 + $0x8] sm:$0xff] %vm371, %v364
      %374 = vst.msk [vmem:[#allocation2 + $0x10] sm:$0xff] %vm371, %v365
      %375 = vst.msk [vmem:[#allocation2 + $0x18] sm:$0xff] %vm371, %v366
      %376 = vst.msk [vmem:[#allocation2 + $0x20] sm:$0xff] %vm371, %v367
      %377 = vst.msk [vmem:[#allocation2 + $0x28] sm:$0xff] %vm371, %v368
      %378 = vst.msk [vmem:[#allocation2 + $0x30] sm:$0xff] %vm371, %v369
      %379 = vst.msk [vmem:[#allocation2 + $0x38] sm:$0xff] %vm371, %v370
      // Predicated region
      $region37: #{deeplabv3_forward.8} parent=31 // pred_check
        %p380 = pneg %p220
      $region38: #{deeplabv3_forward.8} parent=31 // pred_check_branch
        %382 = sbr.rel (%p380) target = $region40
      $region39: #{deeplabv3_forward.8} parent=31 // pred_region
        %v383 = vld [vmem:[#allocation2] sm:$0xff]
        %v384 = vld [vmem:[#allocation2 + $0x8] sm:$0xff]
        %v385 = vld [vmem:[#allocation2 + $0x10] sm:$0xff]
        %v386 = vld [vmem:[#allocation2 + $0x18] sm:$0xff]
        %v387 = vld [vmem:[#allocation2 + $0x20] sm:$0xff]
        %v388 = vld [vmem:[#allocation2 + $0x28] sm:$0xff]
        %v389 = vld [vmem:[#allocation2 + $0x30] sm:$0xff]
        %v390 = vld [vmem:[#allocation2 + $0x38] sm:$0xff]
        %v391 = vld [vmem:[%s2] sm:$0x1]
        %v393 = vlaneseq
        %v394 = vshrl.u32 %v393, 7
        %v395 = vsub.s32 0, %v394
        %v396 = vrot.slane %v391, %v395
        %v398 = vadd.f32 %v383, %v396
        %v399 = vadd.f32 %v384, %v396
        %v400 = vadd.f32 %v385, %v396
        %v401 = vadd.f32 %v386, %v396
        %v402 = vadd.f32 %v387, %v396
        %v403 = vadd.f32 %v388, %v396
        %v404 = vadd.f32 %v389, %v396
        %v405 = vadd.f32 %v390, %v396
        %v406 = vmax.f32 %v398, 0.0
        %v407 = vmax.f32 %v399, 0.0
        %v408 = vmax.f32 %v400, 0.0
        %v409 = vmax.f32 %v401, 0.0
        %v410 = vmax.f32 %v402, 0.0
        %v411 = vmax.f32 %v403, 0.0
        %v412 = vmax.f32 %v404, 0.0
        %v413 = vmax.f32 %v405, 0.0
        %v414 = vpack.c.bf16 %v407, %v406
        %v415 = vpack.c.bf16 %v409, %v408
        %v416 = vpack.c.bf16 %v411, %v410
        %v417 = vpack.c.bf16 %v413, %v412
        %v422 = vunpack.c.l.b16 %v414
        %v423 = vunpack.c.h.b16 %v414
        %v424 = vunpack.c.l.b16 %v415
        %v425 = vunpack.c.h.b16 %v415
        %v426 = vunpack.c.l.b16 %v416
        %v427 = vunpack.c.h.b16 %v416
        %v428 = vunpack.c.l.b16 %v417
        %v429 = vunpack.c.h.b16 %v417
        %v430 = vpack.c.b16 %v422, %v422
        %v431 = vpack.c.b16 %v423, %v423
        %v432 = vpack.c.b16 %v424, %v424
        %v433 = vpack.c.b16 %v425, %v425
        %v434 = vpack.c.b16 %v426, %v426
        %v435 = vpack.c.b16 %v427, %v427
        %v436 = vpack.c.b16 %v428, %v428
        %v437 = vpack.c.b16 %v429, %v429
        %vm446 = vcmask 125952
        %447 = vst.msk [vmem:[%s217] sm:$0xf] %vm446, %v430
        %448 = vst.msk [vmem:[%s217 + $0x4] sm:$0xf] %vm446, %v431
        %449 = vst.msk [vmem:[%s217 + $0x8] sm:$0xf] %vm446, %v432
        %450 = vst.msk [vmem:[%s217 + $0xc] sm:$0xf] %vm446, %v433
        %451 = vst.msk [vmem:[%s217 + $0x10] sm:$0xf] %vm446, %v434
        %452 = vst.msk [vmem:[%s217 + $0x14] sm:$0xf] %vm446, %v435
        %453 = vst.msk [vmem:[%s217 + $0x18] sm:$0xf] %vm446, %v436
        %454 = vst.msk [vmem:[%s217 + $0x1c] sm:$0xf] %vm446, %v437
      $region40: #{deeplabv3_forward.8} parent=31 // pred_fallthru
        _
      %s455 = smul.u32 8, %s18
      %p456 = scmp.lt.s32.totalorder %s455, 15
      %s457 = scalar_select %p456, %s455, 15
      %s458 = smul.addr %s457, 4
      %s459 = scalar_lea.vmem %s3, %s458
      // Predicated region
      $region41: #{deeplabv3_forward.8} parent=31 // pred_check
        %p460 = pneg %p119
      $region42: #{deeplabv3_forward.8} parent=31 // pred_check_branch
        %462 = sbr.rel (%p460) target = $region44
      $region43: #{deeplabv3_forward.8} parent=31 // pred_region
        %s463 = smul.u32 8, %s18
      $region44: #{deeplabv3_forward.8} parent=31 // pred_fallthru
        _
    $region32: #{deeplabv3_forward.8} parent=5 // pred_fallthru
      _
    %p464 = scmp.le.s32.totalorder 2, %s9
    // Predicated region
    $region45: #{deeplabv3_forward.8} parent=5 // pred_check
      %p465 = pneg %p464
    $region46: #{deeplabv3_forward.8} parent=5 // pred_check_branch
      %467 = sbr.rel (%p465) target = $region48
    $region47: #{deeplabv3_forward.8} parent=5 // pred_region
      %s468 = ssub.s32 %s9, 2
      // Predicated region
      $region49: #{deeplabv3_forward.8} parent=47 // pred_check
        %p469 = pneg %p125
      $region50: #{deeplabv3_forward.8} parent=47 // pred_check_branch
        %471 = sbr.rel (%p469) target = $region52
      $region51: #{deeplabv3_forward.8} parent=47 // pred_region
        %s472 = smul.u32 8, %s20
        %p473 = scmp.lt.s32.totalorder %s472, 15
        %s474 = scalar_select %p473, %s472, 15
        %s475 = smul.addr %s474, 4
        %s476 = scalar_lea.vmem %s3, %s475
      $region52: #{deeplabv3_forward.8} parent=47 // pred_fallthru
        _
    $region48: #{deeplabv3_forward.8} parent=5 // pred_fallthru
      _
  $region6: #{deeplabv3_forward.8} parent=0 // loop_footer
    %s13 = sadd.s32 1, %s9
  $region7: #{deeplabv3_forward.8} parent=0 // loop_footer_branch
    %8 = sbr.rel target = $region3
  $region8: #{deeplabv3_forward.8} parent=0 // loop_exit
    _

// kernel: deeplabv3_forward.9
$region0: #{deeplabv3_forward.9}
  #allocation0 [shape = 'u32[]', space=smem, size = 0x4, offset = 0x4, fixed_abs, tag = 'smem constant byte address 0x4 - core index']
  #allocation1 [shape = 'u32[144,128]{1,0:T(1,128)}', space=vmem, size = 0x12000, scoped, tag = 'internal scratch']
  #allocation2 [shape = 'f32[16,64]{1,0:T(8,128)}', space=vmem, size = 0x2000, scoped, tag = 'scratch operand']
  %s0 = inlined_call_operand.vmem [shape: bf16[32,144], index: 0, kind: input, shape index: {}]
  %s1 = inlined_call_operand.vmem [shape: bf16[144,64], index: 1, kind: input, shape index: {}]
  %s2 = inlined_call_operand.vmem [shape: f32[1,64], index: 2, kind: input, shape index: {}]
  %s3 = inlined_call_operand.vmem [shape: bf16[32,64], index: 3, kind: output, shape index: {}]
  %s4 = sld [smem:[#allocation0]]
  $region53: #{deeplabv3_forward.9} parent=0
    _
  %s6 = ssub.s32 1, %s4
  %s7 = scalar_select 0, %s6, %s4
  loop: start=0, step=1, limit=4
  $region2: #{deeplabv3_forward.9} parent=0 // loop_pre_header
    _
  $region3: #{deeplabv3_forward.9} parent=0 // loop_header
    %s9 = sphi 0, %s13
    %p10 = scmp.ge.s32.totalorder %s9, 4
    %s16 = sphi 0, %s28
    %s17 = sphi 0, %s24
    %s18 = sphi 0, %s16
    %s19 = sphi 0, %s17
    %s20 = sphi 0, %s18
    %s21 = sphi 0, %s19
    %s33 = sphi 0, %s35
    %s36 = sphi 0, %s33
    %s37 = sphi 0, %s36
    %s53 = sphi 0, %s37
    %s59 = sphi 0, %s61
    %s62 = sphi 0, %s59
    %s63 = sphi 0, %s62
    %s79 = sphi 0, %s63
    %s83 = sphi 0, %s83
    %s85 = sphi 0, %s83
    %s86 = sphi 0, %s85
    %s100 = sphi 0, %s86
    %s106 = sphi 0, %s108
    %s109 = sphi 0, %s106
    %s110 = sphi 0, %s109
    %s126 = sphi 0, %s110
  $region4: #{deeplabv3_forward.9} parent=0 // loop_header_branch
    %12 = sbr.rel (%p10) target = $region8
  $region5: #{deeplabv3_forward.9} parent=0 // loop_body
    %s14 = ssub.s32 %s9, 1
    %s15 = ssub.s32 %s9, 2
    %s22 = sadd.s32 1, %s17
    %p23 = scmp.ge.s32.totalorder %s22, 1
    %s24 = scalar_select %p23, 0, %s22
    %s25 = sadd.s32 1, %s16
    %s26 = scalar_select %p23, %s25, %s16
    %p27 = scmp.ge.s32.totalorder %s26, 2
    %s28 = scalar_select %p27, 0, %s26
    %s29 = ssub.s32 %s16, %s28
    %s30 = ssub.s32 %s17, %s24
    %s31 = sor.u32 %s29, %s30
    %p32 = scmp.eq.s32.totalorder %s31, 0
    %s34 = sadd.s32 %s33, 1
    %s35 = scalar_select %p32, %s33, %s34
    %p38 = pneg %p32
    %p39 = scmp.eq.s32.totalorder %s9, 1
    %p40 = por %p38, %p39
    %p41 = scmp.ne.s32.totalorder %s33, %s36
    %p42 = scmp.eq.s32.totalorder %s9, 0
    %p43 = por %p41, %p42
    %p44 = scmp.ne.s32.totalorder %s33, %s36
    %p45 = scmp.eq.s32.totalorder %s14, 1
    %p46 = por %p44, %p45
    %p47 = scmp.ne.s32.totalorder %s36, %s37
    %p48 = scmp.eq.s32.totalorder %s14, 0
    %p49 = por %p47, %p48
    %p50 = scmp.ne.s32.totalorder %s36, %s37
    %p51 = scmp.eq.s32.totalorder %s15, 1
    %p52 = por %p50, %p51
    %p54 = scmp.ne.s32.totalorder %s37, %s53
    %p55 = scmp.eq.s32.totalorder %s15, 0
    %p56 = por %p54, %p55
    %s57 = ssub.s32 %s17, %s24
    %p58 = scmp.eq.s32.totalorder %s57, 0
    %s60 = sadd.s32 %s59, 1
    %s61 = scalar_select %p58, %s59, %s60
    %p64 = pneg %p58
    %p65 = scmp.eq.s32.totalorder %s9, 1
    %p66 = por %p64, %p65
    %p67 = scmp.ne.s32.totalorder %s59, %s62
    %p68 = scmp.eq.s32.totalorder %s9, 0
    %p69 = por %p67, %p68
    %p70 = scmp.ne.s32.totalorder %s59, %s62
    %p71 = scmp.eq.s32.totalorder %s14, 1
    %p72 = por %p70, %p71
    %p73 = scmp.ne.s32.totalorder %s62, %s63
    %p74 = scmp.eq.s32.totalorder %s14, 0
    %p75 = por %p73, %p74
    %p76 = scmp.ne.s32.totalorder %s62, %s63
    %p77 = scmp.eq.s32.totalorder %s15, 1
    %p78 = por %p76, %p77
    %p80 = scmp.ne.s32.totalorder %s63, %s79
    %p81 = scmp.eq.s32.totalorder %s15, 0
    %p82 = por %p80, %p81
    %s84 = sadd.s32 %s83, 1
    %p87 = scmp.eq.s32.totalorder %s9, 1
    %p88 = scmp.ne.s32.totalorder %s83, %s85
    %p89 = scmp.eq.s32.totalorder %s9, 0
    %p90 = por %p88, %p89
    %p91 = scmp.ne.s32.totalorder %s83, %s85
    %p92 = scmp.eq.s32.totalorder %s14, 1
    %p93 = por %p91, %p92
    %p94 = scmp.ne.s32.totalorder %s85, %s86
    %p95 = scmp.eq.s32.totalorder %s14, 0
    %p96 = por %p94, %p95
    %p97 = scmp.ne.s32.totalorder %s85, %s86
    %p98 = scmp.eq.s32.totalorder %s15, 1
    %p99 = por %p97, %p98
    %p101 = scmp.ne.s32.totalorder %s86, %s100
    %p102 = scmp.eq.s32.totalorder %s15, 0
    %p103 = por %p101, %p102
    %s104 = ssub.s32 %s16, %s28
    %p105 = scmp.eq.s32.totalorder %s104, 0
    %s107 = sadd.s32 %s106, 1
    %s108 = scalar_select %p105, %s106, %s107
    %p111 = pneg %p105
    %p112 = scmp.eq.s32.totalorder %s9, 1
    %p113 = por %p111, %p112
    %p114 = scmp.ne.s32.totalorder %s106, %s109
    %p115 = scmp.eq.s32.totalorder %s9, 0
    %p116 = por %p114, %p115
    %p117 = scmp.ne.s32.totalorder %s106, %s109
    %p118 = scmp.eq.s32.totalorder %s14, 1
    %p119 = por %p117, %p118
    %p120 = scmp.ne.s32.totalorder %s109, %s110
    %p121 = scmp.eq.s32.totalorder %s14, 0
    %p122 = por %p120, %p121
    %p123 = scmp.ne.s32.totalorder %s109, %s110
    %p124 = scmp.eq.s32.totalorder %s15, 1
    %p125 = por %p123, %p124
    %p127 = scmp.ne.s32.totalorder %s110, %s126
    %p128 = scmp.eq.s32.totalorder %s15, 0
    %p129 = por %p127, %p128
    %p130 = scmp.le.s32.totalorder 1, %s9
    %p131 = scmp.lt.s32.totalorder %s9, 3
    %p132 = pnand %p130, %p131
    %p133 = pneg %p132
    // Predicated region
    $region9: #{deeplabv3_forward.9} parent=5 // pred_check
      _
    $region10: #{deeplabv3_forward.9} parent=5 // pred_check_branch
      %135 = sbr.rel (%p132) target = $region12
    $region11: #{deeplabv3_forward.9} parent=5 // pred_region
      %s136 = ssub.s32 %s9, 1
      // Predicated region
      $region13: #{deeplabv3_forward.9} parent=11 // pred_check
        %p137 = pneg %p75
      $region14: #{deeplabv3_forward.9} parent=11 // pred_check_branch
        %139 = sbr.rel (%p137) target = $region16
      $region15: #{deeplabv3_forward.9} parent=11 // pred_region
        %s140 = smul.u32 18, %s19
        %p141 = scmp.lt.s32.totalorder %s140, 17
        %s142 = scalar_select %p141, %s140, 17
        %s143 = smul.addr %s142, 4
        %s144 = scalar_lea.vmem %s1, %s143
        %s145 = smul.u32 18, %s19
      $region16: #{deeplabv3_forward.9} parent=11 // pred_fallthru
        _
      // Predicated region
      $region17: #{deeplabv3_forward.9} parent=11 // pred_check
        %p146 = pneg %p96
      $region18: #{deeplabv3_forward.9} parent=11 // pred_check_branch
        %148 = sbr.rel (%p146) target = $region20
      $region19: #{deeplabv3_forward.9} parent=11 // pred_region
        _
      $region20: #{deeplabv3_forward.9} parent=11 // pred_fallthru
        _
    $region12: #{deeplabv3_forward.9} parent=5 // pred_fallthru
      _
    %p149 = scmp.lt.s32.totalorder %s9, 2
    // Predicated region
    $region21: #{deeplabv3_forward.9} parent=5 // pred_check
      %p150 = pneg %p149
    $region22: #{deeplabv3_forward.9} parent=5 // pred_check_branch
      %152 = sbr.rel (%p150) target = $region24
    $region23: #{deeplabv3_forward.9} parent=5 // pred_region
      // Predicated region
      $region25: #{deeplabv3_forward.9} parent=23 // pred_check
        %p153 = pneg %p43
      $region26: #{deeplabv3_forward.9} parent=23 // pred_check_branch
        %155 = sbr.rel (%p153) target = $region28
      $region27: #{deeplabv3_forward.9} parent=23 // pred_region
        %s156 = smul.u32 2, %s16
        %s157 = smul.u32 2, %s17
        %p158 = scmp.lt.s32.totalorder %s156, 3
        %s159 = scalar_select %p158, %s156, 3
        %p160 = scmp.lt.s32.totalorder %s157, 1
        %s161 = scalar_select %p160, %s157, 1
        %s162 = smul.addr %s159, 2
        %s163 = sadd.s32 %s161, %s162
        %s164 = smul.addr %s163, 4
        %s165 = scalar_lea.vmem %s0, %s164
        %s166 = smul.u32 2, %s16
        %s167 = smul.u32 2, %s17
      $region28: #{deeplabv3_forward.9} parent=23 // pred_fallthru
        _
    $region24: #{deeplabv3_forward.9} parent=5 // pred_fallthru
      _
    %p168 = scmp.le.s32.totalorder 1, %s9
    %p169 = scmp.lt.s32.totalorder %s9, 3
    %p170 = pnand %p168, %p169
    %p171 = pneg %p170
    // Predicated region
    $region29: #{deeplabv3_forward.9} parent=5 // pred_check
      _
    $region30: #{deeplabv3_forward.9} parent=5 // pred_check_branch
      %173 = sbr.rel (%p170) target = $region32
    $region31: #{deeplabv3_forward.9} parent=5 // pred_region
      %s174 = ssub.s32 %s9, 1
      %s175 = smul.u32 2, %s18
      %s176 = smul.u32 2, %s19
      %p177 = scmp.lt.s32.totalorder %s175, 3
      %s178 = scalar_select %p177, %s175, 3
      %p179 = scmp.lt.s32.totalorder %s176, 1
      %s180 = scalar_select %p179, %s176, 1
      %s181 = smul.addr %s178, 2
      %s182 = sadd.s32 %s180, %s181
      %s183 = smul.addr %s182, 4
      %s184 = scalar_lea.vmem %s0, %s183
      %p185 = pneg %p49
      %p186 = pneg %p46
      %s187 = smul.u32 18, %s19
      %p188 = scmp.lt.s32.totalorder %s187, 17
      %s189 = scalar_select %p188, %s187, 17
      %s190 = smul.addr %s189, 4
      %s191 = scalar_lea.vmem %s1, %s190
      %p192 = pneg %p75
      %p193 = pneg %p72
      %p194 = pneg %p96
      %p195 = pneg %p93
      %p196 = pneg %p122
      %p197 = pneg %p119
      %s198 = smul.u32 2, %s18
      %p199 = scmp.lt.s32.totalorder %s198, 3
      %s200 = scalar_select %p199, %s198, 3
      %s201 = smul.addr %s200, 4
      %s202 = scalar_lea.vmem %s3, %s201
      %s203 = smul.u32 2, %s18
      %s204 = smul.u32 2, %s19
      %p205 = scmp.lt.s32.totalorder %s203, 3
      %s206 = scalar_select %p205, %s203, 3
      %p207 = scmp.lt.s32.totalorder %s204, 1
      %s208 = scalar_select %p207, %s204, 1
      %s209 = smul.addr %s206, 2
      %s210 = sadd.s32 %s208, %s209
      %s211 = smul.addr %s210, 4
      %s212 = scalar_lea.vmem %s0, %s211
      %s213 = smul.u32 2, %s18
      %s214 = smul.u32 2, %s19
      %s215 = smul.u32 18, %s19
      %p216 = scmp.lt.s32.totalorder %s215, 17
      %s217 = scalar_select %p216, %s215, 17
      %s218 = smul.addr %s217, 4
      %s219 = scalar_lea.vmem %s1, %s218
      %s220 = smul.u32 18, %s19
      %s221 = smul.u32 2, %s18
      %p222 = scmp.lt.s32.totalorder %s221, 3
      %s223 = scalar_select %p222, %s221, 3
      %s224 = smul.addr %s223, 4
      %s225 = scalar_lea.vmem %s3, %s224
      %s226 = smul.u32 2, %s18
      %p228 = scmp.eq.s32.totalorder %s19, 0
      // Predicated region
      $region33: #{deeplabv3_forward.9} parent=31 // pred_check
        %p229 = pneg %p228
      $region34: #{deeplabv3_forward.9} parent=31 // pred_check_branch
        %231 = sbr.rel (%p229) target = $region36
      $region35: #{deeplabv3_forward.9} parent=31 // pred_region
        %vm232 = vcmask 523264
        %233 = vst.msk [vmem:[#allocation2] sm:$0xff] %vm232, 0.0
        %234 = vst.msk [vmem:[#allocation2 + $0x8] sm:$0xff] %vm232, 0.0
      $region36: #{deeplabv3_forward.9} parent=31 // pred_fallthru
        _
      %v235 = vld [vmem:[#allocation2] sm:$0xff]
      %v236 = vld [vmem:[#allocation2 + $0x8] sm:$0xff]
      %v237 = vld [vmem:[%s212] sm:$0xff]
      %v238 = vld [vmem:[%s212 + $0x8] sm:$0xff]
      %v239 = vld [vmem:[%s219] sm:$0xf]
      %v240 = vld [vmem:[%s219 + $0x4] sm:$0xf]
      %v241 = vld [vmem:[%s219 + $0x8] sm:$0xf]
      %v242 = vld [vmem:[%s219 + $0xc] sm:$0xf]
      %v243 = vld [vmem:[%s219 + $0x10] sm:$0xf]
      %v244 = vld [vmem:[%s219 + $0x14] sm:$0xf]
      %v245 = vld [vmem:[%s219 + $0x18] sm:$0xf]
      %v246 = vld [vmem:[%s219 + $0x1c] sm:$0xf]
      %v247 = vld [vmem:[%s219 + $0x20] sm:$0xf]
      %v248 = vld [vmem:[%s219 + $0x24] sm:$0xf]
      %v249 = vld [vmem:[%s219 + $0x28] sm:$0xf]
      %v250 = vld [vmem:[%s219 + $0x2c] sm:$0xf]
      %v251 = vld [vmem:[%s219 + $0x30] sm:$0xf]
      %v252 = vld [vmem:[%s219 + $0x34] sm:$0xf]
      %v253 = vld [vmem:[%s219 + $0x38] sm:$0xf]
      %v254 = vld [vmem:[%s219 + $0x3c] sm:$0xf]
      %v255 = vld [vmem:[%s219 + $0x40] sm:$0xf]
      %v256 = vld [vmem:[%s219 + $0x44] sm:$0xf]
      %v259 = vunpack.c.l.b16 %v237
      %v260 = vunpack.c.h.b16 %v237
      %v261 = vunpack.c.l.b16 %v238
      %v262 = vunpack.c.h.b16 %v238
      %v263 = vpack.c.b16 %v261, %v259
      %v264 = vpack.c.b16 %v262, %v260
      %v284 = vunpack.c.l.b16 %v239
      %v285 = vunpack.c.l.b16 %v240
      %v286 = vunpack.c.l.b16 %v241
      %v287 = vunpack.c.l.b16 %v242
      %v288 = vunpack.c.l.b16 %v243
      %v289 = vunpack.c.l.b16 %v244
      %v290 = vunpack.c.l.b16 %v245
      %v291 = vunpack.c.l.b16 %v246
      %v292 = vunpack.c.l.b16 %v247
      %v293 = vunpack.c.l.b16 %v248
      %v294 = vunpack.c.l.b16 %v249
      %v295 = vunpack.c.l.b16 %v250
      %v296 = vunpack.c.l.b16 %v251
      %v297 = vunpack.c.l.b16 %v252
      %v298 = vunpack.c.l.b16 %v253
      %v299 = vunpack.c.l.b16 %v254
      %v300 = vunpack.c.l.b16 %v255
      %v301 = vunpack.c.l.b16 %v256
      %v302 = vpack.c.b16 %v285, %v284
      %v303 = vpack.c.b16 %v287, %v286
      %v304 = vpack.c.b16 %v289, %v288
      %v305 = vpack.c.b16 %v291, %v290
      %v306 = vpack.c.b16 %v293, %v292
      %v307 = vpack.c.b16 %v295, %v294
      %v308 = vpack.c.b16 %v297, %v296
      %v309 = vpack.c.b16 %v299, %v298
      %v310 = vpack.c.b16 %v301, %v300
      %vm320 = vcmask 130048
      %v322 = vsel %vm320, %v264, 0
      %324 = vmatprep.subr.bf16.mxu0 0
      %325 = vmatpush1.bf16.msra.mxu0 %v302
      %326 = vmatprep.subr.bf16.mxu0 0
      %327 = vmatpush1.bf16.msra.mxu0 %v303
      %328 = vmatprep.subr.bf16.mxu0 0
      %329 = vmatpush1.bf16.msra.mxu0 %v304
      %330 = vmatprep.subr.bf16.mxu0 0
      %331 = vmatpush1.bf16.msra.mxu0 %v305
      %332 = vmatprep.subr.bf16.mxu0 0
      %333 = vmatpush1.bf16.msra.mxu0 %v306
      %334 = vmatprep.subr.bf16.mxu0 0
      %335 = vmatpush1.bf16.msra.mxu0 %v307
      %336 = vmatprep.subr.bf16.mxu0 0
      %337 = vmatpush1.bf16.msra.mxu0 %v308
      %338 = vmatprep.subr.bf16.mxu0 0
      %339 = vmatpush1.bf16.msra.mxu0 %v309
      %340 = vmatprep.subr.bf16.mxu0 0
      %341 = vmatpush1.bf16.msra.mxu0 %v310
      %342 = vmatprep.subr.bf16.mxu0 0
      %343 = vmatpush1.bf16.msra.mxu0 0
      %344 = vmatprep.subr.bf16.mxu0 0
      %345 = vmatpush1.bf16.msra.mxu0 0
      %346 = vmatprep.subr.bf16.mxu0 0
      %347 = vmatpush1.bf16.msra.mxu0 0
      %348 = vmatprep.subr.bf16.mxu0 0
      %349 = vmatpush1.bf16.msra.mxu0 0
      %350 = vmatprep.subr.bf16.mxu0 0
      %351 = vmatpush1.bf16.msra.mxu0 0
      %352 = vmatprep.subr.bf16.mxu0 0
      %353 = vmatpush1.bf16.msra.mxu0 0
      %354 = vmatprep.subr.bf16.mxu0 0
      %355 = vmatpush1.bf16.msra.mxu0 0
      %356 = vmatprep.mubr.bf16.mxu0 %v322
      %357 = vmatmul.mubr.bf16.gmra.mrb[0].mxu0 %v263
      %v358 = vpop.f32.mrb[0].mxu0
      %v359 = vadd.f32 0.0, %v358
      %v360 = vpop.f32.mrb[0].mxu0
      %v361 = vpop.f32.mrb[0].mxu0
      %v362 = vadd.f32 0.0, %v361
      %v363 = vpop.f32.mrb[0].mxu0
      %364 = vdwg.mxu0
      %v365 = vadd.f32 %v235, %v359
      %v366 = vadd.f32 %v236, %v362
      %vm367 = vcmask 523264
      %368 = vst.msk [vmem:[#allocation2] sm:$0xff] %vm367, %v365
      %369 = vst.msk [vmem:[#allocation2 + $0x8] sm:$0xff] %vm367, %v366
      // Predicated region
      $region37: #{deeplabv3_forward.9} parent=31 // pred_check
        %p370 = pneg %p228
      $region38: #{deeplabv3_forward.9} parent=31 // pred_check_branch
        %372 = sbr.rel (%p370) target = $region40
      $region39: #{deeplabv3_forward.9} parent=31 // pred_region
        %v373 = vld [vmem:[#allocation2] sm:$0xff]
        %v374 = vld [vmem:[#allocation2 + $0x8] sm:$0xff]
        %v375 = vld [vmem:[%s2] sm:$0x1]
        %v377 = vlaneseq
        %v378 = vshrl.u32 %v377, 7
        %v379 = vsub.s32 0, %v378
        %v380 = vrot.slane %v375, %v379
        %v382 = vadd.f32 %v373, %v380
        %v383 = vadd.f32 %v374, %v380
        %v384 = vmax.f32 %v382, 0.0
        %v385 = vmax.f32 %v383, 0.0
        %v386 = vpack.c.bf16 %v385, %v384
        %v388 = vunpack.c.l.b16 %v386
        %v389 = vunpack.c.h.b16 %v386
        %v390 = vpack.c.b16 %v388, %v388
        %v391 = vpack.c.b16 %v389, %v389
        %vm394 = vcmask 519168
        %395 = vst.msk [vmem:[%s225] sm:$0xf] %vm394, %v390
        %396 = vst.msk [vmem:[%s225 + $0x4] sm:$0xf] %vm394, %v391
      $region40: #{deeplabv3_forward.9} parent=31 // pred_fallthru
        _
      %s397 = smul.u32 2, %s18
      %p398 = scmp.lt.s32.totalorder %s397, 3
      %s399 = scalar_select %p398, %s397, 3
      %s400 = smul.addr %s399, 4
      %s401 = scalar_lea.vmem %s3, %s400
      // Predicated region
      $region41: #{deeplabv3_forward.9} parent=31 // pred_check
        %p402 = pneg %p119
      $region42: #{deeplabv3_forward.9} parent=31 // pred_check_branch
        %404 = sbr.rel (%p402) target = $region44
      $region43: #{deeplabv3_forward.9} parent=31 // pred_region
        %s405 = smul.u32 2, %s18
      $region44: #{deeplabv3_forward.9} parent=31 // pred_fallthru
        _
    $region32: #{deeplabv3_forward.9} parent=5 // pred_fallthru
      _
    %p406 = scmp.le.s32.totalorder 2, %s9
    // Predicated region
    $region45: #{deeplabv3_forward.9} parent=5 // pred_check
      %p407 = pneg %p406
    $region46: #{deeplabv3_forward.9} parent=5 // pred_check_branch
      %409 = sbr.rel (%p407) target = $region48
    $region47: #{deeplabv3_forward.9} parent=5 // pred_region
      %s410 = ssub.s32 %s9, 2
      // Predicated region
      $region49: #{deeplabv3_forward.9} parent=47 // pred_check
        %p411 = pneg %p125
      $region50: #{deeplabv3_forward.9} parent=47 // pred_check_branch
        %413 = sbr.rel (%p411) target = $region52
      $region51: #{deeplabv3_forward.9} parent=47 // pred_region
        %s414 = smul.u32 2, %s20
        %p415 = scmp.lt.s32.totalorder %s414, 3
        %s416 = scalar_select %p415, %s414, 3
        %s417 = smul.addr %s416, 4
        %s418 = scalar_lea.vmem %s3, %s417
      $region52: #{deeplabv3_forward.9} parent=47 // pred_fallthru
        _
    $region48: #{deeplabv3_forward.9} parent=5 // pred_fallthru
      _
  $region6: #{deeplabv3_forward.9} parent=0 // loop_footer
    %s13 = sadd.s32 1, %s9
  $region7: #{deeplabv3_forward.9} parent=0 // loop_footer_branch
    %8 = sbr.rel target = $region3
  $region8: #{deeplabv3_forward.9} parent=0 // loop_exit
    _

// kernel: deeplabv3_forward.11
$region0: #{deeplabv3_forward.11}
  #allocation0 [shape = 'u32[]', space=smem, size = 0x4, offset = 0x4, fixed_abs, tag = 'smem constant byte address 0x4 - core index']
  #allocation1 [shape = 'u32[144,128]{1,0:T(1,128)}', space=vmem, size = 0x12000, scoped, tag = 'internal scratch']
  #allocation2 [shape = 'f32[16,32]{1,0:T(8,128)}', space=vmem, size = 0x2000, scoped, tag = 'scratch operand']
  %s0 = inlined_call_operand.vmem [shape: bf16[32,576], index: 0, kind: input, shape index: {}]
  %s1 = inlined_call_operand.vmem [shape: bf16[576,32], index: 1, kind: input, shape index: {}]
  %s2 = inlined_call_operand.vmem [shape: f32[1,32], index: 2, kind: input, shape index: {}]
  %s3 = inlined_call_operand.vmem [shape: bf16[32,32], index: 3, kind: output, shape index: {}]
  %s4 = sld [smem:[#allocation0]]
  $region53: #{deeplabv3_forward.11} parent=0
    _
  %s6 = ssub.s32 1, %s4
  %s7 = scalar_select 0, %s6, %s4
  loop: start=0, step=1, limit=4
  $region2: #{deeplabv3_forward.11} parent=0 // loop_pre_header
    _
  $region3: #{deeplabv3_forward.11} parent=0 // loop_header
    %s9 = sphi 0, %s13
    %p10 = scmp.ge.s32.totalorder %s9, 4
    %s16 = sphi 0, %s28
    %s17 = sphi 0, %s24
    %s18 = sphi 0, %s16
    %s19 = sphi 0, %s17
    %s20 = sphi 0, %s18
    %s21 = sphi 0, %s19
    %s33 = sphi 0, %s35
    %s36 = sphi 0, %s33
    %s37 = sphi 0, %s36
    %s53 = sphi 0, %s37
    %s59 = sphi 0, %s61
    %s62 = sphi 0, %s59
    %s63 = sphi 0, %s62
    %s79 = sphi 0, %s63
    %s83 = sphi 0, %s83
    %s85 = sphi 0, %s83
    %s86 = sphi 0, %s85
    %s100 = sphi 0, %s86
    %s106 = sphi 0, %s108
    %s109 = sphi 0, %s106
    %s110 = sphi 0, %s109
    %s126 = sphi 0, %s110
  $region4: #{deeplabv3_forward.11} parent=0 // loop_header_branch
    %12 = sbr.rel (%p10) target = $region8
  $region5: #{deeplabv3_forward.11} parent=0 // loop_body
    %s14 = ssub.s32 %s9, 1
    %s15 = ssub.s32 %s9, 2
    %s22 = sadd.s32 1, %s17
    %p23 = scmp.ge.s32.totalorder %s22, 1
    %s24 = scalar_select %p23, 0, %s22
    %s25 = sadd.s32 1, %s16
    %s26 = scalar_select %p23, %s25, %s16
    %p27 = scmp.ge.s32.totalorder %s26, 2
    %s28 = scalar_select %p27, 0, %s26
    %s29 = ssub.s32 %s16, %s28
    %s30 = ssub.s32 %s17, %s24
    %s31 = sor.u32 %s29, %s30
    %p32 = scmp.eq.s32.totalorder %s31, 0
    %s34 = sadd.s32 %s33, 1
    %s35 = scalar_select %p32, %s33, %s34
    %p38 = pneg %p32
    %p39 = scmp.eq.s32.totalorder %s9, 1
    %p40 = por %p38, %p39
    %p41 = scmp.ne.s32.totalorder %s33, %s36
    %p42 = scmp.eq.s32.totalorder %s9, 0
    %p43 = por %p41, %p42
    %p44 = scmp.ne.s32.totalorder %s33, %s36
    %p45 = scmp.eq.s32.totalorder %s14, 1
    %p46 = por %p44, %p45
    %p47 = scmp.ne.s32.totalorder %s36, %s37
    %p48 = scmp.eq.s32.totalorder %s14, 0
    %p49 = por %p47, %p48
    %p50 = scmp.ne.s32.totalorder %s36, %s37
    %p51 = scmp.eq.s32.totalorder %s15, 1
    %p52 = por %p50, %p51
    %p54 = scmp.ne.s32.totalorder %s37, %s53
    %p55 = scmp.eq.s32.totalorder %s15, 0
    %p56 = por %p54, %p55
    %s57 = ssub.s32 %s17, %s24
    %p58 = scmp.eq.s32.totalorder %s57, 0
    %s60 = sadd.s32 %s59, 1
    %s61 = scalar_select %p58, %s59, %s60
    %p64 = pneg %p58
    %p65 = scmp.eq.s32.totalorder %s9, 1
    %p66 = por %p64, %p65
    %p67 = scmp.ne.s32.totalorder %s59, %s62
    %p68 = scmp.eq.s32.totalorder %s9, 0
    %p69 = por %p67, %p68
    %p70 = scmp.ne.s32.totalorder %s59, %s62
    %p71 = scmp.eq.s32.totalorder %s14, 1
    %p72 = por %p70, %p71
    %p73 = scmp.ne.s32.totalorder %s62, %s63
    %p74 = scmp.eq.s32.totalorder %s14, 0
    %p75 = por %p73, %p74
    %p76 = scmp.ne.s32.totalorder %s62, %s63
    %p77 = scmp.eq.s32.totalorder %s15, 1
    %p78 = por %p76, %p77
    %p80 = scmp.ne.s32.totalorder %s63, %s79
    %p81 = scmp.eq.s32.totalorder %s15, 0
    %p82 = por %p80, %p81
    %s84 = sadd.s32 %s83, 1
    %p87 = scmp.eq.s32.totalorder %s9, 1
    %p88 = scmp.ne.s32.totalorder %s83, %s85
    %p89 = scmp.eq.s32.totalorder %s9, 0
    %p90 = por %p88, %p89
    %p91 = scmp.ne.s32.totalorder %s83, %s85
    %p92 = scmp.eq.s32.totalorder %s14, 1
    %p93 = por %p91, %p92
    %p94 = scmp.ne.s32.totalorder %s85, %s86
    %p95 = scmp.eq.s32.totalorder %s14, 0
    %p96 = por %p94, %p95
    %p97 = scmp.ne.s32.totalorder %s85, %s86
    %p98 = scmp.eq.s32.totalorder %s15, 1
    %p99 = por %p97, %p98
    %p101 = scmp.ne.s32.totalorder %s86, %s100
    %p102 = scmp.eq.s32.totalorder %s15, 0
    %p103 = por %p101, %p102
    %s104 = ssub.s32 %s16, %s28
    %p105 = scmp.eq.s32.totalorder %s104, 0
    %s107 = sadd.s32 %s106, 1
    %s108 = scalar_select %p105, %s106, %s107
    %p111 = pneg %p105
    %p112 = scmp.eq.s32.totalorder %s9, 1
    %p113 = por %p111, %p112
    %p114 = scmp.ne.s32.totalorder %s106, %s109
    %p115 = scmp.eq.s32.totalorder %s9, 0
    %p116 = por %p114, %p115
    %p117 = scmp.ne.s32.totalorder %s106, %s109
    %p118 = scmp.eq.s32.totalorder %s14, 1
    %p119 = por %p117, %p118
    %p120 = scmp.ne.s32.totalorder %s109, %s110
    %p121 = scmp.eq.s32.totalorder %s14, 0
    %p122 = por %p120, %p121
    %p123 = scmp.ne.s32.totalorder %s109, %s110
    %p124 = scmp.eq.s32.totalorder %s15, 1
    %p125 = por %p123, %p124
    %p127 = scmp.ne.s32.totalorder %s110, %s126
    %p128 = scmp.eq.s32.totalorder %s15, 0
    %p129 = por %p127, %p128
    %p130 = scmp.le.s32.totalorder 1, %s9
    %p131 = scmp.lt.s32.totalorder %s9, 3
    %p132 = pnand %p130, %p131
    %p133 = pneg %p132
    // Predicated region
    $region9: #{deeplabv3_forward.11} parent=5 // pred_check
      _
    $region10: #{deeplabv3_forward.11} parent=5 // pred_check_branch
      %135 = sbr.rel (%p132) target = $region12
    $region11: #{deeplabv3_forward.11} parent=5 // pred_region
      %s136 = ssub.s32 %s9, 1
      // Predicated region
      $region13: #{deeplabv3_forward.11} parent=11 // pred_check
        %p137 = pneg %p75
      $region14: #{deeplabv3_forward.11} parent=11 // pred_check_branch
        %139 = sbr.rel (%p137) target = $region16
      $region15: #{deeplabv3_forward.11} parent=11 // pred_region
        %s140 = smul.u32 72, %s19
        %p141 = scmp.lt.s32.totalorder %s140, 71
        %s142 = scalar_select %p141, %s140, 71
        %s143 = smul.addr %s142, 4
        %s144 = scalar_lea.vmem %s1, %s143
        %s145 = smul.u32 72, %s19
      $region16: #{deeplabv3_forward.11} parent=11 // pred_fallthru
        _
      // Predicated region
      $region17: #{deeplabv3_forward.11} parent=11 // pred_check
        %p146 = pneg %p96
      $region18: #{deeplabv3_forward.11} parent=11 // pred_check_branch
        %148 = sbr.rel (%p146) target = $region20
      $region19: #{deeplabv3_forward.11} parent=11 // pred_region
        _
      $region20: #{deeplabv3_forward.11} parent=11 // pred_fallthru
        _
    $region12: #{deeplabv3_forward.11} parent=5 // pred_fallthru
      _
    %p149 = scmp.lt.s32.totalorder %s9, 2
    // Predicated region
    $region21: #{deeplabv3_forward.11} parent=5 // pred_check
      %p150 = pneg %p149
    $region22: #{deeplabv3_forward.11} parent=5 // pred_check_branch
      %152 = sbr.rel (%p150) target = $region24
    $region23: #{deeplabv3_forward.11} parent=5 // pred_region
      // Predicated region
      $region25: #{deeplabv3_forward.11} parent=23 // pred_check
        %p153 = pneg %p43
      $region26: #{deeplabv3_forward.11} parent=23 // pred_check_branch
        %155 = sbr.rel (%p153) target = $region28
      $region27: #{deeplabv3_forward.11} parent=23 // pred_region
        %s156 = smul.u32 2, %s16
        %s157 = smul.u32 5, %s17
        %p158 = scmp.lt.s32.totalorder %s156, 3
        %s159 = scalar_select %p158, %s156, 3
        %p160 = scmp.lt.s32.totalorder %s157, 4
        %s161 = scalar_select %p160, %s157, 4
        %s162 = smul.addr %s159, 5
        %s163 = sadd.s32 %s161, %s162
        %s164 = smul.addr %s163, 4
        %s165 = scalar_lea.vmem %s0, %s164
        %s166 = smul.u32 2, %s16
        %s167 = smul.u32 5, %s17
      $region28: #{deeplabv3_forward.11} parent=23 // pred_fallthru
        _
    $region24: #{deeplabv3_forward.11} parent=5 // pred_fallthru
      _
    %p168 = scmp.le.s32.totalorder 1, %s9
    %p169 = scmp.lt.s32.totalorder %s9, 3
    %p170 = pnand %p168, %p169
    %p171 = pneg %p170
    // Predicated region
    $region29: #{deeplabv3_forward.11} parent=5 // pred_check
      _
    $region30: #{deeplabv3_forward.11} parent=5 // pred_check_branch
      %173 = sbr.rel (%p170) target = $region32
    $region31: #{deeplabv3_forward.11} parent=5 // pred_region
      %s174 = ssub.s32 %s9, 1
      %s175 = smul.u32 2, %s18
      %s176 = smul.u32 5, %s19
      %p177 = scmp.lt.s32.totalorder %s175, 3
      %s178 = scalar_select %p177, %s175, 3
      %p179 = scmp.lt.s32.totalorder %s176, 4
      %s180 = scalar_select %p179, %s176, 4
      %s181 = smul.addr %s178, 5
      %s182 = sadd.s32 %s180, %s181
      %s183 = smul.addr %s182, 4
      %s184 = scalar_lea.vmem %s0, %s183
      %p185 = pneg %p49
      %p186 = pneg %p46
      %s187 = smul.u32 72, %s19
      %p188 = scmp.lt.s32.totalorder %s187, 71
      %s189 = scalar_select %p188, %s187, 71
      %s190 = smul.addr %s189, 4
      %s191 = scalar_lea.vmem %s1, %s190
      %p192 = pneg %p75
      %p193 = pneg %p72
      %p194 = pneg %p96
      %p195 = pneg %p93
      %p196 = pneg %p122
      %p197 = pneg %p119
      %s198 = smul.u32 2, %s18
      %p199 = scmp.lt.s32.totalorder %s198, 3
      %s200 = scalar_select %p199, %s198, 3
      %s201 = smul.addr %s200, 4
      %s202 = scalar_lea.vmem %s3, %s201
      %s203 = smul.u32 2, %s18
      %s204 = smul.u32 5, %s19
      %p205 = scmp.lt.s32.totalorder %s203, 3
      %s206 = scalar_select %p205, %s203, 3
      %p207 = scmp.lt.s32.totalorder %s204, 4
      %s208 = scalar_select %p207, %s204, 4
      %s209 = smul.addr %s206, 5
      %s210 = sadd.s32 %s208, %s209
      %s211 = smul.addr %s210, 4
      %s212 = scalar_lea.vmem %s0, %s211
      %s213 = smul.u32 2, %s18
      %s214 = smul.u32 5, %s19
      %s215 = smul.u32 72, %s19
      %p216 = scmp.lt.s32.totalorder %s215, 71
      %s217 = scalar_select %p216, %s215, 71
      %s218 = smul.addr %s217, 4
      %s219 = scalar_lea.vmem %s1, %s218
      %s220 = smul.u32 72, %s19
      %s221 = smul.u32 2, %s18
      %p222 = scmp.lt.s32.totalorder %s221, 3
      %s223 = scalar_select %p222, %s221, 3
      %s224 = smul.addr %s223, 4
      %s225 = scalar_lea.vmem %s3, %s224
      %s226 = smul.u32 2, %s18
      %p228 = scmp.eq.s32.totalorder %s19, 0
      // Predicated region
      $region33: #{deeplabv3_forward.11} parent=31 // pred_check
        %p229 = pneg %p228
      $region34: #{deeplabv3_forward.11} parent=31 // pred_check_branch
        %231 = sbr.rel (%p229) target = $region36
      $region35: #{deeplabv3_forward.11} parent=31 // pred_region
        %vm232 = vcmask 261120
        %233 = vst.msk [vmem:[#allocation2] sm:$0xff] %vm232, 0.0
        %234 = vst.msk [vmem:[#allocation2 + $0x8] sm:$0xff] %vm232, 0.0
      $region36: #{deeplabv3_forward.11} parent=31 // pred_fallthru
        _
      %v235 = vld [vmem:[#allocation2] sm:$0xff]
      %v236 = vld [vmem:[#allocation2 + $0x8] sm:$0xff]
      %v237 = vld [vmem:[%s212] sm:$0xff]
      %v238 = vld [vmem:[%s212 + $0x8] sm:$0xff]
      %v239 = vld [vmem:[%s212 + $0x10] sm:$0xf]
      %v240 = vld [vmem:[%s212 + $0x14] sm:$0xff]
      %v241 = vld [vmem:[%s212 + $0x1c] sm:$0xff]
      %v242 = vld [vmem:[%s212 + $0x24] sm:$0xf]
      %v243 = vld [vmem:[%s219] sm:$0xf]
      %v244 = vld [vmem:[%s219 + $0x4] sm:$0xf]
      %v245 = vld [vmem:[%s219 + $0x8] sm:$0xf]
      %v246 = vld [vmem:[%s219 + $0xc] sm:$0xf]
      %v247 = vld [vmem:[%s219 + $0x10] sm:$0xf]
      %v248 = vld [vmem:[%s219 + $0x14] sm:$0xf]
      %v249 = vld [vmem:[%s219 + $0x18] sm:$0xf]
      %v250 = vld [vmem:[%s219 + $0x1c] sm:$0xf]
      %v251 = vld [vmem:[%s219 + $0x20] sm:$0xf]
      %v252 = vld [vmem:[%s219 + $0x24] sm:$0xf]
      %v253 = vld [vmem:[%s219 + $0x28] sm:$0xf]
      %v254 = vld [vmem:[%s219 + $0x2c] sm:$0xf]
      %v255 = vld [vmem:[%s219 + $0x30] sm:$0xf]
      %v256 = vld [vmem:[%s219 + $0x34] sm:$0xf]
      %v257 = vld [vmem:[%s219 + $0x38] sm:$0xf]
      %v258 = vld [vmem:[%s219 + $0x3c] sm:$0xf]
      %v259 = vld [vmem:[%s219 + $0x40] sm:$0xf]
      %v260 = vld [vmem:[%s219 + $0x44] sm:$0xf]
      %v261 = vld [vmem:[%s219 + $0x48] sm:$0xf]
      %v262 = vld [vmem:[%s219 + $0x4c] sm:$0xf]
      %v263 = vld [vmem:[%s219 + $0x50] sm:$0xf]
      %v264 = vld [vmem:[%s219 + $0x54] sm:$0xf]
      %v265 = vld [vmem:[%s219 + $0x58] sm:$0xf]
      %v266 = vld [vmem:[%s219 + $0x5c] sm:$0xf]
      %v267 = vld [vmem:[%s219 + $0x60] sm:$0xf]
      %v268 = vld [vmem:[%s219 + $0x64] sm:$0xf]
      %v269 = vld [vmem:[%s219 + $0x68] sm:$0xf]
      %v270 = vld [vmem:[%s219 + $0x6c] sm:$0xf]
      %v271 = vld [vmem:[%s219 + $0x70] sm:$0xf]
      %v272 = vld [vmem:[%s219 + $0x74] sm:$0xf]
      %v273 = vld [vmem:[%s219 + $0x78] sm:$0xf]
      %v274 = vld [vmem:[%s219 + $0x7c] sm:$0xf]
      %v275 = vld [vmem:[%s219 + $0x80] sm:$0xf]
      %v276 = vld [vmem:[%s219 + $0x84] sm:$0xf]
      %v277 = vld [vmem:[%s219 + $0x88] sm:$0xf]
      %v278 = vld [vmem:[%s219 + $0x8c] sm:$0xf]
      %v279 = vld [vmem:[%s219 + $0x90] sm:$0xf]
      %v280 = vld [vmem:[%s219 + $0x94] sm:$0xf]
      %v281 = vld [vmem:[%s219 + $0x98] sm:$0xf]
      %v282 = vld [vmem:[%s219 + $0x9c] sm:$0xf]
      %v283 = vld [vmem:[%s219 + $0xa0] sm:$0xf]
      %v284 = vld [vmem:[%s219 + $0xa4] sm:$0xf]
      %v285 = vld [vmem:[%s219 + $0xa8] sm:$0xf]
      %v286 = vld [vmem:[%s219 + $0xac] sm:$0xf]
      %v287 = vld [vmem:[%s219 + $0xb0] sm:$0xf]
      %v288 = vld [vmem:[%s219 + $0xb4] sm:$0xf]
      %v289 = vld [vmem:[%s219 + $0xb8] sm:$0xf]
      %v290 = vld [vmem:[%s219 + $0xbc] sm:$0xf]
      %v291 = vld [vmem:[%s219 + $0xc0] sm:$0xf]
      %v292 = vld [vmem:[%s219 + $0xc4] sm:$0xf]
      %v293 = vld [vmem:[%s219 + $0xc8] sm:$0xf]
      %v294 = vld [vmem:[%s219 + $0xcc] sm:$0xf]
      %v295 = vld [vmem:[%s219 + $0xd0] sm:$0xf]
      %v296 = vld [vmem:[%s219 + $0xd4] sm:$0xf]
      %v297 = vld [vmem:[%s219 + $0xd8] sm:$0xf]
      %v298 = vld [vmem:[%s219 + $0xdc] sm:$0xf]
      %v299 = vld [vmem:[%s219 + $0xe0] sm:$0xf]
      %v300 = vld [vmem:[%s219 + $0xe4] sm:$0xf]
      %v301 = vld [vmem:[%s219 + $0xe8] sm:$0xf]
      %v302 = vld [vmem:[%s219 + $0xec] sm:$0xf]
      %v303 = vld [vmem:[%s219 + $0xf0] sm:$0xf]
      %v304 = vld [vmem:[%s219 + $0xf4] sm:$0xf]
      %v305 = vld [vmem:[%s219 + $0xf8] sm:$0xf]
      %v306 = vld [vmem:[%s219 + $0xfc] sm:$0xf]
      %v307 = vld [vmem:[%s219 + $0x100] sm:$0xf]
      %v308 = vld [vmem:[%s219 + $0x104] sm:$0xf]
      %v309 = vld [vmem:[%s219 + $0x108] sm:$0xf]
      %v310 = vld [vmem:[%s219 + $0x10c] sm:$0xf]
      %v311 = vld [vmem:[%s219 + $0x110] sm:$0xf]
      %v312 = vld [vmem:[%s219 + $0x114] sm:$0xf]
      %v313 = vld [vmem:[%s219 + $0x118] sm:$0xf]
      %v314 = vld [vmem:[%s219 + $0x11c] sm:$0xf]
      %v321 = vunpack.c.l.b16 %v237
      %v322 = vunpack.c.h.b16 %v237
      %v323 = vunpack.c.l.b16 %v238
      %v324 = vunpack.c.h.b16 %v238
      %v325 = vunpack.c.l.b16 %v239
      %v326 = vunpack.c.l.b16 %v240
      %v327 = vunpack.c.h.b16 %v240
      %v328 = vunpack.c.l.b16 %v241
      %v329 = vunpack.c.h.b16 %v241
      %v330 = vunpack.c.l.b16 %v242
      %v331 = vpack.c.b16 %v326, %v321
      %v332 = vpack.c.b16 %v327, %v322
      %v333 = vpack.c.b16 %v328, %v323
      %v334 = vpack.c.b16 %v329, %v324
      %v335 = vpack.c.b16 %v330, %v325
      %v412 = vunpack.c.l.b16 %v243
      %v413 = vunpack.c.l.b16 %v244
      %v414 = vunpack.c.l.b16 %v245
      %v415 = vunpack.c.l.b16 %v246
      %v416 = vunpack.c.l.b16 %v247
      %v417 = vunpack.c.l.b16 %v248
      %v418 = vunpack.c.l.b16 %v249
      %v419 = vunpack.c.l.b16 %v250
      %v420 = vunpack.c.l.b16 %v251
      %v421 = vunpack.c.l.b16 %v252
      %v422 = vunpack.c.l.b16 %v253
      %v423 = vunpack.c.l.b16 %v254
      %v424 = vunpack.c.l.b16 %v255
      %v425 = vunpack.c.l.b16 %v256
      %v426 = vunpack.c.l.b16 %v257
      %v427 = vunpack.c.l.b16 %v258
      %v428 = vunpack.c.l.b16 %v259
      %v429 = vunpack.c.l.b16 %v260
      %v430 = vunpack.c.l.b16 %v261
      %v431 = vunpack.c.l.b16 %v262
      %v432 = vunpack.c.l.b16 %v263
      %v433 = vunpack.c.l.b16 %v264
      %v434 = vunpack.c.l.b16 %v265
      %v435 = vunpack.c.l.b16 %v266
      %v436 = vunpack.c.l.b16 %v267
      %v437 = vunpack.c.l.b16 %v268
      %v438 = vunpack.c.l.b16 %v269
      %v439 = vunpack.c.l.b16 %v270
      %v440 = vunpack.c.l.b16 %v271
      %v441 = vunpack.c.l.b16 %v272
      %v442 = vunpack.c.l.b16 %v273
      %v443 = vunpack.c.l.b16 %v274
      %v444 = vunpack.c.l.b16 %v275
      %v445 = vunpack.c.l.b16 %v276
      %v446 = vunpack.c.l.b16 %v277
      %v447 = vunpack.c.l.b16 %v278
      %v448 = vunpack.c.l.b16 %v279
      %v449 = vunpack.c.l.b16 %v280
      %v450 = vunpack.c.l.b16 %v281
      %v451 = vunpack.c.l.b16 %v282
      %v452 = vunpack.c.l.b16 %v283
      %v453 = vunpack.c.l.b16 %v284
      %v454 = vunpack.c.l.b16 %v285
      %v455 = vunpack.c.l.b16 %v286
      %v456 = vunpack.c.l.b16 %v287
      %v457 = vunpack.c.l.b16 %v288
      %v458 = vunpack.c.l.b16 %v289
      %v459 = vunpack.c.l.b16 %v290
      %v460 = vunpack.c.l.b16 %v291
      %v461 = vunpack.c.l.b16 %v292
      %v462 = vunpack.c.l.b16 %v293
      %v463 = vunpack.c.l.b16 %v294
      %v464 = vunpack.c.l.b16 %v295
      %v465 = vunpack.c.l.b16 %v296
      %v466 = vunpack.c.l.b16 %v297
      %v467 = vunpack.c.l.b16 %v298
      %v468 = vunpack.c.l.b16 %v299
      %v469 = vunpack.c.l.b16 %v300
      %v470 = vunpack.c.l.b16 %v301
      %v471 = vunpack.c.l.b16 %v302
      %v472 = vunpack.c.l.b16 %v303
      %v473 = vunpack.c.l.b16 %v304
      %v474 = vunpack.c.l.b16 %v305
      %v475 = vunpack.c.l.b16 %v306
      %v476 = vunpack.c.l.b16 %v307
      %v477 = vunpack.c.l.b16 %v308
      %v478 = vunpack.c.l.b16 %v309
      %v479 = vunpack.c.l.b16 %v310
      %v480 = vunpack.c.l.b16 %v311
      %v481 = vunpack.c.l.b16 %v312
      %v482 = vunpack.c.l.b16 %v313
      %v483 = vunpack.c.l.b16 %v314
      %v484 = vpack.c.b16 %v413, %v412
      %v485 = vpack.c.b16 %v415, %v414
      %v486 = vpack.c.b16 %v417, %v416
      %v487 = vpack.c.b16 %v419, %v418
      %v488 = vpack.c.b16 %v421, %v420
      %v489 = vpack.c.b16 %v423, %v422
      %v490 = vpack.c.b16 %v425, %v424
      %v491 = vpack.c.b16 %v427, %v426
      %v492 = vpack.c.b16 %v429, %v428
      %v493 = vpack.c.b16 %v431, %v430
      %v494 = vpack.c.b16 %v433, %v432
      %v495 = vpack.c.b16 %v435, %v434
      %v496 = vpack.c.b16 %v437, %v436
      %v497 = vpack.c.b16 %v439, %v438
      %v498 = vpack.c.b16 %v441, %v440
      %v499 = vpack.c.b16 %v443, %v442
      %v500 = vpack.c.b16 %v445, %v444
      %v501 = vpack.c.b16 %v447, %v446
      %v502 = vpack.c.b16 %v449, %v448
      %v503 = vpack.c.b16 %v451, %v450
      %v504 = vpack.c.b16 %v453, %v452
      %v505 = vpack.c.b16 %v455, %v454
      %v506 = vpack.c.b16 %v457, %v456
      %v507 = vpack.c.b16 %v459, %v458
      %v508 = vpack.c.b16 %v461, %v460
      %v509 = vpack.c.b16 %v463, %v462
      %v510 = vpack.c.b16 %v465, %v464
      %v511 = vpack.c.b16 %v467, %v466
      %v512 = vpack.c.b16 %v469, %v468
      %v513 = vpack.c.b16 %v471, %v470
      %v514 = vpack.c.b16 %v473, %v472
      %v515 = vpack.c.b16 %v475, %v474
      %v516 = vpack.c.b16 %v477, %v476
      %v517 = vpack.c.b16 %v479, %v478
      %v518 = vpack.c.b16 %v481, %v480
      %v519 = vpack.c.b16 %v483, %v482
      %vm556 = vcmask 523264
      %v558 = vsel %vm556, %v335, 0
      %560 = vmatprep.subr.bf16.mxu0 0
      %561 = vmatpush1.bf16.msra.mxu0 %v484
      %562 = vmatprep.subr.bf16.mxu0 0
      %563 = vmatpush1.bf16.msra.mxu0 %v485
      %564 = vmatprep.subr.bf16.mxu0 0
      %565 = vmatpush1.bf16.msra.mxu0 %v486
      %566 = vmatprep.subr.bf16.mxu0 0
      %567 = vmatpush1.bf16.msra.mxu0 %v487
      %568 = vmatprep.subr.bf16.mxu0 0
      %569 = vmatpush1.bf16.msra.mxu0 %v488
      %570 = vmatprep.subr.bf16.mxu0 0
      %571 = vmatpush1.bf16.msra.mxu0 %v489
      %572 = vmatprep.subr.bf16.mxu0 0
      %573 = vmatpush1.bf16.msra.mxu0 %v490
      %574 = vmatprep.subr.bf16.mxu0 0
      %575 = vmatpush1.bf16.msra.mxu0 %v491
      %576 = vmatprep.subr.bf16.mxu0 0
      %577 = vmatpush1.bf16.msra.mxu0 %v492
      %578 = vmatprep.subr.bf16.mxu0 0
      %579 = vmatpush1.bf16.msra.mxu0 %v493
      %580 = vmatprep.subr.bf16.mxu0 0
      %581 = vmatpush1.bf16.msra.mxu0 %v494
      %582 = vmatprep.subr.bf16.mxu0 0
      %583 = vmatpush1.bf16.msra.mxu0 %v495
      %584 = vmatprep.subr.bf16.mxu0 0
      %585 = vmatpush1.bf16.msra.mxu0 %v496
      %586 = vmatprep.subr.bf16.mxu0 0
      %587 = vmatpush1.bf16.msra.mxu0 %v497
      %588 = vmatprep.subr.bf16.mxu0 0
      %589 = vmatpush1.bf16.msra.mxu0 %v498
      %590 = vmatprep.subr.bf16.mxu0 0
      %591 = vmatpush1.bf16.msra.mxu0 %v499
      %592 = vmatprep.mubr.bf16.mxu0 %v332
      %593 = vmatmul.mubr.bf16.gmra.mrb[0].mxu0 %v331
      %v594 = vpop.f32.mrb[0].mxu0
      %v595 = vadd.f32 0.0, %v594
      %v596 = vpop.f32.mrb[0].mxu0
      %v597 = vpop.f32.mrb[0].mxu0
      %v598 = vadd.f32 0.0, %v597
      %v599 = vpop.f32.mrb[0].mxu0
      %600 = vdwg.mxu0
      %601 = vmatprep.subr.bf16.mxu0 0
      %602 = vmatpush1.bf16.msra.mxu0 %v500
      %603 = vmatprep.subr.bf16.mxu0 0
      %604 = vmatpush1.bf16.msra.mxu0 %v501
      %605 = vmatprep.subr.bf16.mxu0 0
      %606 = vmatpush1.bf16.msra.mxu0 %v502
      %607 = vmatprep.subr.bf16.mxu0 0
      %608 = vmatpush1.bf16.msra.mxu0 %v503
      %609 = vmatprep.subr.bf16.mxu0 0
      %610 = vmatpush1.bf16.msra.mxu0 %v504
      %611 = vmatprep.subr.bf16.mxu0 0
      %612 = vmatpush1.bf16.msra.mxu0 %v505
      %613 = vmatprep.subr.bf16.mxu0 0
      %614 = vmatpush1.bf16.msra.mxu0 %v506
      %615 = vmatprep.subr.bf16.mxu0 0
      %616 = vmatpush1.bf16.msra.mxu0 %v507
      %617 = vmatprep.subr.bf16.mxu0 0
      %618 = vmatpush1.bf16.msra.mxu0 %v508
      %619 = vmatprep.subr.bf16.mxu0 0
      %620 = vmatpush1.bf16.msra.mxu0 %v509
      %621 = vmatprep.subr.bf16.mxu0 0
      %622 = vmatpush1.bf16.msra.mxu0 %v510
      %623 = vmatprep.subr.bf16.mxu0 0
      %624 = vmatpush1.bf16.msra.mxu0 %v511
      %625 = vmatprep.subr.bf16.mxu0 0
      %626 = vmatpush1.bf16.msra.mxu0 %v512
      %627 = vmatprep.subr.bf16.mxu0 0
      %628 = vmatpush1.bf16.msra.mxu0 %v513
      %629 = vmatprep.subr.bf16.mxu0 0
      %630 = vmatpush1.bf16.msra.mxu0 %v514
      %631 = vmatprep.subr.bf16.mxu0 0
      %632 = vmatpush1.bf16.msra.mxu0 %v515
      %633 = vmatprep.mubr.bf16.mxu0 %v334
      %634 = vmatmul.mubr.bf16.gmra.mrb[0].mxu0 %v333
      %v635 = vpop.f32.mrb[0].mxu0
      %v636 = vadd.f32 %v595, %v635
      %v637 = vpop.f32.mrb[0].mxu0
      %v638 = vpop.f32.mrb[0].mxu0
      %v639 = vadd.f32 %v598, %v638
      %v640 = vpop.f32.mrb[0].mxu0
      %641 = vdwg.mxu0
      %642 = vmatprep.subr.bf16.mxu0 0
      %643 = vmatpush1.bf16.msra.mxu0 %v516
      %644 = vmatprep.subr.bf16.mxu0 0
      %645 = vmatpush1.bf16.msra.mxu0 %v517
      %646 = vmatprep.subr.bf16.mxu0 0
      %647 = vmatpush1.bf16.msra.mxu0 %v518
      %648 = vmatprep.subr.bf16.mxu0 0
      %649 = vmatpush1.bf16.msra.mxu0 %v519
      %650 = vmatprep.subr.bf16.mxu0 0
      %651 = vmatpush1.bf16.msra.mxu0 0
      %652 = vmatprep.subr.bf16.mxu0 0
      %653 = vmatpush1.bf16.msra.mxu0 0
      %654 = vmatprep.subr.bf16.mxu0 0
      %655 = vmatpush1.bf16.msra.mxu0 0
      %656 = vmatprep.subr.bf16.mxu0 0
      %657 = vmatpush1.bf16.msra.mxu0 0
      %658 = vmatprep.subr.bf16.mxu0 0
      %659 = vmatpush1.bf16.msra.mxu0 0
      %660 = vmatprep.subr.bf16.mxu0 0
      %661 = vmatpush1.bf16.msra.mxu0 0
      %662 = vmatprep.subr.bf16.mxu0 0
      %663 = vmatpush1.bf16.msra.mxu0 0
      %664 = vmatprep.subr.bf16.mxu0 0
      %665 = vmatpush1.bf16.msra.mxu0 0
      %666 = vmatprep.subr.bf16.mxu0 0
      %667 = vmatpush1.bf16.msra.mxu0 0
      %668 = vmatprep.subr.bf16.mxu0 0
      %669 = vmatpush1.bf16.msra.mxu0 0
      %670 = vmatprep.subr.bf16.mxu0 0
      %671 = vmatpush1.bf16.msra.mxu0 0
      %672 = vmatprep.subr.bf16.mxu0 0
      %673 = vmatpush1.bf16.msra.mxu0 0
      %674 = vmatprep.mubr.bf16.mxu0 0
      %675 = vmatmul.mubr.bf16.gmra.mrb[0].mxu0 %v558
      %v676 = vpop.f32.mrb[0].mxu0
      %v677 = vadd.f32 %v636, %v676
      %v678 = vpop.f32.mrb[0].mxu0
      %v679 = vpop.f32.mrb[0].mxu0
      %v680 = vadd.f32 %v639, %v679
      %v681 = vpop.f32.mrb[0].mxu0
      %682 = vdwg.mxu0
      %v683 = vadd.f32 %v235, %v677
      %v684 = vadd.f32 %v236, %v680
      %vm685 = vcmask 261120
      %686 = vst.msk [vmem:[#allocation2] sm:$0xff] %vm685, %v683
      %687 = vst.msk [vmem:[#allocation2 + $0x8] sm:$0xff] %vm685, %v684
      // Predicated region
      $region37: #{deeplabv3_forward.11} parent=31 // pred_check
        %p688 = pneg %p228
      $region38: #{deeplabv3_forward.11} parent=31 // pred_check_branch
        %690 = sbr.rel (%p688) target = $region40
      $region39: #{deeplabv3_forward.11} parent=31 // pred_region
        %v691 = vld [vmem:[#allocation2] sm:$0xff]
        %v692 = vld [vmem:[#allocation2 + $0x8] sm:$0xff]
        %v693 = vld [vmem:[%s2] sm:$0x1]
        %v695 = vlaneseq
        %v696 = vshrl.u32 %v695, 7
        %v697 = vsub.s32 0, %v696
        %v698 = vrot.slane %v693, %v697
        %v700 = vadd.f32 %v691, %v698
        %v701 = vadd.f32 %v692, %v698
        %v702 = vmax.f32 %v700, 0.0
        %v703 = vmax.f32 %v701, 0.0
        %v704 = vpack.c.bf16 %v703, %v702
        %v706 = vunpack.c.l.b16 %v704
        %v707 = vunpack.c.h.b16 %v704
        %v708 = vpack.c.b16 %v706, %v706
        %v709 = vpack.c.b16 %v707, %v707
        %vm712 = vcmask 257024
        %713 = vst.msk [vmem:[%s225] sm:$0xf] %vm712, %v708
        %714 = vst.msk [vmem:[%s225 + $0x4] sm:$0xf] %vm712, %v709
      $region40: #{deeplabv3_forward.11} parent=31 // pred_fallthru
        _
      %s715 = smul.u32 2, %s18
      %p716 = scmp.lt.s32.totalorder %s715, 3
      %s717 = scalar_select %p716, %s715, 3
      %s718 = smul.addr %s717, 4
      %s719 = scalar_lea.vmem %s3, %s718
      // Predicated region
      $region41: #{deeplabv3_forward.11} parent=31 // pred_check
        %p720 = pneg %p119
      $region42: #{deeplabv3_forward.11} parent=31 // pred_check_branch
        %722 = sbr.rel (%p720) target = $region44
      $region43: #{deeplabv3_forward.11} parent=31 // pred_region
        %s723 = smul.u32 2, %s18
      $region44: #{deeplabv3_forward.11} parent=31 // pred_fallthru
        _
    $region32: #{deeplabv3_forward.11} parent=5 // pred_fallthru
      _
    %p724 = scmp.le.s32.totalorder 2, %s9
    // Predicated region
    $region45: #{deeplabv3_forward.11} parent=5 // pred_check
      %p725 = pneg %p724
    $region46: #{deeplabv3_forward.11} parent=5 // pred_check_branch
      %727 = sbr.rel (%p725) target = $region48
    $region47: #{deeplabv3_forward.11} parent=5 // pred_region
      %s728 = ssub.s32 %s9, 2
      // Predicated region
      $region49: #{deeplabv3_forward.11} parent=47 // pred_check
        %p729 = pneg %p125
      $region50: #{deeplabv3_forward.11} parent=47 // pred_check_branch
        %731 = sbr.rel (%p729) target = $region52
      $region51: #{deeplabv3_forward.11} parent=47 // pred_region
        %s732 = smul.u32 2, %s20
        %p733 = scmp.lt.s32.totalorder %s732, 3
        %s734 = scalar_select %p733, %s732, 3
        %s735 = smul.addr %s734, 4
        %s736 = scalar_lea.vmem %s3, %s735
      $region52: #{deeplabv3_forward.11} parent=47 // pred_fallthru
        _
    $region48: #{deeplabv3_forward.11} parent=5 // pred_fallthru
      _
  $region6: #{deeplabv3_forward.11} parent=0 // loop_footer
    %s13 = sadd.s32 1, %s9
  $region7: #{deeplabv3_forward.11} parent=0 // loop_footer_branch
    %8 = sbr.rel target = $region3
  $region8: #{deeplabv3_forward.11} parent=0 // loop_exit
    _

// kernel: deeplabv3_forward.10
$region0: #{deeplabv3_forward.10}
  #allocation0 [shape = 'u32[]', space=smem, size = 0x4, offset = 0x4, fixed_abs, tag = 'smem constant byte address 0x4 - core index']
  #allocation1 [shape = 'u32[144,128]{1,0:T(1,128)}', space=vmem, size = 0x12000, scoped, tag = 'internal scratch']
  #allocation2 [shape = 'f32[16,32]{1,0:T(8,128)}', space=vmem, size = 0x2000, scoped, tag = 'scratch operand']
  %s0 = inlined_call_operand.vmem [shape: bf16[32,64], index: 0, kind: input, shape index: {}]
  %s1 = inlined_call_operand.vmem [shape: bf16[64,32], index: 1, kind: input, shape index: {}]
  %s2 = inlined_call_operand.vmem [shape: f32[1,32], index: 2, kind: input, shape index: {}]
  %s3 = inlined_call_operand.vmem [shape: bf16[32,32], index: 3, kind: output, shape index: {}]
  %s4 = sld [smem:[#allocation0]]
  $region53: #{deeplabv3_forward.10} parent=0
    _
  %s6 = ssub.s32 1, %s4
  %s7 = scalar_select 0, %s6, %s4
  loop: start=0, step=1, limit=4
  $region2: #{deeplabv3_forward.10} parent=0 // loop_pre_header
    _
  $region3: #{deeplabv3_forward.10} parent=0 // loop_header
    %s9 = sphi 0, %s13
    %p10 = scmp.ge.s32.totalorder %s9, 4
    %s16 = sphi 0, %s28
    %s17 = sphi 0, %s24
    %s18 = sphi 0, %s16
    %s19 = sphi 0, %s17
    %s20 = sphi 0, %s18
    %s21 = sphi 0, %s19
    %s33 = sphi 0, %s35
    %s36 = sphi 0, %s33
    %s37 = sphi 0, %s36
    %s53 = sphi 0, %s37
    %s59 = sphi 0, %s61
    %s62 = sphi 0, %s59
    %s63 = sphi 0, %s62
    %s79 = sphi 0, %s63
    %s83 = sphi 0, %s83
    %s85 = sphi 0, %s83
    %s86 = sphi 0, %s85
    %s100 = sphi 0, %s86
    %s106 = sphi 0, %s108
    %s109 = sphi 0, %s106
    %s110 = sphi 0, %s109
    %s126 = sphi 0, %s110
  $region4: #{deeplabv3_forward.10} parent=0 // loop_header_branch
    %12 = sbr.rel (%p10) target = $region8
  $region5: #{deeplabv3_forward.10} parent=0 // loop_body
    %s14 = ssub.s32 %s9, 1
    %s15 = ssub.s32 %s9, 2
    %s22 = sadd.s32 1, %s17
    %p23 = scmp.ge.s32.totalorder %s22, 1
    %s24 = scalar_select %p23, 0, %s22
    %s25 = sadd.s32 1, %s16
    %s26 = scalar_select %p23, %s25, %s16
    %p27 = scmp.ge.s32.totalorder %s26, 2
    %s28 = scalar_select %p27, 0, %s26
    %s29 = ssub.s32 %s16, %s28
    %s30 = ssub.s32 %s17, %s24
    %s31 = sor.u32 %s29, %s30
    %p32 = scmp.eq.s32.totalorder %s31, 0
    %s34 = sadd.s32 %s33, 1
    %s35 = scalar_select %p32, %s33, %s34
    %p38 = pneg %p32
    %p39 = scmp.eq.s32.totalorder %s9, 1
    %p40 = por %p38, %p39
    %p41 = scmp.ne.s32.totalorder %s33, %s36
    %p42 = scmp.eq.s32.totalorder %s9, 0
    %p43 = por %p41, %p42
    %p44 = scmp.ne.s32.totalorder %s33, %s36
    %p45 = scmp.eq.s32.totalorder %s14, 1
    %p46 = por %p44, %p45
    %p47 = scmp.ne.s32.totalorder %s36, %s37
    %p48 = scmp.eq.s32.totalorder %s14, 0
    %p49 = por %p47, %p48
    %p50 = scmp.ne.s32.totalorder %s36, %s37
    %p51 = scmp.eq.s32.totalorder %s15, 1
    %p52 = por %p50, %p51
    %p54 = scmp.ne.s32.totalorder %s37, %s53
    %p55 = scmp.eq.s32.totalorder %s15, 0
    %p56 = por %p54, %p55
    %s57 = ssub.s32 %s17, %s24
    %p58 = scmp.eq.s32.totalorder %s57, 0
    %s60 = sadd.s32 %s59, 1
    %s61 = scalar_select %p58, %s59, %s60
    %p64 = pneg %p58
    %p65 = scmp.eq.s32.totalorder %s9, 1
    %p66 = por %p64, %p65
    %p67 = scmp.ne.s32.totalorder %s59, %s62
    %p68 = scmp.eq.s32.totalorder %s9, 0
    %p69 = por %p67, %p68
    %p70 = scmp.ne.s32.totalorder %s59, %s62
    %p71 = scmp.eq.s32.totalorder %s14, 1
    %p72 = por %p70, %p71
    %p73 = scmp.ne.s32.totalorder %s62, %s63
    %p74 = scmp.eq.s32.totalorder %s14, 0
    %p75 = por %p73, %p74
    %p76 = scmp.ne.s32.totalorder %s62, %s63
    %p77 = scmp.eq.s32.totalorder %s15, 1
    %p78 = por %p76, %p77
    %p80 = scmp.ne.s32.totalorder %s63, %s79
    %p81 = scmp.eq.s32.totalorder %s15, 0
    %p82 = por %p80, %p81
    %s84 = sadd.s32 %s83, 1
    %p87 = scmp.eq.s32.totalorder %s9, 1
    %p88 = scmp.ne.s32.totalorder %s83, %s85
    %p89 = scmp.eq.s32.totalorder %s9, 0
    %p90 = por %p88, %p89
    %p91 = scmp.ne.s32.totalorder %s83, %s85
    %p92 = scmp.eq.s32.totalorder %s14, 1
    %p93 = por %p91, %p92
    %p94 = scmp.ne.s32.totalorder %s85, %s86
    %p95 = scmp.eq.s32.totalorder %s14, 0
    %p96 = por %p94, %p95
    %p97 = scmp.ne.s32.totalorder %s85, %s86
    %p98 = scmp.eq.s32.totalorder %s15, 1
    %p99 = por %p97, %p98
    %p101 = scmp.ne.s32.totalorder %s86, %s100
    %p102 = scmp.eq.s32.totalorder %s15, 0
    %p103 = por %p101, %p102
    %s104 = ssub.s32 %s16, %s28
    %p105 = scmp.eq.s32.totalorder %s104, 0
    %s107 = sadd.s32 %s106, 1
    %s108 = scalar_select %p105, %s106, %s107
    %p111 = pneg %p105
    %p112 = scmp.eq.s32.totalorder %s9, 1
    %p113 = por %p111, %p112
    %p114 = scmp.ne.s32.totalorder %s106, %s109
    %p115 = scmp.eq.s32.totalorder %s9, 0
    %p116 = por %p114, %p115
    %p117 = scmp.ne.s32.totalorder %s106, %s109
    %p118 = scmp.eq.s32.totalorder %s14, 1
    %p119 = por %p117, %p118
    %p120 = scmp.ne.s32.totalorder %s109, %s110
    %p121 = scmp.eq.s32.totalorder %s14, 0
    %p122 = por %p120, %p121
    %p123 = scmp.ne.s32.totalorder %s109, %s110
    %p124 = scmp.eq.s32.totalorder %s15, 1
    %p125 = por %p123, %p124
    %p127 = scmp.ne.s32.totalorder %s110, %s126
    %p128 = scmp.eq.s32.totalorder %s15, 0
    %p129 = por %p127, %p128
    %p130 = scmp.le.s32.totalorder 1, %s9
    %p131 = scmp.lt.s32.totalorder %s9, 3
    %p132 = pnand %p130, %p131
    %p133 = pneg %p132
    // Predicated region
    $region9: #{deeplabv3_forward.10} parent=5 // pred_check
      _
    $region10: #{deeplabv3_forward.10} parent=5 // pred_check_branch
      %135 = sbr.rel (%p132) target = $region12
    $region11: #{deeplabv3_forward.10} parent=5 // pred_region
      %s136 = ssub.s32 %s9, 1
      // Predicated region
      $region13: #{deeplabv3_forward.10} parent=11 // pred_check
        %p137 = pneg %p75
      $region14: #{deeplabv3_forward.10} parent=11 // pred_check_branch
        %139 = sbr.rel (%p137) target = $region16
      $region15: #{deeplabv3_forward.10} parent=11 // pred_region
        %s140 = smul.u32 8, %s19
        %p141 = scmp.lt.s32.totalorder %s140, 7
        %s142 = scalar_select %p141, %s140, 7
        %s143 = smul.addr %s142, 4
        %s144 = scalar_lea.vmem %s1, %s143
        %s145 = smul.u32 8, %s19
      $region16: #{deeplabv3_forward.10} parent=11 // pred_fallthru
        _
      // Predicated region
      $region17: #{deeplabv3_forward.10} parent=11 // pred_check
        %p146 = pneg %p96
      $region18: #{deeplabv3_forward.10} parent=11 // pred_check_branch
        %148 = sbr.rel (%p146) target = $region20
      $region19: #{deeplabv3_forward.10} parent=11 // pred_region
        _
      $region20: #{deeplabv3_forward.10} parent=11 // pred_fallthru
        _
    $region12: #{deeplabv3_forward.10} parent=5 // pred_fallthru
      _
    %p149 = scmp.lt.s32.totalorder %s9, 2
    // Predicated region
    $region21: #{deeplabv3_forward.10} parent=5 // pred_check
      %p150 = pneg %p149
    $region22: #{deeplabv3_forward.10} parent=5 // pred_check_branch
      %152 = sbr.rel (%p150) target = $region24
    $region23: #{deeplabv3_forward.10} parent=5 // pred_region
      // Predicated region
      $region25: #{deeplabv3_forward.10} parent=23 // pred_check
        %p153 = pneg %p43
      $region26: #{deeplabv3_forward.10} parent=23 // pred_check_branch
        %155 = sbr.rel (%p153) target = $region28
      $region27: #{deeplabv3_forward.10} parent=23 // pred_region
        %s156 = smul.u32 2, %s16
        %p157 = scmp.lt.s32.totalorder %s156, 3
        %s158 = scalar_select %p157, %s156, 3
        %p159 = scmp.lt.s32.totalorder %s17, 0
        %s160 = scalar_select %p159, %s17, 0
        %s161 = sadd.s32 %s160, %s158
        %s162 = smul.addr %s161, 4
        %s163 = scalar_lea.vmem %s0, %s162
        %s164 = smul.u32 2, %s16
      $region28: #{deeplabv3_forward.10} parent=23 // pred_fallthru
        _
    $region24: #{deeplabv3_forward.10} parent=5 // pred_fallthru
      _
    %p165 = scmp.le.s32.totalorder 1, %s9
    %p166 = scmp.lt.s32.totalorder %s9, 3
    %p167 = pnand %p165, %p166
    %p168 = pneg %p167
    // Predicated region
    $region29: #{deeplabv3_forward.10} parent=5 // pred_check
      _
    $region30: #{deeplabv3_forward.10} parent=5 // pred_check_branch
      %170 = sbr.rel (%p167) target = $region32
    $region31: #{deeplabv3_forward.10} parent=5 // pred_region
      %s171 = ssub.s32 %s9, 1
      %s172 = smul.u32 2, %s18
      %p173 = scmp.lt.s32.totalorder %s172, 3
      %s174 = scalar_select %p173, %s172, 3
      %p175 = scmp.lt.s32.totalorder %s19, 0
      %s176 = scalar_select %p175, %s19, 0
      %s177 = sadd.s32 %s176, %s174
      %s178 = smul.addr %s177, 4
      %s179 = scalar_lea.vmem %s0, %s178
      %p180 = pneg %p49
      %p181 = pneg %p46
      %s182 = smul.u32 8, %s19
      %p183 = scmp.lt.s32.totalorder %s182, 7
      %s184 = scalar_select %p183, %s182, 7
      %s185 = smul.addr %s184, 4
      %s186 = scalar_lea.vmem %s1, %s185
      %p187 = pneg %p75
      %p188 = pneg %p72
      %p189 = pneg %p96
      %p190 = pneg %p93
      %p191 = pneg %p122
      %p192 = pneg %p119
      %s193 = smul.u32 2, %s18
      %p194 = scmp.lt.s32.totalorder %s193, 3
      %s195 = scalar_select %p194, %s193, 3
      %s196 = smul.addr %s195, 4
      %s197 = scalar_lea.vmem %s3, %s196
      %s198 = smul.u32 2, %s18
      %p199 = scmp.lt.s32.totalorder %s198, 3
      %s200 = scalar_select %p199, %s198, 3
      %p201 = scmp.lt.s32.totalorder %s19, 0
      %s202 = scalar_select %p201, %s19, 0
      %s203 = sadd.s32 %s202, %s200
      %s204 = smul.addr %s203, 4
      %s205 = scalar_lea.vmem %s0, %s204
      %s206 = smul.u32 2, %s18
      %s207 = smul.u32 8, %s19
      %p208 = scmp.lt.s32.totalorder %s207, 7
      %s209 = scalar_select %p208, %s207, 7
      %s210 = smul.addr %s209, 4
      %s211 = scalar_lea.vmem %s1, %s210
      %s212 = smul.u32 8, %s19
      %s213 = smul.u32 2, %s18
      %p214 = scmp.lt.s32.totalorder %s213, 3
      %s215 = scalar_select %p214, %s213, 3
      %s216 = smul.addr %s215, 4
      %s217 = scalar_lea.vmem %s3, %s216
      %s218 = smul.u32 2, %s18
      %p220 = scmp.eq.s32.totalorder %s19, 0
      // Predicated region
      $region33: #{deeplabv3_forward.10} parent=31 // pred_check
        %p221 = pneg %p220
      $region34: #{deeplabv3_forward.10} parent=31 // pred_check_branch
        %223 = sbr.rel (%p221) target = $region36
      $region35: #{deeplabv3_forward.10} parent=31 // pred_region
        %vm224 = vcmask 261120
        %225 = vst.msk [vmem:[#allocation2] sm:$0xff] %vm224, 0.0
        %226 = vst.msk [vmem:[#allocation2 + $0x8] sm:$0xff] %vm224, 0.0
      $region36: #{deeplabv3_forward.10} parent=31 // pred_fallthru
        _
      %v227 = vld [vmem:[#allocation2] sm:$0xff]
      %v228 = vld [vmem:[#allocation2 + $0x8] sm:$0xff]
      %v229 = vld [vmem:[%s205] sm:$0xf]
      %v230 = vld [vmem:[%s205 + $0x4] sm:$0xf]
      %v231 = vld [vmem:[%s211] sm:$0xf]
      %v232 = vld [vmem:[%s211 + $0x4] sm:$0xf]
      %v233 = vld [vmem:[%s211 + $0x8] sm:$0xf]
      %v234 = vld [vmem:[%s211 + $0xc] sm:$0xf]
      %v235 = vld [vmem:[%s211 + $0x10] sm:$0xf]
      %v236 = vld [vmem:[%s211 + $0x14] sm:$0xf]
      %v237 = vld [vmem:[%s211 + $0x18] sm:$0xf]
      %v238 = vld [vmem:[%s211 + $0x1c] sm:$0xf]
      %v241 = vunpack.c.l.b16 %v229
      %v242 = vunpack.c.l.b16 %v230
      %v243 = vpack.c.b16 %v242, %v241
      %v252 = vunpack.c.l.b16 %v231
      %v253 = vunpack.c.l.b16 %v232
      %v254 = vunpack.c.l.b16 %v233
      %v255 = vunpack.c.l.b16 %v234
      %v256 = vunpack.c.l.b16 %v235
      %v257 = vunpack.c.l.b16 %v236
      %v258 = vunpack.c.l.b16 %v237
      %v259 = vunpack.c.l.b16 %v238
      %v260 = vpack.c.b16 %v253, %v252
      %v261 = vpack.c.b16 %v255, %v254
      %v262 = vpack.c.b16 %v257, %v256
      %v263 = vpack.c.b16 %v259, %v258
      %vm268 = vcmask 523264
      %v270 = vsel %vm268, %v243, 0
      %272 = vmatprep.subr.bf16.mxu0 0
      %273 = vmatpush1.bf16.msra.mxu0 %v260
      %274 = vmatprep.subr.bf16.mxu0 0
      %275 = vmatpush1.bf16.msra.mxu0 %v261
      %276 = vmatprep.subr.bf16.mxu0 0
      %277 = vmatpush1.bf16.msra.mxu0 %v262
      %278 = vmatprep.subr.bf16.mxu0 0
      %279 = vmatpush1.bf16.msra.mxu0 %v263
      %280 = vmatprep.subr.bf16.mxu0 0
      %281 = vmatpush1.bf16.msra.mxu0 0
      %282 = vmatprep.subr.bf16.mxu0 0
      %283 = vmatpush1.bf16.msra.mxu0 0
      %284 = vmatprep.subr.bf16.mxu0 0
      %285 = vmatpush1.bf16.msra.mxu0 0
      %286 = vmatprep.subr.bf16.mxu0 0
      %287 = vmatpush1.bf16.msra.mxu0 0
      %288 = vmatprep.subr.bf16.mxu0 0
      %289 = vmatpush1.bf16.msra.mxu0 0
      %290 = vmatprep.subr.bf16.mxu0 0
      %291 = vmatpush1.bf16.msra.mxu0 0
      %292 = vmatprep.subr.bf16.mxu0 0
      %293 = vmatpush1.bf16.msra.mxu0 0
      %294 = vmatprep.subr.bf16.mxu0 0
      %295 = vmatpush1.bf16.msra.mxu0 0
      %296 = vmatprep.subr.bf16.mxu0 0
      %297 = vmatpush1.bf16.msra.mxu0 0
      %298 = vmatprep.subr.bf16.mxu0 0
      %299 = vmatpush1.bf16.msra.mxu0 0
      %300 = vmatprep.subr.bf16.mxu0 0
      %301 = vmatpush1.bf16.msra.mxu0 0
      %302 = vmatprep.subr.bf16.mxu0 0
      %303 = vmatpush1.bf16.msra.mxu0 0
      %304 = vmatprep.mubr.bf16.mxu0 0
      %305 = vmatmul.mubr.bf16.gmra.mrb[0].mxu0 %v270
      %v306 = vpop.f32.mrb[0].mxu0
      %v307 = vadd.f32 0.0, %v306
      %v308 = vpop.f32.mrb[0].mxu0
      %v309 = vpop.f32.mrb[0].mxu0
      %v310 = vadd.f32 0.0, %v309
      %v311 = vpop.f32.mrb[0].mxu0
      %312 = vdwg.mxu0
      %v313 = vadd.f32 %v227, %v307
      %v314 = vadd.f32 %v228, %v310
      %vm315 = vcmask 261120
      %316 = vst.msk [vmem:[#allocation2] sm:$0xff] %vm315, %v313
      %317 = vst.msk [vmem:[#allocation2 + $0x8] sm:$0xff] %vm315, %v314
      // Predicated region
      $region37: #{deeplabv3_forward.10} parent=31 // pred_check
        %p318 = pneg %p220
      $region38: #{deeplabv3_forward.10} parent=31 // pred_check_branch
        %320 = sbr.rel (%p318) target = $region40
      $region39: #{deeplabv3_forward.10} parent=31 // pred_region
        %v321 = vld [vmem:[#allocation2] sm:$0xff]
        %v322 = vld [vmem:[#allocation2 + $0x8] sm:$0xff]
        %v323 = vld [vmem:[%s2] sm:$0x1]
        %v325 = vlaneseq
        %v326 = vshrl.u32 %v325, 7
        %v327 = vsub.s32 0, %v326
        %v328 = vrot.slane %v323, %v327
        %v330 = vadd.f32 %v321, %v328
        %v331 = vadd.f32 %v322, %v328
        %v332 = vmax.f32 %v330, 0.0
        %v333 = vmax.f32 %v331, 0.0
        %v334 = vpack.c.bf16 %v333, %v332
        %v336 = vunpack.c.l.b16 %v334
        %v337 = vunpack.c.h.b16 %v334
        %v338 = vpack.c.b16 %v336, %v336
        %v339 = vpack.c.b16 %v337, %v337
        %vm342 = vcmask 257024
        %343 = vst.msk [vmem:[%s217] sm:$0xf] %vm342, %v338
        %344 = vst.msk [vmem:[%s217 + $0x4] sm:$0xf] %vm342, %v339
      $region40: #{deeplabv3_forward.10} parent=31 // pred_fallthru
        _
      %s345 = smul.u32 2, %s18
      %p346 = scmp.lt.s32.totalorder %s345, 3
      %s347 = scalar_select %p346, %s345, 3
      %s348 = smul.addr %s347, 4
      %s349 = scalar_lea.vmem %s3, %s348
      // Predicated region
      $region41: #{deeplabv3_forward.10} parent=31 // pred_check
        %p350 = pneg %p119
      $region42: #{deeplabv3_forward.10} parent=31 // pred_check_branch
        %352 = sbr.rel (%p350) target = $region44
      $region43: #{deeplabv3_forward.10} parent=31 // pred_region
        %s353 = smul.u32 2, %s18
      $region44: #{deeplabv3_forward.10} parent=31 // pred_fallthru
        _
    $region32: #{deeplabv3_forward.10} parent=5 // pred_fallthru
      _
    %p354 = scmp.le.s32.totalorder 2, %s9
    // Predicated region
    $region45: #{deeplabv3_forward.10} parent=5 // pred_check
      %p355 = pneg %p354
    $region46: #{deeplabv3_forward.10} parent=5 // pred_check_branch
      %357 = sbr.rel (%p355) target = $region48
    $region47: #{deeplabv3_forward.10} parent=5 // pred_region
      %s358 = ssub.s32 %s9, 2
      // Predicated region
      $region49: #{deeplabv3_forward.10} parent=47 // pred_check
        %p359 = pneg %p125
      $region50: #{deeplabv3_forward.10} parent=47 // pred_check_branch
        %361 = sbr.rel (%p359) target = $region52
      $region51: #{deeplabv3_forward.10} parent=47 // pred_region
        %s362 = smul.u32 2, %s20
        %p363 = scmp.lt.s32.totalorder %s362, 3
        %s364 = scalar_select %p363, %s362, 3
        %s365 = smul.addr %s364, 4
        %s366 = scalar_lea.vmem %s3, %s365
      $region52: #{deeplabv3_forward.10} parent=47 // pred_fallthru
        _
    $region48: #{deeplabv3_forward.10} parent=5 // pred_fallthru
      _
  $region6: #{deeplabv3_forward.10} parent=0 // loop_footer
    %s13 = sadd.s32 1, %s9
  $region7: #{deeplabv3_forward.10} parent=0 // loop_footer_branch
    %8 = sbr.rel target = $region3
  $region8: #{deeplabv3_forward.10} parent=0 // loop_exit
    _

// kernel: deeplabv3_forward.15
$region0: #{deeplabv3_forward.15}
  #allocation0 [shape = 'u32[]', space=smem, size = 0x4, offset = 0x4, fixed_abs, tag = 'smem constant byte address 0x4 - core index']
  #allocation1 [shape = 'u32[144,128]{1,0:T(1,128)}', space=vmem, size = 0x12000, scoped, tag = 'internal scratch']
  %s0 = inlined_call_operand.vmem [shape: f32[12,4,4], index: 0, kind: input, shape index: {}]
  %s1 = inlined_call_operand.vmem [shape: f32[16,4], index: 1, kind: input, shape index: {}]
  %s2 = inlined_call_operand.vmem [shape: f32[4,16], index: 2, kind: input, shape index: {}]
  %s3 = inlined_call_operand.hbm [shape: f32[12,16,16], index: 3, kind: output, shape index: {}]
  %s4 = sld [smem:[#allocation0]]
  $region45: #{deeplabv3_forward.15} parent=0
    _
  %s6 = ssub.s32 1, %s4
  %s7 = scalar_select 0, %s6, %s4
  $region1: #{deeplabv3_forward.15} parent=0
    #allocation2 [shape = 'u8[16384]{0}', space=vmem, size = 0x4000, scoped, tag = 'output window, operand 0']
    #allocation3 [shape = 's32[2]{0}', space=sflag, size = 0x8, scoped, tag = 'scoped memory for deeplabv3_forward.15']
    %8 = vsyncpa [#allocation3], 0
    %s9 = scalar_lea.sflag [#allocation3], 1
    %10 = vsyncpa %s9, 0
    loop: start=0, step=1, limit=14
    $region2: #{deeplabv3_forward.15} parent=1 // loop_pre_header
      _
    $region3: #{deeplabv3_forward.15} parent=1 // loop_header
      %s12 = sphi 0, %s16
      %p13 = scmp.ge.s32.totalorder %s12, 14
      %s22 = sphi 0, %s24
      %s25 = sphi 0, %s22
      %s26 = sphi 0, %s25
      %s42 = sphi 0, %s26
      %s46 = sphi 0, %s46
      %s48 = sphi 0, %s46
      %s49 = sphi 0, %s48
      %s63 = sphi 0, %s49
      %s67 = sphi 0, %s67
      %s69 = sphi 0, %s67
      %s70 = sphi 0, %s69
      %s84 = sphi 0, %s70
      %s90 = sphi 0, %s92
      %s93 = sphi 0, %s90
      %s94 = sphi 0, %s93
      %s110 = sphi 0, %s94
    $region4: #{deeplabv3_forward.15} parent=1 // loop_header_branch
      %15 = sbr.rel (%p13) target = $region8
    $region5: #{deeplabv3_forward.15} parent=1 // loop_body
      %s17 = ssub.s32 %s12, 1
      %s18 = ssub.s32 %s12, 2
      %s19 = sadd.s32 %s12, 1
      %s20 = ssub.s32 %s12, %s19
      %p21 = scmp.eq.s32.totalorder %s20, 0
      %s23 = sadd.s32 %s22, 1
      %s24 = scalar_select %p21, %s22, %s23
      %p27 = pneg %p21
      %p28 = scmp.eq.s32.totalorder %s12, 11
      %p29 = por %p27, %p28
      %p30 = scmp.ne.s32.totalorder %s22, %s25
      %p31 = scmp.eq.s32.totalorder %s12, 0
      %p32 = por %p30, %p31
      %p33 = scmp.ne.s32.totalorder %s22, %s25
      %p34 = scmp.eq.s32.totalorder %s17, 11
      %p35 = por %p33, %p34
      %p36 = scmp.ne.s32.totalorder %s25, %s26
      %p37 = scmp.eq.s32.totalorder %s17, 0
      %p38 = por %p36, %p37
      %p39 = scmp.ne.s32.totalorder %s25, %s26
      %p40 = scmp.eq.s32.totalorder %s18, 11
      %p41 = por %p39, %p40
      %p43 = scmp.ne.s32.totalorder %s26, %s42
      %p44 = scmp.eq.s32.totalorder %s18, 0
      %p45 = por %p43, %p44
      %s47 = sadd.s32 %s46, 1
      %p50 = scmp.eq.s32.totalorder %s12, 11
      %p51 = scmp.ne.s32.totalorder %s46, %s48
      %p52 = scmp.eq.s32.totalorder %s12, 0
      %p53 = por %p51, %p52
      %p54 = scmp.ne.s32.totalorder %s46, %s48
      %p55 = scmp.eq.s32.totalorder %s17, 11
      %p56 = por %p54, %p55
      %p57 = scmp.ne.s32.totalorder %s48, %s49
      %p58 = scmp.eq.s32.totalorder %s17, 0
      %p59 = por %p57, %p58
      %p60 = scmp.ne.s32.totalorder %s48, %s49
      %p61 = scmp.eq.s32.totalorder %s18, 11
      %p62 = por %p60, %p61
      %p64 = scmp.ne.s32.totalorder %s49, %s63
      %p65 = scmp.eq.s32.totalorder %s18, 0
      %p66 = por %p64, %p65
      %s68 = sadd.s32 %s67, 1
      %p71 = scmp.eq.s32.totalorder %s12, 11
      %p72 = scmp.ne.s32.totalorder %s67, %s69
      %p73 = scmp.eq.s32.totalorder %s12, 0
      %p74 = por %p72, %p73
      %p75 = scmp.ne.s32.totalorder %s67, %s69
      %p76 = scmp.eq.s32.totalorder %s17, 11
      %p77 = por %p75, %p76
      %p78 = scmp.ne.s32.totalorder %s69, %s70
      %p79 = scmp.eq.s32.totalorder %s17, 0
      %p80 = por %p78, %p79
      %p81 = scmp.ne.s32.totalorder %s69, %s70
      %p82 = scmp.eq.s32.totalorder %s18, 11
      %p83 = por %p81, %p82
      %p85 = scmp.ne.s32.totalorder %s70, %s84
      %p86 = scmp.eq.s32.totalorder %s18, 0
      %p87 = por %p85, %p86
      %s88 = ssub.s32 %s12, %s19
      %p89 = scmp.eq.s32.totalorder %s88, 0
      %s91 = sadd.s32 %s90, 1
      %s92 = scalar_select %p89, %s90, %s91
      %p95 = pneg %p89
      %p96 = scmp.eq.s32.totalorder %s12, 11
      %p97 = por %p95, %p96
      %p98 = scmp.ne.s32.totalorder %s90, %s93
      %p99 = scmp.eq.s32.totalorder %s12, 0
      %p100 = por %p98, %p99
      %p101 = scmp.ne.s32.totalorder %s90, %s93
      %p102 = scmp.eq.s32.totalorder %s17, 11
      %p103 = por %p101, %p102
      %p104 = scmp.ne.s32.totalorder %s93, %s94
      %p105 = scmp.eq.s32.totalorder %s17, 0
      %p106 = por %p104, %p105
      %p107 = scmp.ne.s32.totalorder %s93, %s94
      %p108 = scmp.eq.s32.totalorder %s18, 11
      %p109 = por %p107, %p108
      %p111 = scmp.ne.s32.totalorder %s94, %s110
      %p112 = scmp.eq.s32.totalorder %s18, 0
      %p113 = por %p111, %p112
      %p114 = scmp.le.s32.totalorder 1, %s12
      %p115 = scmp.lt.s32.totalorder %s12, 13
      %p116 = pnand %p114, %p115
      %p117 = pneg %p116
      // Predicated region
      $region9: #{deeplabv3_forward.15} parent=5 // pred_check
        _
      $region10: #{deeplabv3_forward.15} parent=5 // pred_check_branch
        %119 = sbr.rel (%p116) target = $region12
      $region11: #{deeplabv3_forward.15} parent=5 // pred_region
        %s120 = ssub.s32 %s12, 1
        // Predicated region
        $region13: #{deeplabv3_forward.15} parent=11 // pred_check
          %p121 = pneg %p59
        $region14: #{deeplabv3_forward.15} parent=11 // pred_check_branch
          %123 = sbr.rel (%p121) target = $region16
        $region15: #{deeplabv3_forward.15} parent=11 // pred_region
          _
        $region16: #{deeplabv3_forward.15} parent=11 // pred_fallthru
          _
        // Predicated region
        $region17: #{deeplabv3_forward.15} parent=11 // pred_check
          %p124 = pneg %p80
        $region18: #{deeplabv3_forward.15} parent=11 // pred_check_branch
          %126 = sbr.rel (%p124) target = $region20
        $region19: #{deeplabv3_forward.15} parent=11 // pred_region
          _
        $region20: #{deeplabv3_forward.15} parent=11 // pred_fallthru
          _
      $region12: #{deeplabv3_forward.15} parent=5 // pred_fallthru
        _
      %p127 = scmp.lt.s32.totalorder %s12, 12
      // Predicated region
      $region21: #{deeplabv3_forward.15} parent=5 // pred_check
        %p128 = pneg %p127
      $region22: #{deeplabv3_forward.15} parent=5 // pred_check_branch
        %130 = sbr.rel (%p128) target = $region24
      $region23: #{deeplabv3_forward.15} parent=5 // pred_region
        // Predicated region
        $region25: #{deeplabv3_forward.15} parent=23 // pred_check
          %p131 = pneg %p32
        $region26: #{deeplabv3_forward.15} parent=23 // pred_check_branch
          %133 = sbr.rel (%p131) target = $region28
        $region27: #{deeplabv3_forward.15} parent=23 // pred_region
          %p134 = scmp.lt.s32.totalorder %s12, 11
          %s135 = scalar_select %p134, %s12, 11
          %s136 = smul.addr %s135, 4
          %s137 = scalar_lea.vmem %s0, %s136
        $region28: #{deeplabv3_forward.15} parent=23 // pred_fallthru
          _
      $region24: #{deeplabv3_forward.15} parent=5 // pred_fallthru
        _
      %p138 = scmp.le.s32.totalorder 1, %s12
      %p139 = scmp.lt.s32.totalorder %s12, 13
      %p140 = pnand %p138, %p139
      %p141 = pneg %p140
      // Predicated region
      $region29: #{deeplabv3_forward.15} parent=5 // pred_check
        _
      $region30: #{deeplabv3_forward.15} parent=5 // pred_check_branch
        %143 = sbr.rel (%p140) target = $region32
      $region31: #{deeplabv3_forward.15} parent=5 // pred_region
        %s144 = ssub.s32 %s12, 1
        %p145 = scmp.lt.s32.totalorder %s17, 11
        %s146 = scalar_select %p145, %s17, 11
        %s147 = smul.addr %s146, 4
        %s148 = scalar_lea.vmem %s0, %s147
        %p149 = pneg %p38
        %p150 = pneg %p35
        %p151 = pneg %p59
        %p152 = pneg %p56
        %p153 = pneg %p80
        %p154 = pneg %p77
        %p155 = pneg %p106
        %p156 = pneg %p103
        %s157 = sand.u32 %s93, 1
        %s158 = scalar_lea.sflag [#allocation3], %s157
        %s159 = sand.u32 %s93, 1
        %s160 = smul.addr %s159, 16
        %s161 = scalar_lea.vmem [#allocation2], %s160
        %p162 = scmp.lt.s32.totalorder %s17, 11
        %s163 = scalar_select %p162, %s17, 11
        %s164 = smul.addr %s163, 4
        %s165 = scalar_lea.vmem %s0, %s164
        %v166 = vld [vmem:[%s1] sm:$0xff]
        %v167 = vld [vmem:[%s1 + $0x8] sm:$0xff]
        %v168 = vld [vmem:[%s165] sm:$0xf]
        %vm169 = vcmask 31744
        %v171 = vsel %vm169, %v166, 0
        %v174 = vsel %vm169, %v167, 0
        %vm176 = vcmask 1043456
        %v178 = vsel %vm176, %v168, 0
        %180 = vmatprep.subr.mxu0 0.0
        %181 = vmatpush1.msra.mxu0 %v178
        %182 = vmatprep.subr.mxu0 0.0
        %183 = vmatpush1.msra.mxu0 0.0
        %184 = vmatprep.subr.mxu0 0.0
        %185 = vmatpush1.msra.mxu0 0.0
        %186 = vmatprep.subr.mxu0 0.0
        %187 = vmatpush1.msra.mxu0 0.0
        %188 = vmatprep.subr.mxu0 0.0
        %189 = vmatpush1.msra.mxu0 0.0
        %190 = vmatprep.subr.mxu0 0.0
        %191 = vmatpush1.msra.mxu0 0.0
        %192 = vmatprep.subr.mxu0 0.0
        %193 = vmatpush1.msra.mxu0 0.0
        %194 = vmatprep.subr.mxu0 0.0
        %195 = vmatpush1.msra.mxu0 0.0
        %196 = vmatprep.subr.mxu0 0.0
        %197 = vmatpush1.msra.mxu0 0.0
        %198 = vmatprep.subr.mxu0 0.0
        %199 = vmatpush1.msra.mxu0 0.0
        %200 = vmatprep.subr.mxu0 0.0
        %201 = vmatpush1.msra.mxu0 0.0
        %202 = vmatprep.subr.mxu0 0.0
        %203 = vmatpush1.msra.mxu0 0.0
        %204 = vmatprep.subr.mxu0 0.0
        %205 = vmatpush1.msra.mxu0 0.0
        %206 = vmatprep.subr.mxu0 0.0
        %207 = vmatpush1.msra.mxu0 0.0
        %208 = vmatprep.subr.mxu0 0.0
        %209 = vmatpush1.msra.mxu0 0.0
        %210 = vmatprep.subr.mxu0 0.0
        %211 = vmatpush1.msra.mxu0 0.0
        %212 = vmatprep.subr.mxu0 0.0
        %213 = vmatpush1.msra.mxu0 0.0
        %214 = vmatprep.subr.mxu0 0.0
        %215 = vmatpush1.msra.mxu0 0.0
        %216 = vmatprep.subr.mxu0 0.0
        %217 = vmatpush1.msra.mxu0 0.0
        %218 = vmatprep.subr.mxu0 0.0
        %219 = vmatpush1.msra.mxu0 0.0
        %220 = vmatprep.subr.mxu0 0.0
        %221 = vmatpush1.msra.mxu0 0.0
        %222 = vmatprep.subr.mxu0 0.0
        %223 = vmatpush1.msra.mxu0 0.0
        %224 = vmatprep.subr.mxu0 0.0
        %225 = vmatpush1.msra.mxu0 0.0
        %226 = vmatprep.subr.mxu0 0.0
        %227 = vmatpush1.msra.mxu0 0.0
        %228 = vmatprep.subr.mxu0 0.0
        %229 = vmatpush1.msra.mxu0 0.0
        %230 = vmatprep.subr.mxu0 0.0
        %231 = vmatpush1.msra.mxu0 0.0
        %232 = vmatprep.subr.mxu0 0.0
        %233 = vmatpush1.msra.mxu0 0.0
        %234 = vmatprep.subr.mxu0 0.0
        %235 = vmatpush1.msra.mxu0 0.0
        %236 = vmatprep.subr.mxu0 0.0
        %237 = vmatpush1.msra.mxu0 0.0
        %238 = vmatprep.subr.mxu0 0.0
        %239 = vmatpush1.msra.mxu0 0.0
        %240 = vmatprep.subr.mxu0 0.0
        %241 = vmatpush1.msra.mxu0 0.0
        %242 = vmatprep.subr.mxu0 0.0
        %243 = vmatpush1.msra.mxu0 0.0
        %244 = vmatprep.mubr.f32.mxu0 0.0
        %245 = vmatmul.mubr.f32.gmra.mrb[0].mxu0 %v171
        %v246 = vpop.f32.mrb[0].mxu0
        %v247 = vadd.f32 0.0, %v246
        %v248 = vpop.f32.mrb[0].mxu0
        %249 = vmatprep.mubr.f32.mxu0 0.0
        %250 = vmatmul.mubr.f32.gmra.mrb[0].mxu0 %v174
        %v251 = vpop.f32.mrb[0].mxu0
        %v252 = vadd.f32 0.0, %v251
        %v253 = vpop.f32.mrb[0].mxu0
        %254 = vdwg.mxu0
        %v255 = vld [vmem:[%s2] sm:$0xf]
        %v257 = vsel %vm169, %v247, 0
        %v260 = vsel %vm169, %v252, 0
        %v263 = vsel %vm176, %v255, 0
        %265 = vmatprep.subr.mxu0 0.0
        %266 = vmatpush1.msra.mxu0 %v263
        %267 = vmatprep.subr.mxu0 0.0
        %268 = vmatpush1.msra.mxu0 0.0
        %269 = vmatprep.subr.mxu0 0.0
        %270 = vmatpush1.msra.mxu0 0.0
        %271 = vmatprep.subr.mxu0 0.0
        %272 = vmatpush1.msra.mxu0 0.0
        %273 = vmatprep.subr.mxu0 0.0
        %274 = vmatpush1.msra.mxu0 0.0
        %275 = vmatprep.subr.mxu0 0.0
        %276 = vmatpush1.msra.mxu0 0.0
        %277 = vmatprep.subr.mxu0 0.0
        %278 = vmatpush1.msra.mxu0 0.0
        %279 = vmatprep.subr.mxu0 0.0
        %280 = vmatpush1.msra.mxu0 0.0
        %281 = vmatprep.subr.mxu0 0.0
        %282 = vmatpush1.msra.mxu0 0.0
        %283 = vmatprep.subr.mxu0 0.0
        %284 = vmatpush1.msra.mxu0 0.0
        %285 = vmatprep.subr.mxu0 0.0
        %286 = vmatpush1.msra.mxu0 0.0
        %287 = vmatprep.subr.mxu0 0.0
        %288 = vmatpush1.msra.mxu0 0.0
        %289 = vmatprep.subr.mxu0 0.0
        %290 = vmatpush1.msra.mxu0 0.0
        %291 = vmatprep.subr.mxu0 0.0
        %292 = vmatpush1.msra.mxu0 0.0
        %293 = vmatprep.subr.mxu0 0.0
        %294 = vmatpush1.msra.mxu0 0.0
        %295 = vmatprep.subr.mxu0 0.0
        %296 = vmatpush1.msra.mxu0 0.0
        %297 = vmatprep.subr.mxu0 0.0
        %298 = vmatpush1.msra.mxu0 0.0
        %299 = vmatprep.subr.mxu0 0.0
        %300 = vmatpush1.msra.mxu0 0.0
        %301 = vmatprep.subr.mxu0 0.0
        %302 = vmatpush1.msra.mxu0 0.0
        %303 = vmatprep.subr.mxu0 0.0
        %304 = vmatpush1.msra.mxu0 0.0
        %305 = vmatprep.subr.mxu0 0.0
        %306 = vmatpush1.msra.mxu0 0.0
        %307 = vmatprep.subr.mxu0 0.0
        %308 = vmatpush1.msra.mxu0 0.0
        %309 = vmatprep.subr.mxu0 0.0
        %310 = vmatpush1.msra.mxu0 0.0
        %311 = vmatprep.subr.mxu0 0.0
        %312 = vmatpush1.msra.mxu0 0.0
        %313 = vmatprep.subr.mxu0 0.0
        %314 = vmatpush1.msra.mxu0 0.0
        %315 = vmatprep.subr.mxu0 0.0
        %316 = vmatpush1.msra.mxu0 0.0
        %317 = vmatprep.subr.mxu0 0.0
        %318 = vmatpush1.msra.mxu0 0.0
        %319 = vmatprep.subr.mxu0 0.0
        %320 = vmatpush1.msra.mxu0 0.0
        %321 = vmatprep.subr.mxu0 0.0
        %322 = vmatpush1.msra.mxu0 0.0
        %323 = vmatprep.subr.mxu0 0.0
        %324 = vmatpush1.msra.mxu0 0.0
        %325 = vmatprep.subr.mxu0 0.0
        %326 = vmatpush1.msra.mxu0 0.0
        %327 = vmatprep.subr.mxu0 0.0
        %328 = vmatpush1.msra.mxu0 0.0
        %329 = vmatprep.mubr.f32.mxu0 0.0
        %330 = vmatmul.mubr.f32.gmra.mrb[0].mxu0 %v257
        %v331 = vpop.f32.mrb[0].mxu0
        %v332 = vadd.f32 0.0, %v331
        %v333 = vpop.f32.mrb[0].mxu0
        %334 = vmatprep.mubr.f32.mxu0 0.0
        %335 = vmatmul.mubr.f32.gmra.mrb[0].mxu0 %v260
        %v336 = vpop.f32.mrb[0].mxu0
        %v337 = vadd.f32 0.0, %v336
        %v338 = vpop.f32.mrb[0].mxu0
        %339 = vdwg.mxu0
        %vm340 = vcmask 130048
        %341 = vst.msk [vmem:[%s161] sm:$0xff] %vm340, %v332
        %342 = vst.msk [vmem:[%s161 + $0x8] sm:$0xff] %vm340, %v337
        %s343 = sand.u32 %s93, 1
        %s344 = scalar_lea.sflag [#allocation3], %s343
        %s345 = sand.u32 %s93, 1
        %s346 = smul.addr %s345, 16
        %s347 = scalar_lea.vmem [#allocation2], %s346
        // Predicated region
        $region33: #{deeplabv3_forward.15} parent=31 // pred_check
          %p348 = pneg %p103
        $region34: #{deeplabv3_forward.15} parent=31 // pred_check_branch
          %350 = sbr.rel (%p348) target = $region36
        $region35: #{deeplabv3_forward.15} parent=31 // pred_region
          %s352 = ssub.s32 256, 256
          %353 = vsyncadd %s344, %s352
          %s354 = smul.addr %s17, 2
          %s355 = smul.addr %s354, 128
          %s356 = scalar_lea.hbm %s3, %s355
          %s357 = sshll.u32 %s347, 4
          %s358 = int_to_ptr.vmem [resolvable:$true] %s357
          %363 = dma.vmem_to_hbm [thread:$0]  %s358, 256, %s356, %s344, 128, 128, 8
        $region36: #{deeplabv3_forward.15} parent=31 // pred_fallthru
          _
      $region32: #{deeplabv3_forward.15} parent=5 // pred_fallthru
        _
      %p364 = scmp.le.s32.totalorder 2, %s12
      // Predicated region
      $region37: #{deeplabv3_forward.15} parent=5 // pred_check
        %p365 = pneg %p364
      $region38: #{deeplabv3_forward.15} parent=5 // pred_check_branch
        %367 = sbr.rel (%p365) target = $region40
      $region39: #{deeplabv3_forward.15} parent=5 // pred_region
        %s368 = ssub.s32 %s12, 2
        // Predicated region
        $region41: #{deeplabv3_forward.15} parent=39 // pred_check
          %p369 = pneg %p109
        $region42: #{deeplabv3_forward.15} parent=39 // pred_check_branch
          %371 = sbr.rel (%p369) target = $region44
        $region43: #{deeplabv3_forward.15} parent=39 // pred_region
          %s372 = sand.u32 %s94, 1
          %s373 = scalar_lea.sflag [#allocation3], %s372
          %s374 = sand.u32 %s94, 1
          %s375 = smul.addr %s374, 16
          %s376 = scalar_lea.vmem [#allocation2], %s375
          %377 = dma.done %s373, 256
        $region44: #{deeplabv3_forward.15} parent=39 // pred_fallthru
          _
      $region40: #{deeplabv3_forward.15} parent=5 // pred_fallthru
        _
    $region6: #{deeplabv3_forward.15} parent=1 // loop_footer
      %s16 = sadd.s32 1, %s12
    $region7: #{deeplabv3_forward.15} parent=1 // loop_footer_branch
      %11 = sbr.rel target = $region3
    $region8: #{deeplabv3_forward.15} parent=1 // loop_exit
      _
    %378 = vsyncpa [#allocation3], 1
    %s379 = scalar_lea.sflag [#allocation3], 1
    %380 = vsyncpa %s379, 1

// kernel: deeplabv3_forward.14
$region0: #{deeplabv3_forward.14}
  #allocation0 [shape = 'u32[]', space=smem, size = 0x4, offset = 0x4, fixed_abs, tag = 'smem constant byte address 0x4 - core index']
  #allocation1 [shape = 'u32[144,128]{1,0:T(1,128)}', space=vmem, size = 0x12000, scoped, tag = 'internal scratch']
  %s0 = inlined_call_operand.vmem [shape: bf16[2,16,32], index: 0, kind: input, shape index: {}]
  %s1 = inlined_call_operand.vmem [shape: bf16[2,16,32], index: 1, kind: input, shape index: {}]
  %s2 = inlined_call_operand.vmem [shape: bf16[2,16,32], index: 2, kind: input, shape index: {}]
  %s3 = inlined_call_operand.vmem [shape: bf16[2,16,32], index: 3, kind: input, shape index: {}]
  %s4 = inlined_call_operand.vmem [shape: bf16[4,32,32], index: 4, kind: input, shape index: {}]
  %s5 = inlined_call_operand.vmem [shape: f32[2,1,32], index: 5, kind: input, shape index: {}]
  %s6 = inlined_call_operand.vmem [shape: bf16[32,6], index: 6, kind: input, shape index: {}]
  %s7 = inlined_call_operand.vmem [shape: f32[1,6], index: 7, kind: input, shape index: {}]
  %s8 = inlined_call_operand.vmem [shape: f32[2,16,6], index: 8, kind: output, shape index: {}]
  %s9 = sld [smem:[#allocation0]]
  $region65: #{deeplabv3_forward.14} parent=0
    _
  %s11 = ssub.s32 1, %s9
  %s12 = scalar_select 0, %s11, %s9
  loop: start=0, step=1, limit=4
  $region2: #{deeplabv3_forward.14} parent=0 // loop_pre_header
    _
  $region3: #{deeplabv3_forward.14} parent=0 // loop_header
    %s14 = sphi 0, %s18
    %p15 = scmp.ge.s32.totalorder %s14, 4
    %s21 = sphi 0, %s33
    %s22 = sphi 0, %s29
    %s23 = sphi 0, %s21
    %s24 = sphi 0, %s22
    %s25 = sphi 0, %s23
    %s26 = sphi 0, %s24
    %s38 = sphi 0, %s40
    %s41 = sphi 0, %s38
    %s42 = sphi 0, %s41
    %s58 = sphi 0, %s42
    %s66 = sphi 0, %s68
    %s69 = sphi 0, %s66
    %s70 = sphi 0, %s69
    %s86 = sphi 0, %s70
    %s94 = sphi 0, %s96
    %s97 = sphi 0, %s94
    %s98 = sphi 0, %s97
    %s114 = sphi 0, %s98
    %s122 = sphi 0, %s124
    %s125 = sphi 0, %s122
    %s126 = sphi 0, %s125
    %s142 = sphi 0, %s126
    %s146 = sphi 0, %s146
    %s148 = sphi 0, %s146
    %s149 = sphi 0, %s148
    %s163 = sphi 0, %s149
    %s169 = sphi 0, %s171
    %s172 = sphi 0, %s169
    %s173 = sphi 0, %s172
    %s189 = sphi 0, %s173
    %s193 = sphi 0, %s193
    %s195 = sphi 0, %s193
    %s196 = sphi 0, %s195
    %s210 = sphi 0, %s196
    %s214 = sphi 0, %s214
    %s216 = sphi 0, %s214
    %s217 = sphi 0, %s216
    %s231 = sphi 0, %s217
    %s239 = sphi 0, %s241
    %s242 = sphi 0, %s239
    %s243 = sphi 0, %s242
    %s259 = sphi 0, %s243
  $region4: #{deeplabv3_forward.14} parent=0 // loop_header_branch
    %17 = sbr.rel (%p15) target = $region8
  $region5: #{deeplabv3_forward.14} parent=0 // loop_body
    %s19 = ssub.s32 %s14, 1
    %s20 = ssub.s32 %s14, 2
    %s27 = sadd.s32 1, %s22
    %p28 = scmp.ge.s32.totalorder %s27, 1
    %s29 = scalar_select %p28, 0, %s27
    %s30 = sadd.s32 1, %s21
    %s31 = scalar_select %p28, %s30, %s21
    %p32 = scmp.ge.s32.totalorder %s31, 2
    %s33 = scalar_select %p32, 0, %s31
    %s34 = ssub.s32 %s21, %s33
    %s35 = ssub.s32 %s22, %s29
    %s36 = sor.u32 %s34, %s35
    %p37 = scmp.eq.s32.totalorder %s36, 0
    %s39 = sadd.s32 %s38, 1
    %s40 = scalar_select %p37, %s38, %s39
    %p43 = pneg %p37
    %p44 = scmp.eq.s32.totalorder %s14, 1
    %p45 = por %p43, %p44
    %p46 = scmp.ne.s32.totalorder %s38, %s41
    %p47 = scmp.eq.s32.totalorder %s14, 0
    %p48 = por %p46, %p47
    %p49 = scmp.ne.s32.totalorder %s38, %s41
    %p50 = scmp.eq.s32.totalorder %s19, 1
    %p51 = por %p49, %p50
    %p52 = scmp.ne.s32.totalorder %s41, %s42
    %p53 = scmp.eq.s32.totalorder %s19, 0
    %p54 = por %p52, %p53
    %p55 = scmp.ne.s32.totalorder %s41, %s42
    %p56 = scmp.eq.s32.totalorder %s20, 1
    %p57 = por %p55, %p56
    %p59 = scmp.ne.s32.totalorder %s42, %s58
    %p60 = scmp.eq.s32.totalorder %s20, 0
    %p61 = por %p59, %p60
    %s62 = ssub.s32 %s21, %s33
    %s63 = ssub.s32 %s22, %s29
    %s64 = sor.u32 %s62, %s63
    %p65 = scmp.eq.s32.totalorder %s64, 0
    %s67 = sadd.s32 %s66, 1
    %s68 = scalar_select %p65, %s66, %s67
    %p71 = pneg %p65
    %p72 = scmp.eq.s32.totalorder %s14, 1
    %p73 = por %p71, %p72
    %p74 = scmp.ne.s32.totalorder %s66, %s69
    %p75 = scmp.eq.s32.totalorder %s14, 0
    %p76 = por %p74, %p75
    %p77 = scmp.ne.s32.totalorder %s66, %s69
    %p78 = scmp.eq.s32.totalorder %s19, 1
    %p79 = por %p77, %p78
    %p80 = scmp.ne.s32.totalorder %s69, %s70
    %p81 = scmp.eq.s32.totalorder %s19, 0
    %p82 = por %p80, %p81
    %p83 = scmp.ne.s32.totalorder %s69, %s70
    %p84 = scmp.eq.s32.totalorder %s20, 1
    %p85 = por %p83, %p84
    %p87 = scmp.ne.s32.totalorder %s70, %s86
    %p88 = scmp.eq.s32.totalorder %s20, 0
    %p89 = por %p87, %p88
    %s90 = ssub.s32 %s21, %s33
    %s91 = ssub.s32 %s22, %s29
    %s92 = sor.u32 %s90, %s91
    %p93 = scmp.eq.s32.totalorder %s92, 0
    %s95 = sadd.s32 %s94, 1
    %s96 = scalar_select %p93, %s94, %s95
    %p99 = pneg %p93
    %p100 = scmp.eq.s32.totalorder %s14, 1
    %p101 = por %p99, %p100
    %p102 = scmp.ne.s32.totalorder %s94, %s97
    %p103 = scmp.eq.s32.totalorder %s14, 0
    %p104 = por %p102, %p103
    %p105 = scmp.ne.s32.totalorder %s94, %s97
    %p106 = scmp.eq.s32.totalorder %s19, 1
    %p107 = por %p105, %p106
    %p108 = scmp.ne.s32.totalorder %s97, %s98
    %p109 = scmp.eq.s32.totalorder %s19, 0
    %p110 = por %p108, %p109
    %p111 = scmp.ne.s32.totalorder %s97, %s98
    %p112 = scmp.eq.s32.totalorder %s20, 1
    %p113 = por %p111, %p112
    %p115 = scmp.ne.s32.totalorder %s98, %s114
    %p116 = scmp.eq.s32.totalorder %s20, 0
    %p117 = por %p115, %p116
    %s118 = ssub.s32 %s21, %s33
    %s119 = ssub.s32 %s22, %s29
    %s120 = sor.u32 %s118, %s119
    %p121 = scmp.eq.s32.totalorder %s120, 0
    %s123 = sadd.s32 %s122, 1
    %s124 = scalar_select %p121, %s122, %s123
    %p127 = pneg %p121
    %p128 = scmp.eq.s32.totalorder %s14, 1
    %p129 = por %p127, %p128
    %p130 = scmp.ne.s32.totalorder %s122, %s125
    %p131 = scmp.eq.s32.totalorder %s14, 0
    %p132 = por %p130, %p131
    %p133 = scmp.ne.s32.totalorder %s122, %s125
    %p134 = scmp.eq.s32.totalorder %s19, 1
    %p135 = por %p133, %p134
    %p136 = scmp.ne.s32.totalorder %s125, %s126
    %p137 = scmp.eq.s32.totalorder %s19, 0
    %p138 = por %p136, %p137
    %p139 = scmp.ne.s32.totalorder %s125, %s126
    %p140 = scmp.eq.s32.totalorder %s20, 1
    %p141 = por %p139, %p140
    %p143 = scmp.ne.s32.totalorder %s126, %s142
    %p144 = scmp.eq.s32.totalorder %s20, 0
    %p145 = por %p143, %p144
    %s147 = sadd.s32 %s146, 1
    %p150 = scmp.eq.s32.totalorder %s14, 1
    %p151 = scmp.ne.s32.totalorder %s146, %s148
    %p152 = scmp.eq.s32.totalorder %s14, 0
    %p153 = por %p151, %p152
    %p154 = scmp.ne.s32.totalorder %s146, %s148
    %p155 = scmp.eq.s32.totalorder %s19, 1
    %p156 = por %p154, %p155
    %p157 = scmp.ne.s32.totalorder %s148, %s149
    %p158 = scmp.eq.s32.totalorder %s19, 0
    %p159 = por %p157, %p158
    %p160 = scmp.ne.s32.totalorder %s148, %s149
    %p161 = scmp.eq.s32.totalorder %s20, 1
    %p162 = por %p160, %p161
    %p164 = scmp.ne.s32.totalorder %s149, %s163
    %p165 = scmp.eq.s32.totalorder %s20, 0
    %p166 = por %p164, %p165
    %s167 = ssub.s32 %s21, %s33
    %p168 = scmp.eq.s32.totalorder %s167, 0
    %s170 = sadd.s32 %s169, 1
    %s171 = scalar_select %p168, %s169, %s170
    %p174 = pneg %p168
    %p175 = scmp.eq.s32.totalorder %s14, 1
    %p176 = por %p174, %p175
    %p177 = scmp.ne.s32.totalorder %s169, %s172
    %p178 = scmp.eq.s32.totalorder %s14, 0
    %p179 = por %p177, %p178
    %p180 = scmp.ne.s32.totalorder %s169, %s172
    %p181 = scmp.eq.s32.totalorder %s19, 1
    %p182 = por %p180, %p181
    %p183 = scmp.ne.s32.totalorder %s172, %s173
    %p184 = scmp.eq.s32.totalorder %s19, 0
    %p185 = por %p183, %p184
    %p186 = scmp.ne.s32.totalorder %s172, %s173
    %p187 = scmp.eq.s32.totalorder %s20, 1
    %p188 = por %p186, %p187
    %p190 = scmp.ne.s32.totalorder %s173, %s189
    %p191 = scmp.eq.s32.totalorder %s20, 0
    %p192 = por %p190, %p191
    %s194 = sadd.s32 %s193, 1
    %p197 = scmp.eq.s32.totalorder %s14, 1
    %p198 = scmp.ne.s32.totalorder %s193, %s195
    %p199 = scmp.eq.s32.totalorder %s14, 0
    %p200 = por %p198, %p199
    %p201 = scmp.ne.s32.totalorder %s193, %s195
    %p202 = scmp.eq.s32.totalorder %s19, 1
    %p203 = por %p201, %p202
    %p204 = scmp.ne.s32.totalorder %s195, %s196
    %p205 = scmp.eq.s32.totalorder %s19, 0
    %p206 = por %p204, %p205
    %p207 = scmp.ne.s32.totalorder %s195, %s196
    %p208 = scmp.eq.s32.totalorder %s20, 1
    %p209 = por %p207, %p208
    %p211 = scmp.ne.s32.totalorder %s196, %s210
    %p212 = scmp.eq.s32.totalorder %s20, 0
    %p213 = por %p211, %p212
    %s215 = sadd.s32 %s214, 1
    %p218 = scmp.eq.s32.totalorder %s14, 1
    %p219 = scmp.ne.s32.totalorder %s214, %s216
    %p220 = scmp.eq.s32.totalorder %s14, 0
    %p221 = por %p219, %p220
    %p222 = scmp.ne.s32.totalorder %s214, %s216
    %p223 = scmp.eq.s32.totalorder %s19, 1
    %p224 = por %p222, %p223
    %p225 = scmp.ne.s32.totalorder %s216, %s217
    %p226 = scmp.eq.s32.totalorder %s19, 0
    %p227 = por %p225, %p226
    %p228 = scmp.ne.s32.totalorder %s216, %s217
    %p229 = scmp.eq.s32.totalorder %s20, 1
    %p230 = por %p228, %p229
    %p232 = scmp.ne.s32.totalorder %s217, %s231
    %p233 = scmp.eq.s32.totalorder %s20, 0
    %p234 = por %p232, %p233
    %s235 = ssub.s32 %s21, %s33
    %s236 = ssub.s32 %s22, %s29
    %s237 = sor.u32 %s235, %s236
    %p238 = scmp.eq.s32.totalorder %s237, 0
    %s240 = sadd.s32 %s239, 1
    %s241 = scalar_select %p238, %s239, %s240
    %p244 = pneg %p238
    %p245 = scmp.eq.s32.totalorder %s14, 1
    %p246 = por %p244, %p245
    %p247 = scmp.ne.s32.totalorder %s239, %s242
    %p248 = scmp.eq.s32.totalorder %s14, 0
    %p249 = por %p247, %p248
    %p250 = scmp.ne.s32.totalorder %s239, %s242
    %p251 = scmp.eq.s32.totalorder %s19, 1
    %p252 = por %p250, %p251
    %p253 = scmp.ne.s32.totalorder %s242, %s243
    %p254 = scmp.eq.s32.totalorder %s19, 0
    %p255 = por %p253, %p254
    %p256 = scmp.ne.s32.totalorder %s242, %s243
    %p257 = scmp.eq.s32.totalorder %s20, 1
    %p258 = por %p256, %p257
    %p260 = scmp.ne.s32.totalorder %s243, %s259
    %p261 = scmp.eq.s32.totalorder %s20, 0
    %p262 = por %p260, %p261
    %p263 = scmp.le.s32.totalorder 1, %s14
    %p264 = scmp.lt.s32.totalorder %s14, 3
    %p265 = pnand %p263, %p264
    %p266 = pneg %p265
    // Predicated region
    $region9: #{deeplabv3_forward.14} parent=5 // pred_check
      _
    $region10: #{deeplabv3_forward.14} parent=5 // pred_check_branch
      %268 = sbr.rel (%p265) target = $region12
    $region11: #{deeplabv3_forward.14} parent=5 // pred_region
      %s269 = ssub.s32 %s14, 1
      // Predicated region
      $region13: #{deeplabv3_forward.14} parent=11 // pred_check
        %p270 = pneg %p159
      $region14: #{deeplabv3_forward.14} parent=11 // pred_check_branch
        %272 = sbr.rel (%p270) target = $region16
      $region15: #{deeplabv3_forward.14} parent=11 // pred_region
        _
      $region16: #{deeplabv3_forward.14} parent=11 // pred_fallthru
        _
      // Predicated region
      $region17: #{deeplabv3_forward.14} parent=11 // pred_check
        %p273 = pneg %p206
      $region18: #{deeplabv3_forward.14} parent=11 // pred_check_branch
        %275 = sbr.rel (%p273) target = $region20
      $region19: #{deeplabv3_forward.14} parent=11 // pred_region
        _
      $region20: #{deeplabv3_forward.14} parent=11 // pred_fallthru
        _
      // Predicated region
      $region21: #{deeplabv3_forward.14} parent=11 // pred_check
        %p276 = pneg %p227
      $region22: #{deeplabv3_forward.14} parent=11 // pred_check_branch
        %278 = sbr.rel (%p276) target = $region24
      $region23: #{deeplabv3_forward.14} parent=11 // pred_region
        _
      $region24: #{deeplabv3_forward.14} parent=11 // pred_fallthru
        _
    $region12: #{deeplabv3_forward.14} parent=5 // pred_fallthru
      _
    %p279 = scmp.lt.s32.totalorder %s14, 2
    // Predicated region
    $region25: #{deeplabv3_forward.14} parent=5 // pred_check
      %p280 = pneg %p279
    $region26: #{deeplabv3_forward.14} parent=5 // pred_check_branch
      %282 = sbr.rel (%p280) target = $region28
    $region27: #{deeplabv3_forward.14} parent=5 // pred_region
      // Predicated region
      $region29: #{deeplabv3_forward.14} parent=27 // pred_check
        %p283 = pneg %p48
      $region30: #{deeplabv3_forward.14} parent=27 // pred_check_branch
        %285 = sbr.rel (%p283) target = $region32
      $region31: #{deeplabv3_forward.14} parent=27 // pred_region
        %s286 = smul.u32 2, %s22
        %p287 = scmp.lt.s32.totalorder %s21, 1
        %s288 = scalar_select %p287, %s21, 1
        %p289 = scmp.lt.s32.totalorder %s286, 1
        %s290 = scalar_select %p289, %s286, 1
        %s291 = smul.addr %s288, 2
        %s292 = sadd.s32 %s290, %s291
        %s293 = smul.addr %s292, 4
        %s294 = scalar_lea.vmem %s0, %s293
        %s295 = smul.u32 2, %s22
      $region32: #{deeplabv3_forward.14} parent=27 // pred_fallthru
        _
      // Predicated region
      $region33: #{deeplabv3_forward.14} parent=27 // pred_check
        %p296 = pneg %p76
      $region34: #{deeplabv3_forward.14} parent=27 // pred_check_branch
        %298 = sbr.rel (%p296) target = $region36
      $region35: #{deeplabv3_forward.14} parent=27 // pred_region
        %s299 = smul.u32 2, %s22
        %p300 = scmp.lt.s32.totalorder %s21, 1
        %s301 = scalar_select %p300, %s21, 1
        %p302 = scmp.lt.s32.totalorder %s299, 1
        %s303 = scalar_select %p302, %s299, 1
        %s304 = smul.addr %s301, 2
        %s305 = sadd.s32 %s303, %s304
        %s306 = smul.addr %s305, 4
        %s307 = scalar_lea.vmem %s1, %s306
        %s308 = smul.u32 2, %s22
      $region36: #{deeplabv3_forward.14} parent=27 // pred_fallthru
        _
      // Predicated region
      $region37: #{deeplabv3_forward.14} parent=27 // pred_check
        %p309 = pneg %p104
      $region38: #{deeplabv3_forward.14} parent=27 // pred_check_branch
        %311 = sbr.rel (%p309) target = $region40
      $region39: #{deeplabv3_forward.14} parent=27 // pred_region
        %s312 = smul.u32 2, %s22
        %p313 = scmp.lt.s32.totalorder %s21, 1
        %s314 = scalar_select %p313, %s21, 1
        %p315 = scmp.lt.s32.totalorder %s312, 1
        %s316 = scalar_select %p315, %s312, 1
        %s317 = smul.addr %s314, 2
        %s318 = sadd.s32 %s316, %s317
        %s319 = smul.addr %s318, 4
        %s320 = scalar_lea.vmem %s2, %s319
        %s321 = smul.u32 2, %s22
      $region40: #{deeplabv3_forward.14} parent=27 // pred_fallthru
        _
      // Predicated region
      $region41: #{deeplabv3_forward.14} parent=27 // pred_check
        %p322 = pneg %p132
      $region42: #{deeplabv3_forward.14} parent=27 // pred_check_branch
        %324 = sbr.rel (%p322) target = $region44
      $region43: #{deeplabv3_forward.14} parent=27 // pred_region
        %s325 = smul.u32 2, %s22
        %p326 = scmp.lt.s32.totalorder %s21, 1
        %s327 = scalar_select %p326, %s21, 1
        %p328 = scmp.lt.s32.totalorder %s325, 1
        %s329 = scalar_select %p328, %s325, 1
        %s330 = smul.addr %s327, 2
        %s331 = sadd.s32 %s329, %s330
        %s332 = smul.addr %s331, 4
        %s333 = scalar_lea.vmem %s3, %s332
        %s334 = smul.u32 2, %s22
      $region44: #{deeplabv3_forward.14} parent=27 // pred_fallthru
        _
      // Predicated region
      $region45: #{deeplabv3_forward.14} parent=27 // pred_check
        %p335 = pneg %p179
      $region46: #{deeplabv3_forward.14} parent=27 // pred_check_branch
        %337 = sbr.rel (%p335) target = $region48
      $region47: #{deeplabv3_forward.14} parent=27 // pred_region
        %p338 = scmp.lt.s32.totalorder %s21, 1
        %s339 = scalar_select %p338, %s21, 1
        %s340 = scalar_lea.vmem %s5, %s339
      $region48: #{deeplabv3_forward.14} parent=27 // pred_fallthru
        _
    $region28: #{deeplabv3_forward.14} parent=5 // pred_fallthru
      _
    %p341 = scmp.le.s32.totalorder 1, %s14
    %p342 = scmp.lt.s32.totalorder %s14, 3
    %p343 = pnand %p341, %p342
    %p344 = pneg %p343
    // Predicated region
    $region49: #{deeplabv3_forward.14} parent=5 // pred_check
      _
    $region50: #{deeplabv3_forward.14} parent=5 // pred_check_branch
      %346 = sbr.rel (%p343) target = $region52
    $region51: #{deeplabv3_forward.14} parent=5 // pred_region
      %s347 = ssub.s32 %s14, 1
      %s348 = smul.u32 2, %s24
      %p349 = scmp.lt.s32.totalorder %s23, 1
      %s350 = scalar_select %p349, %s23, 1
      %p351 = scmp.lt.s32.totalorder %s348, 1
      %s352 = scalar_select %p351, %s348, 1
      %s353 = smul.addr %s350, 2
      %s354 = sadd.s32 %s352, %s353
      %s355 = smul.addr %s354, 4
      %s356 = scalar_lea.vmem %s0, %s355
      %p357 = pneg %p54
      %p358 = pneg %p51
      %s359 = smul.u32 2, %s24
      %p360 = scmp.lt.s32.totalorder %s23, 1
      %s361 = scalar_select %p360, %s23, 1
      %p362 = scmp.lt.s32.totalorder %s359, 1
      %s363 = scalar_select %p362, %s359, 1
      %s364 = smul.addr %s361, 2
      %s365 = sadd.s32 %s363, %s364
      %s366 = smul.addr %s365, 4
      %s367 = scalar_lea.vmem %s1, %s366
      %p368 = pneg %p82
      %p369 = pneg %p79
      %s370 = smul.u32 2, %s24
      %p371 = scmp.lt.s32.totalorder %s23, 1
      %s372 = scalar_select %p371, %s23, 1
      %p373 = scmp.lt.s32.totalorder %s370, 1
      %s374 = scalar_select %p373, %s370, 1
      %s375 = smul.addr %s372, 2
      %s376 = sadd.s32 %s374, %s375
      %s377 = smul.addr %s376, 4
      %s378 = scalar_lea.vmem %s2, %s377
      %p379 = pneg %p110
      %p380 = pneg %p107
      %s381 = smul.u32 2, %s24
      %p382 = scmp.lt.s32.totalorder %s23, 1
      %s383 = scalar_select %p382, %s23, 1
      %p384 = scmp.lt.s32.totalorder %s381, 1
      %s385 = scalar_select %p384, %s381, 1
      %s386 = smul.addr %s383, 2
      %s387 = sadd.s32 %s385, %s386
      %s388 = smul.addr %s387, 4
      %s389 = scalar_lea.vmem %s3, %s388
      %p390 = pneg %p138
      %p391 = pneg %p135
      %p392 = pneg %p159
      %p393 = pneg %p156
      %p394 = scmp.lt.s32.totalorder %s23, 1
      %s395 = scalar_select %p394, %s23, 1
      %s396 = scalar_lea.vmem %s5, %s395
      %p397 = pneg %p185
      %p398 = pneg %p182
      %p399 = pneg %p206
      %p400 = pneg %p203
      %p401 = pneg %p227
      %p402 = pneg %p224
      %p403 = pneg %p255
      %p404 = pneg %p252
      %s405 = smul.u32 2, %s24
      %p406 = scmp.lt.s32.totalorder %s23, 1
      %s407 = scalar_select %p406, %s23, 1
      %p408 = scmp.lt.s32.totalorder %s405, 1
      %s409 = scalar_select %p408, %s405, 1
      %s410 = smul.addr %s407, 2
      %s411 = sadd.s32 %s409, %s410
      %s412 = smul.addr %s411, 8
      %s413 = scalar_lea.vmem %s8, %s412
      %s414 = smul.u32 2, %s24
      %p415 = scmp.lt.s32.totalorder %s23, 1
      %s416 = scalar_select %p415, %s23, 1
      %p417 = scmp.lt.s32.totalorder %s414, 1
      %s418 = scalar_select %p417, %s414, 1
      %s419 = smul.addr %s416, 2
      %s420 = sadd.s32 %s418, %s419
      %s421 = smul.addr %s420, 4
      %s422 = scalar_lea.vmem %s0, %s421
      %s423 = smul.u32 2, %s24
      %s424 = smul.u32 2, %s24
      %p425 = scmp.lt.s32.totalorder %s23, 1
      %s426 = scalar_select %p425, %s23, 1
      %p427 = scmp.lt.s32.totalorder %s424, 1
      %s428 = scalar_select %p427, %s424, 1
      %s429 = smul.addr %s426, 2
      %s430 = sadd.s32 %s428, %s429
      %s431 = smul.addr %s430, 4
      %s432 = scalar_lea.vmem %s1, %s431
      %s433 = smul.u32 2, %s24
      %s434 = smul.u32 2, %s24
      %p435 = scmp.lt.s32.totalorder %s23, 1
      %s436 = scalar_select %p435, %s23, 1
      %p437 = scmp.lt.s32.totalorder %s434, 1
      %s438 = scalar_select %p437, %s434, 1
      %s439 = smul.addr %s436, 2
      %s440 = sadd.s32 %s438, %s439
      %s441 = smul.addr %s440, 4
      %s442 = scalar_lea.vmem %s2, %s441
      %s443 = smul.u32 2, %s24
      %s444 = smul.u32 2, %s24
      %p445 = scmp.lt.s32.totalorder %s23, 1
      %s446 = scalar_select %p445, %s23, 1
      %p447 = scmp.lt.s32.totalorder %s444, 1
      %s448 = scalar_select %p447, %s444, 1
      %s449 = smul.addr %s446, 2
      %s450 = sadd.s32 %s448, %s449
      %s451 = smul.addr %s450, 4
      %s452 = scalar_lea.vmem %s3, %s451
      %s453 = smul.u32 2, %s24
      %p454 = scmp.lt.s32.totalorder %s23, 1
      %s455 = scalar_select %p454, %s23, 1
      %s456 = scalar_lea.vmem %s5, %s455
      %s457 = smul.u32 2, %s24
      %p458 = scmp.lt.s32.totalorder %s23, 1
      %s459 = scalar_select %p458, %s23, 1
      %p460 = scmp.lt.s32.totalorder %s457, 1
      %s461 = scalar_select %p460, %s457, 1
      %s462 = smul.addr %s459, 2
      %s463 = sadd.s32 %s461, %s462
      %s464 = smul.addr %s463, 8
      %s465 = scalar_lea.vmem %s8, %s464
      %s466 = smul.u32 2, %s24
      %v468 = vld [vmem:[%s422] sm:$0xf]
      %v469 = vld [vmem:[%s422 + $0x4] sm:$0xf]
      %v470 = vld [vmem:[%s4] sm:$0xf]
      %v471 = vld [vmem:[%s4 + $0x4] sm:$0xf]
      %v472 = vld [vmem:[%s4 + $0x8] sm:$0xf]
      %v473 = vld [vmem:[%s4 + $0xc] sm:$0xf]
      %v474 = vld [vmem:[%s432] sm:$0xf]
      %v475 = vld [vmem:[%s432 + $0x4] sm:$0xf]
      %s476 = scalar_lea.vmem %s4, 16
      %v477 = vld [vmem:[%s476] sm:$0xf]
      %v478 = vld [vmem:[%s476 + $0x4] sm:$0xf]
      %v479 = vld [vmem:[%s476 + $0x8] sm:$0xf]
      %v480 = vld [vmem:[%s476 + $0xc] sm:$0xf]
      %v483 = vunpack.c.l.b16 %v474
      %v484 = vunpack.c.l.b16 %v475
      %v485 = vpack.c.b16 %v484, %v483
      %v490 = vunpack.c.l.b16 %v477
      %v491 = vunpack.c.l.b16 %v478
      %v492 = vunpack.c.l.b16 %v479
      %v493 = vunpack.c.l.b16 %v480
      %v494 = vpack.c.b16 %v491, %v490
      %v495 = vpack.c.b16 %v493, %v492
      %vm498 = vcmask 261120
      %v500 = vsel %vm498, %v485, 0
      %502 = vmatprep.subr.bf16.mxu0 0
      %503 = vmatpush1.bf16.msra.mxu0 %v494
      %504 = vmatprep.subr.bf16.mxu0 0
      %505 = vmatpush1.bf16.msra.mxu0 %v495
      %506 = vmatprep.subr.bf16.mxu0 0
      %507 = vmatpush1.bf16.msra.mxu0 0
      %508 = vmatprep.subr.bf16.mxu0 0
      %509 = vmatpush1.bf16.msra.mxu0 0
      %510 = vmatprep.subr.bf16.mxu0 0
      %511 = vmatpush1.bf16.msra.mxu0 0
      %512 = vmatprep.subr.bf16.mxu0 0
      %513 = vmatpush1.bf16.msra.mxu0 0
      %514 = vmatprep.subr.bf16.mxu0 0
      %515 = vmatpush1.bf16.msra.mxu0 0
      %516 = vmatprep.subr.bf16.mxu0 0
      %517 = vmatpush1.bf16.msra.mxu0 0
      %518 = vmatprep.subr.bf16.mxu0 0
      %519 = vmatpush1.bf16.msra.mxu0 0
      %520 = vmatprep.subr.bf16.mxu0 0
      %521 = vmatpush1.bf16.msra.mxu0 0
      %522 = vmatprep.subr.bf16.mxu0 0
      %523 = vmatpush1.bf16.msra.mxu0 0
      %524 = vmatprep.subr.bf16.mxu0 0
      %525 = vmatpush1.bf16.msra.mxu0 0
      %526 = vmatprep.subr.bf16.mxu0 0
      %527 = vmatpush1.bf16.msra.mxu0 0
      %528 = vmatprep.subr.bf16.mxu0 0
      %529 = vmatpush1.bf16.msra.mxu0 0
      %530 = vmatprep.subr.bf16.mxu0 0
      %531 = vmatpush1.bf16.msra.mxu0 0
      %532 = vmatprep.subr.bf16.mxu0 0
      %533 = vmatpush1.bf16.msra.mxu0 0
      %534 = vmatprep.mubr.bf16.mxu0 0
      %535 = vmatmul.mubr.bf16.gmra.mrb[0].mxu0 %v500
      %v536 = vpop.f32.mrb[0].mxu0
      %v537 = vadd.f32 0.0, %v536
      %v538 = vpop.f32.mrb[0].mxu0
      %v539 = vpop.f32.mrb[0].mxu0
      %v540 = vadd.f32 0.0, %v539
      %v541 = vpop.f32.mrb[0].mxu0
      %542 = vdwg.mxu0
      %v545 = vunpack.c.l.b16 %v468
      %v546 = vunpack.c.l.b16 %v469
      %v547 = vpack.c.b16 %v546, %v545
      %v552 = vunpack.c.l.b16 %v470
      %v553 = vunpack.c.l.b16 %v471
      %v554 = vunpack.c.l.b16 %v472
      %v555 = vunpack.c.l.b16 %v473
      %v556 = vpack.c.b16 %v553, %v552
      %v557 = vpack.c.b16 %v555, %v554
      %v561 = vsel %vm498, %v547, 0
      %563 = vmatprep.subr.bf16.mxu0 0
      %564 = vmatpush1.bf16.msra.mxu0 %v556
      %565 = vmatprep.subr.bf16.mxu0 0
      %566 = vmatpush1.bf16.msra.mxu0 %v557
      %567 = vmatprep.subr.bf16.mxu0 0
      %568 = vmatpush1.bf16.msra.mxu0 0
      %569 = vmatprep.subr.bf16.mxu0 0
      %570 = vmatpush1.bf16.msra.mxu0 0
      %571 = vmatprep.subr.bf16.mxu0 0
      %572 = vmatpush1.bf16.msra.mxu0 0
      %573 = vmatprep.subr.bf16.mxu0 0
      %574 = vmatpush1.bf16.msra.mxu0 0
      %575 = vmatprep.subr.bf16.mxu0 0
      %576 = vmatpush1.bf16.msra.mxu0 0
      %577 = vmatprep.subr.bf16.mxu0 0
      %578 = vmatpush1.bf16.msra.mxu0 0
      %579 = vmatprep.subr.bf16.mxu0 0
      %580 = vmatpush1.bf16.msra.mxu0 0
      %581 = vmatprep.subr.bf16.mxu0 0
      %582 = vmatpush1.bf16.msra.mxu0 0
      %583 = vmatprep.subr.bf16.mxu0 0
      %584 = vmatpush1.bf16.msra.mxu0 0
      %585 = vmatprep.subr.bf16.mxu0 0
      %586 = vmatpush1.bf16.msra.mxu0 0
      %587 = vmatprep.subr.bf16.mxu0 0
      %588 = vmatpush1.bf16.msra.mxu0 0
      %589 = vmatprep.subr.bf16.mxu0 0
      %590 = vmatpush1.bf16.msra.mxu0 0
      %591 = vmatprep.subr.bf16.mxu0 0
      %592 = vmatpush1.bf16.msra.mxu0 0
      %593 = vmatprep.subr.bf16.mxu0 0
      %594 = vmatpush1.bf16.msra.mxu0 0
      %595 = vmatprep.mubr.bf16.mxu0 0
      %596 = vmatmul.mubr.bf16.gmra.mrb[0].mxu0 %v561
      %v597 = vpop.f32.mrb[0].mxu0
      %v598 = vadd.f32 %v537, %v597
      %v599 = vpop.f32.mrb[0].mxu0
      %v600 = vpop.f32.mrb[0].mxu0
      %v601 = vadd.f32 %v540, %v600
      %v602 = vpop.f32.mrb[0].mxu0
      %603 = vdwg.mxu0
      %v604 = vld [vmem:[%s442] sm:$0xf]
      %v605 = vld [vmem:[%s442 + $0x4] sm:$0xf]
      %s606 = scalar_lea.vmem %s4, 32
      %v607 = vld [vmem:[%s606] sm:$0xf]
      %v608 = vld [vmem:[%s606 + $0x4] sm:$0xf]
      %v609 = vld [vmem:[%s606 + $0x8] sm:$0xf]
      %v610 = vld [vmem:[%s606 + $0xc] sm:$0xf]
      %v613 = vunpack.c.l.b16 %v604
      %v614 = vunpack.c.l.b16 %v605
      %v615 = vpack.c.b16 %v614, %v613
      %v620 = vunpack.c.l.b16 %v607
      %v621 = vunpack.c.l.b16 %v608
      %v622 = vunpack.c.l.b16 %v609
      %v623 = vunpack.c.l.b16 %v610
      %v624 = vpack.c.b16 %v621, %v620
      %v625 = vpack.c.b16 %v623, %v622
      %v629 = vsel %vm498, %v615, 0
      %631 = vmatprep.subr.bf16.mxu0 0
      %632 = vmatpush1.bf16.msra.mxu0 %v624
      %633 = vmatprep.subr.bf16.mxu0 0
      %634 = vmatpush1.bf16.msra.mxu0 %v625
      %635 = vmatprep.subr.bf16.mxu0 0
      %636 = vmatpush1.bf16.msra.mxu0 0
      %637 = vmatprep.subr.bf16.mxu0 0
      %638 = vmatpush1.bf16.msra.mxu0 0
      %639 = vmatprep.subr.bf16.mxu0 0
      %640 = vmatpush1.bf16.msra.mxu0 0
      %641 = vmatprep.subr.bf16.mxu0 0
      %642 = vmatpush1.bf16.msra.mxu0 0
      %643 = vmatprep.subr.bf16.mxu0 0
      %644 = vmatpush1.bf16.msra.mxu0 0
      %645 = vmatprep.subr.bf16.mxu0 0
      %646 = vmatpush1.bf16.msra.mxu0 0
      %647 = vmatprep.subr.bf16.mxu0 0
      %648 = vmatpush1.bf16.msra.mxu0 0
      %649 = vmatprep.subr.bf16.mxu0 0
      %650 = vmatpush1.bf16.msra.mxu0 0
      %651 = vmatprep.subr.bf16.mxu0 0
      %652 = vmatpush1.bf16.msra.mxu0 0
      %653 = vmatprep.subr.bf16.mxu0 0
      %654 = vmatpush1.bf16.msra.mxu0 0
      %655 = vmatprep.subr.bf16.mxu0 0
      %656 = vmatpush1.bf16.msra.mxu0 0
      %657 = vmatprep.subr.bf16.mxu0 0
      %658 = vmatpush1.bf16.msra.mxu0 0
      %659 = vmatprep.subr.bf16.mxu0 0
      %660 = vmatpush1.bf16.msra.mxu0 0
      %661 = vmatprep.subr.bf16.mxu0 0
      %662 = vmatpush1.bf16.msra.mxu0 0
      %663 = vmatprep.mubr.bf16.mxu0 0
      %664 = vmatmul.mubr.bf16.gmra.mrb[0].mxu0 %v629
      %v665 = vpop.f32.mrb[0].mxu0
      %v666 = vadd.f32 0.0, %v665
      %v667 = vpop.f32.mrb[0].mxu0
      %v668 = vpop.f32.mrb[0].mxu0
      %v669 = vadd.f32 0.0, %v668
      %v670 = vpop.f32.mrb[0].mxu0
      %671 = vdwg.mxu0
      %v672 = vadd.f32 %v598, %v666
      %v673 = vadd.f32 %v601, %v669
      %v674 = vld [vmem:[%s452] sm:$0xf]
      %v675 = vld [vmem:[%s452 + $0x4] sm:$0xf]
      %s676 = scalar_lea.vmem %s4, 48
      %v677 = vld [vmem:[%s676] sm:$0xf]
      %v678 = vld [vmem:[%s676 + $0x4] sm:$0xf]
      %v679 = vld [vmem:[%s676 + $0x8] sm:$0xf]
      %v680 = vld [vmem:[%s676 + $0xc] sm:$0xf]
      %v683 = vunpack.c.l.b16 %v674
      %v684 = vunpack.c.l.b16 %v675
      %v685 = vpack.c.b16 %v684, %v683
      %v690 = vunpack.c.l.b16 %v677
      %v691 = vunpack.c.l.b16 %v678
      %v692 = vunpack.c.l.b16 %v679
      %v693 = vunpack.c.l.b16 %v680
      %v694 = vpack.c.b16 %v691, %v690
      %v695 = vpack.c.b16 %v693, %v692
      %v699 = vsel %vm498, %v685, 0
      %701 = vmatprep.subr.bf16.mxu0 0
      %702 = vmatpush1.bf16.msra.mxu0 %v694
      %703 = vmatprep.subr.bf16.mxu0 0
      %704 = vmatpush1.bf16.msra.mxu0 %v695
      %705 = vmatprep.subr.bf16.mxu0 0
      %706 = vmatpush1.bf16.msra.mxu0 0
      %707 = vmatprep.subr.bf16.mxu0 0
      %708 = vmatpush1.bf16.msra.mxu0 0
      %709 = vmatprep.subr.bf16.mxu0 0
      %710 = vmatpush1.bf16.msra.mxu0 0
      %711 = vmatprep.subr.bf16.mxu0 0
      %712 = vmatpush1.bf16.msra.mxu0 0
      %713 = vmatprep.subr.bf16.mxu0 0
      %714 = vmatpush1.bf16.msra.mxu0 0
      %715 = vmatprep.subr.bf16.mxu0 0
      %716 = vmatpush1.bf16.msra.mxu0 0
      %717 = vmatprep.subr.bf16.mxu0 0
      %718 = vmatpush1.bf16.msra.mxu0 0
      %719 = vmatprep.subr.bf16.mxu0 0
      %720 = vmatpush1.bf16.msra.mxu0 0
      %721 = vmatprep.subr.bf16.mxu0 0
      %722 = vmatpush1.bf16.msra.mxu0 0
      %723 = vmatprep.subr.bf16.mxu0 0
      %724 = vmatpush1.bf16.msra.mxu0 0
      %725 = vmatprep.subr.bf16.mxu0 0
      %726 = vmatpush1.bf16.msra.mxu0 0
      %727 = vmatprep.subr.bf16.mxu0 0
      %728 = vmatpush1.bf16.msra.mxu0 0
      %729 = vmatprep.subr.bf16.mxu0 0
      %730 = vmatpush1.bf16.msra.mxu0 0
      %731 = vmatprep.subr.bf16.mxu0 0
      %732 = vmatpush1.bf16.msra.mxu0 0
      %733 = vmatprep.mubr.bf16.mxu0 0
      %734 = vmatmul.mubr.bf16.gmra.mrb[0].mxu0 %v699
      %v735 = vpop.f32.mrb[0].mxu0
      %v736 = vadd.f32 0.0, %v735
      %v737 = vpop.f32.mrb[0].mxu0
      %v738 = vpop.f32.mrb[0].mxu0
      %v739 = vadd.f32 0.0, %v738
      %v740 = vpop.f32.mrb[0].mxu0
      %741 = vdwg.mxu0
      %v742 = vadd.f32 %v672, %v736
      %v743 = vadd.f32 %v673, %v739
      %v744 = vld [vmem:[%s456] sm:$0x1]
      %v746 = vlaneseq
      %v747 = vshrl.u32 %v746, 7
      %v748 = vsub.s32 0, %v747
      %v749 = vrot.slane %v744, %v748
      %v751 = vadd.f32 %v742, %v749
      %v752 = vadd.f32 %v743, %v749
      %v753 = vmax.f32 %v751, 0.0
      %v754 = vmax.f32 %v752, 0.0
      %v755 = vpack.c.bf16 %v754, %v753
      %v756 = vld [vmem:[%s6] sm:$0xf]
      %v757 = vld [vmem:[%s6 + $0x4] sm:$0xf]
      %v758 = vld [vmem:[%s6 + $0x8] sm:$0xf]
      %v759 = vld [vmem:[%s6 + $0xc] sm:$0xf]
      %v760 = vld [vmem:[%s7] sm:$0x1]
      %v762 = vlaneseq
      %v763 = vshrl.u32 %v762, 7
      %v764 = vsub.s32 0, %v763
      %v765 = vrot.slane %v760, %v764
      %v771 = vunpack.c.l.b16 %v756
      %v772 = vunpack.c.l.b16 %v757
      %v773 = vunpack.c.l.b16 %v758
      %v774 = vunpack.c.l.b16 %v759
      %v775 = vpack.c.b16 %v772, %v771
      %v776 = vpack.c.b16 %v774, %v773
      %v780 = vsel %vm498, %v755, 0
      %782 = vmatprep.subr.bf16.mxu0 0
      %783 = vmatpush1.bf16.msra.mxu0 %v775
      %784 = vmatprep.subr.bf16.mxu0 0
      %785 = vmatpush1.bf16.msra.mxu0 %v776
      %786 = vmatprep.subr.bf16.mxu0 0
      %787 = vmatpush1.bf16.msra.mxu0 0
      %788 = vmatprep.subr.bf16.mxu0 0
      %789 = vmatpush1.bf16.msra.mxu0 0
      %790 = vmatprep.subr.bf16.mxu0 0
      %791 = vmatpush1.bf16.msra.mxu0 0
      %792 = vmatprep.subr.bf16.mxu0 0
      %793 = vmatpush1.bf16.msra.mxu0 0
      %794 = vmatprep.subr.bf16.mxu0 0
      %795 = vmatpush1.bf16.msra.mxu0 0
      %796 = vmatprep.subr.bf16.mxu0 0
      %797 = vmatpush1.bf16.msra.mxu0 0
      %798 = vmatprep.subr.bf16.mxu0 0
      %799 = vmatpush1.bf16.msra.mxu0 0
      %800 = vmatprep.subr.bf16.mxu0 0
      %801 = vmatpush1.bf16.msra.mxu0 0
      %802 = vmatprep.subr.bf16.mxu0 0
      %803 = vmatpush1.bf16.msra.mxu0 0
      %804 = vmatprep.subr.bf16.mxu0 0
      %805 = vmatpush1.bf16.msra.mxu0 0
      %806 = vmatprep.subr.bf16.mxu0 0
      %807 = vmatpush1.bf16.msra.mxu0 0
      %808 = vmatprep.subr.bf16.mxu0 0
      %809 = vmatpush1.bf16.msra.mxu0 0
      %810 = vmatprep.subr.bf16.mxu0 0
      %811 = vmatpush1.bf16.msra.mxu0 0
      %812 = vmatprep.subr.bf16.mxu0 0
      %813 = vmatpush1.bf16.msra.mxu0 0
      %814 = vmatprep.mubr.bf16.mxu0 0
      %815 = vmatmul.mubr.bf16.gmra.mrb[0].mxu0 %v780
      %v816 = vpop.f32.mrb[0].mxu0
      %v817 = vadd.f32 %v765, %v816
      %v818 = vpop.f32.mrb[0].mxu0
      %v819 = vpop.f32.mrb[0].mxu0
      %v820 = vadd.f32 %v765, %v819
      %v821 = vpop.f32.mrb[0].mxu0
      %822 = vdwg.mxu0
      %vm823 = vcmask 48128
      %824 = vst.msk [vmem:[%s465] sm:$0xff] %vm823, %v817
      %825 = vst.msk [vmem:[%s465 + $0x8] sm:$0xff] %vm823, %v820
      %s826 = smul.u32 2, %s24
      %p827 = scmp.lt.s32.totalorder %s23, 1
      %s828 = scalar_select %p827, %s23, 1
      %p829 = scmp.lt.s32.totalorder %s826, 1
      %s830 = scalar_select %p829, %s826, 1
      %s831 = smul.addr %s828, 2
      %s832 = sadd.s32 %s830, %s831
      %s833 = smul.addr %s832, 8
      %s834 = scalar_lea.vmem %s8, %s833
      // Predicated region
      $region53: #{deeplabv3_forward.14} parent=51 // pred_check
        %p835 = pneg %p252
      $region54: #{deeplabv3_forward.14} parent=51 // pred_check_branch
        %837 = sbr.rel (%p835) target = $region56
      $region55: #{deeplabv3_forward.14} parent=51 // pred_region
        %s838 = smul.u32 2, %s24
      $region56: #{deeplabv3_forward.14} parent=51 // pred_fallthru
        _
    $region52: #{deeplabv3_forward.14} parent=5 // pred_fallthru
      _
    %p839 = scmp.le.s32.totalorder 2, %s14
    // Predicated region
    $region57: #{deeplabv3_forward.14} parent=5 // pred_check
      %p840 = pneg %p839
    $region58: #{deeplabv3_forward.14} parent=5 // pred_check_branch
      %842 = sbr.rel (%p840) target = $region60
    $region59: #{deeplabv3_forward.14} parent=5 // pred_region
      %s843 = ssub.s32 %s14, 2
      // Predicated region
      $region61: #{deeplabv3_forward.14} parent=59 // pred_check
        %p844 = pneg %p258
      $region62: #{deeplabv3_forward.14} parent=59 // pred_check_branch
        %846 = sbr.rel (%p844) target = $region64
      $region63: #{deeplabv3_forward.14} parent=59 // pred_region
        %s847 = smul.u32 2, %s26
        %p848 = scmp.lt.s32.totalorder %s25, 1
        %s849 = scalar_select %p848, %s25, 1
        %p850 = scmp.lt.s32.totalorder %s847, 1
        %s851 = scalar_select %p850, %s847, 1
        %s852 = smul.addr %s849, 2
        %s853 = sadd.s32 %s851, %s852
        %s854 = smul.addr %s853, 8
        %s855 = scalar_lea.vmem %s8, %s854
      $region64: #{deeplabv3_forward.14} parent=59 // pred_fallthru
        _
    $region60: #{deeplabv3_forward.14} parent=5 // pred_fallthru
      _
  $region6: #{deeplabv3_forward.14} parent=0 // loop_footer
    %s18 = sadd.s32 1, %s14
  $region7: #{deeplabv3_forward.14} parent=0 // loop_footer_branch
    %13 = sbr.rel target = $region3
  $region8: #{deeplabv3_forward.14} parent=0 // loop_exit
    _

</llo_original>
